<compile_context>
chip_gen: v6e
topology: v6e:2x2x1
jax: 0.10.0
libtpu: 0.0.40
codegen_flags: <defaults>
</compile_context>

<pallas_src>
import jax
import jax.numpy as jnp
from jax.experimental import pallas as pl
from jax.experimental.pallas import tpu as pltpu

KSIZE = 4
STRIDE = 2
PAD = 1


# ---------------------------------------------------------------------------
# Fused Pallas kernel: whole 4-layer conv stack for one image per grid step.
# ---------------------------------------------------------------------------
def _fused_forward_kernel(x_ref, *refs):
    """refs = (S1, G1, b1, S2, G2, b2, S3, G3, b3, S4, G4, b4, out_ref)."""
    out_ref = refs[-1]
    layer_refs = refs[:-1]
    n_layers = len(layer_refs) // 3

    a = x_ref[0]  # (H, W*Cin) f32 activation for this image
    for l in range(n_layers):
        s_ref = layer_refs[3 * l + 0]   # (4, Ho, H)            row-tap selection
        g_ref = layer_refs[3 * l + 1]   # (4, W*Cin, Wo*Cout)   Toeplitz weights
        b_ref = layer_refs[3 * l + 2]   # (1, Wo*Cout)          tiled bias
        acc = None
        for ki in range(KSIZE):
            rows = jnp.dot(s_ref[ki], a, preferred_element_type=jnp.float32)
            part = jnp.dot(rows, g_ref[ki], preferred_element_type=jnp.float32)
            acc = part if acc is None else acc + part
        a = acc + b_ref[...]
        if l + 1 < n_layers:            # ReLU on all but the last conv
            a = jnp.maximum(a, 0.0)
    out_ref[0] = a.astype(out_ref.dtype)


# ---------------------------------------------------------------------------
# Constant-matrix construction (weight repackaging; plain JAX, tiny, one-time)
# ---------------------------------------------------------------------------
def _row_select_matrices(h_in):
    """S[ki, i, h] = 1 iff h == 2*i + ki - 1 (padding rows get all-zero rows)."""
    h_out = (h_in + 2 * PAD - KSIZE) // STRIDE + 1
    ki = jnp.arange(KSIZE)[:, None, None]
    io = jnp.arange(h_out)[None, :, None]
    hi = jnp.arange(h_in)[None, None, :]
    sel = (hi == (STRIDE * io + ki - PAD)).astype(jnp.float32)
    return sel, h_out


def _toeplitz_weight(weight, w_in):
    """weight (Cout, Cin, 4, 4) torch layout -> (4, w_in*Cin, w_out*Cout)."""
    cout, cin = weight.shape[0], weight.shape[1]
    w_out = (w_in + 2 * PAD - KSIZE) // STRIDE + 1
    wi = jnp.arange(w_in)[:, None]
    jo = jnp.arange(w_out)[None, :]
    kj = wi + PAD - STRIDE * jo                                  # (w_in, w_out)
    valid = ((kj >= 0) & (kj < KSIZE)).astype(weight.dtype)
    kj_c = jnp.clip(kj, 0, KSIZE - 1)
    wt = jnp.transpose(weight, (2, 3, 1, 0))                     # (ki, kj, Cin, Cout)
    g = wt[:, kj_c] * valid[None, :, :, None, None]              # (ki, w_in, w_out, Cin, Cout)
    g = jnp.transpose(g, (0, 1, 3, 2, 4))                        # (ki, w_in, Cin, w_out, Cout)
    return g.reshape(KSIZE, w_in * cin, w_out * cout), w_out


# ---------------------------------------------------------------------------
# ConvPreEncoder forward (single fused pallas_call)
# ---------------------------------------------------------------------------
def conv_pre_encoder(x, params):
    n, cin, h, w = x.shape
    # NCHW -> (N, H, W*C): one cheap layout op on the network input only.
    a0 = jnp.transpose(x, (0, 2, 3, 1)).reshape(n, h, w * cin)

    flat_inputs = [a0]
    in_specs = [pl.BlockSpec((1, h, w * cin), lambda i: (i, 0, 0))]

    hh, ww = h, w
    for (wt, b) in params:
        cout = wt.shape[0]
        sel, ho = _row_select_matrices(hh)
        g, wo = _toeplitz_weight(wt, ww)
        b2 = jnp.tile(b, (wo,)).reshape(1, wo * cout)
        flat_inputs += [sel, g, b2]
        in_specs += [pl.BlockSpec(sel.shape, lambda i: (0, 0, 0)),
                     pl.BlockSpec(g.shape, lambda i: (0, 0, 0)),
                     pl.BlockSpec(b2.shape, lambda i: (0, 0))]
        hh, ww = ho, wo

    cout_last = params[-1][0].shape[0]
    out = pl.pallas_call(
        _fused_forward_kernel,
        out_shape=jax.ShapeDtypeStruct((n, hh, ww * cout_last), jnp.float32),
        grid_spec=pltpu.PrefetchScalarGridSpec(
            num_scalar_prefetch=0,
            grid=(n,),
            in_specs=in_specs,
            out_specs=pl.BlockSpec((1, hh, ww * cout_last), lambda i: (i, 0, 0)),
        ),
        compiler_params=pltpu.CompilerParams(
            dimension_semantics=("parallel",)),
    )(*flat_inputs)

    # (N, Ho, Wo*Cout) -> torch's x.view(N, -1) on NCHW, i.e. order (c, h, w).
    out = out.reshape(n, hh, ww, cout_last).transpose(0, 3, 1, 2)
    return out.reshape(n, -1)


# ---------------------------------------------------------------------------
# Parameters + pure-JAX reference
# ---------------------------------------------------------------------------
def init_params(key):
    """Deterministic parameters; same shapes as the torch module."""
    shapes = [
        (32, 3, KSIZE, KSIZE),
        (32, 32, KSIZE, KSIZE),
        (64, 32, KSIZE, KSIZE),
        (64, 64, KSIZE, KSIZE),
    ]
    params = []
    for i, shp in enumerate(shapes):
        kw, kb = jax.random.split(jax.random.fold_in(key, i))
        fan_in = shp[1] * shp[2] * shp[3]
        scale = 1.0 / jnp.sqrt(fan_in)
        wgt = jax.random.uniform(kw, shp, jnp.float32, -scale, scale)
        b = jax.random.uniform(kb, (shp[0],), jnp.float32, -scale, scale)
        params.append((wgt, b))
    return params


def conv_pre_encoder_ref(x, params):
    for i, (wgt, b) in enumerate(params):
        x = jax.lax.conv_general_dilated(
            x, wgt, window_strides=(STRIDE, STRIDE),
            padding=((PAD, PAD), (PAD, PAD)),
            dimension_numbers=("NCHW", "OIHW", "NCHW"))
        x = x + b.reshape(1, -1, 1, 1)
        if i < len(params) - 1:
            x = jnp.maximum(x, 0.0)
    return x.reshape(x.shape[0], -1)


if __name__ == "__main__":
    key = jax.random.PRNGKey(0)
    kx, kp = jax.random.split(key)

    # batch=2, 3 channels, 32x32 spatial -> output (2, 64*2*2) = (2, 256)
    x = jax.random.normal(kx, (2, 3, 32, 32), dtype=jnp.float32)
    params = init_params(kp)

    fwd = jax.jit(conv_pre_encoder)
    out = jax.block_until_ready(fwd(x, params))

    ref = jax.block_until_ready(conv_pre_encoder_ref(x, params))
    assert out.shape == (2, 64 * 2 * 2), out.shape
    assert jnp.allclose(out, ref, atol=5e-4, rtol=5e-4), float(
        jnp.max(jnp.abs(out - ref)))

    print("KERNEL_OK")
</pallas_src>

<mosaic_0001>
module attributes {stable_mosaic.version = 11 : i64} {
  func.func @_fused_forward_kernel(%arg0: i32, %arg1: memref<1x32x96xf32, #tpu.memory_space<vmem>>, %arg2: memref<4x16x32xf32, #tpu.memory_space<vmem>>, %arg3: memref<4x96x512xf32, #tpu.memory_space<vmem>>, %arg4: memref<1x512xf32, #tpu.memory_space<vmem>>, %arg5: memref<4x8x16xf32, #tpu.memory_space<vmem>>, %arg6: memref<4x512x256xf32, #tpu.memory_space<vmem>>, %arg7: memref<1x256xf32, #tpu.memory_space<vmem>>, %arg8: memref<4x4x8xf32, #tpu.memory_space<vmem>>, %arg9: memref<4x256x256xf32, #tpu.memory_space<vmem>>, %arg10: memref<1x256xf32, #tpu.memory_space<vmem>>, %arg11: memref<4x2x4xf32, #tpu.memory_space<vmem>>, %arg12: memref<4x256x128xf32, #tpu.memory_space<vmem>>, %arg13: memref<1x128xf32, #tpu.memory_space<vmem>>, %arg14: memref<1x2x128xf32, #tpu.memory_space<vmem>>) attributes {dimension_semantics = [#tpu.dimension_semantics<parallel>], iteration_bounds = array<i64: 2>, scalar_prefetch = 0 : i64, scratch_operands = 0 : i64, tpu.core_type = #tpu.core_type<tc>, window_params = [{transform_indices = @transform_0, window_bounds = array<i64: 1, 32, 96>}, {pipeline_mode = #tpu.pipeline_mode<synchronous>, transform_indices = @transform_1, window_bounds = array<i64: 4, 16, 32>}, {pipeline_mode = #tpu.pipeline_mode<synchronous>, transform_indices = @transform_2, window_bounds = array<i64: 4, 96, 512>}, {pipeline_mode = #tpu.pipeline_mode<synchronous>, transform_indices = @transform_3, window_bounds = array<i64: 1, 512>}, {pipeline_mode = #tpu.pipeline_mode<synchronous>, transform_indices = @transform_4, window_bounds = array<i64: 4, 8, 16>}, {pipeline_mode = #tpu.pipeline_mode<synchronous>, transform_indices = @transform_5, window_bounds = array<i64: 4, 512, 256>}, {pipeline_mode = #tpu.pipeline_mode<synchronous>, transform_indices = @transform_6, window_bounds = array<i64: 1, 256>}, {pipeline_mode = #tpu.pipeline_mode<synchronous>, transform_indices = @transform_7, window_bounds = array<i64: 4, 4, 8>}, {pipeline_mode = #tpu.pipeline_mode<synchronous>, transform_indices = @transform_8, window_bounds = array<i64: 4, 256, 256>}, {pipeline_mode = #tpu.pipeline_mode<synchronous>, transform_indices = @transform_9, window_bounds = array<i64: 1, 256>}, {pipeline_mode = #tpu.pipeline_mode<synchronous>, transform_indices = @transform_10, window_bounds = array<i64: 4, 2, 4>}, {pipeline_mode = #tpu.pipeline_mode<synchronous>, transform_indices = @transform_11, window_bounds = array<i64: 4, 256, 128>}, {pipeline_mode = #tpu.pipeline_mode<synchronous>, transform_indices = @transform_12, window_bounds = array<i64: 1, 128>}, {transform_indices = @transform_13, window_bounds = array<i64: 1, 2, 128>}]} {
    %c0 = arith.constant 0 : index
    %c0_0 = arith.constant 0 : index
    %c0_1 = arith.constant 0 : index
    %0 = vector.load %arg1[%c0, %c0_0, %c0_1] : memref<1x32x96xf32, #tpu.memory_space<vmem>>, vector<1x32x96xf32>
    %1 = vector.shape_cast %0 : vector<1x32x96xf32> to vector<32x96xf32>
    %c0_2 = arith.constant 0 : index
    %c0_3 = arith.constant 0 : index
    %c0_4 = arith.constant 0 : index
    %2 = vector.load %arg2[%c0_2, %c0_3, %c0_4] : memref<4x16x32xf32, #tpu.memory_space<vmem>>, vector<1x16x32xf32>
    %3 = vector.shape_cast %2 : vector<1x16x32xf32> to vector<16x32xf32>
    %cst = arith.constant dense<0.000000e+00> : vector<16x96xf32>
    %4 = tpu.matmul %3, %1, %cst {dimension_numbers = #tpu.dot_dimension_numbers<[1], [0], [0], [1], [0, 0, 1, 1], [], []>} : vector<16x32xf32>, vector<32x96xf32>, vector<16x96xf32> -> vector<16x96xf32>
    %c0_5 = arith.constant 0 : index
    %c0_6 = arith.constant 0 : index
    %c0_7 = arith.constant 0 : index
    %5 = vector.load %arg3[%c0_5, %c0_6, %c0_7] : memref<4x96x512xf32, #tpu.memory_space<vmem>>, vector<1x96x512xf32>
    %6 = vector.shape_cast %5 : vector<1x96x512xf32> to vector<96x512xf32>
    %cst_8 = arith.constant dense<0.000000e+00> : vector<16x512xf32>
    %7 = tpu.matmul %4, %6, %cst_8 {dimension_numbers = #tpu.dot_dimension_numbers<[1], [0], [0], [1], [0, 0, 1, 1], [], []>} : vector<16x96xf32>, vector<96x512xf32>, vector<16x512xf32> -> vector<16x512xf32>
    %c1 = arith.constant 1 : index
    %c0_9 = arith.constant 0 : index
    %c0_10 = arith.constant 0 : index
    %8 = vector.load %arg2[%c1, %c0_9, %c0_10] : memref<4x16x32xf32, #tpu.memory_space<vmem>>, vector<1x16x32xf32>
    %9 = vector.shape_cast %8 : vector<1x16x32xf32> to vector<16x32xf32>
    %cst_11 = arith.constant dense<0.000000e+00> : vector<16x96xf32>
    %10 = tpu.matmul %9, %1, %cst_11 {dimension_numbers = #tpu.dot_dimension_numbers<[1], [0], [0], [1], [0, 0, 1, 1], [], []>} : vector<16x32xf32>, vector<32x96xf32>, vector<16x96xf32> -> vector<16x96xf32>
    %c1_12 = arith.constant 1 : index
    %c0_13 = arith.constant 0 : index
    %c0_14 = arith.constant 0 : index
    %11 = vector.load %arg3[%c1_12, %c0_13, %c0_14] : memref<4x96x512xf32, #tpu.memory_space<vmem>>, vector<1x96x512xf32>
    %12 = vector.shape_cast %11 : vector<1x96x512xf32> to vector<96x512xf32>
    %cst_15 = arith.constant dense<0.000000e+00> : vector<16x512xf32>
    %13 = tpu.matmul %10, %12, %cst_15 {dimension_numbers = #tpu.dot_dimension_numbers<[1], [0], [0], [1], [0, 0, 1, 1], [], []>} : vector<16x96xf32>, vector<96x512xf32>, vector<16x512xf32> -> vector<16x512xf32>
    %14 = arith.addf %7, %13 : vector<16x512xf32>
    %c2 = arith.constant 2 : index
    %c0_16 = arith.constant 0 : index
    %c0_17 = arith.constant 0 : index
    %15 = vector.load %arg2[%c2, %c0_16, %c0_17] : memref<4x16x32xf32, #tpu.memory_space<vmem>>, vector<1x16x32xf32>
    %16 = vector.shape_cast %15 : vector<1x16x32xf32> to vector<16x32xf32>
    %cst_18 = arith.constant dense<0.000000e+00> : vector<16x96xf32>
    %17 = tpu.matmul %16, %1, %cst_18 {dimension_numbers = #tpu.dot_dimension_numbers<[1], [0], [0], [1], [0, 0, 1, 1], [], []>} : vector<16x32xf32>, vector<32x96xf32>, vector<16x96xf32> -> vector<16x96xf32>
    %c2_19 = arith.constant 2 : index
    %c0_20 = arith.constant 0 : index
    %c0_21 = arith.constant 0 : index
    %18 = vector.load %arg3[%c2_19, %c0_20, %c0_21] : memref<4x96x512xf32, #tpu.memory_space<vmem>>, vector<1x96x512xf32>
    %19 = vector.shape_cast %18 : vector<1x96x512xf32> to vector<96x512xf32>
    %cst_22 = arith.constant dense<0.000000e+00> : vector<16x512xf32>
    %20 = tpu.matmul %17, %19, %cst_22 {dimension_numbers = #tpu.dot_dimension_numbers<[1], [0], [0], [1], [0, 0, 1, 1], [], []>} : vector<16x96xf32>, vector<96x512xf32>, vector<16x512xf32> -> vector<16x512xf32>
    %21 = arith.addf %14, %20 : vector<16x512xf32>
    %c3 = arith.constant 3 : index
    %c0_23 = arith.constant 0 : index
    %c0_24 = arith.constant 0 : index
    %22 = vector.load %arg2[%c3, %c0_23, %c0_24] : memref<4x16x32xf32, #tpu.memory_space<vmem>>, vector<1x16x32xf32>
    %23 = vector.shape_cast %22 : vector<1x16x32xf32> to vector<16x32xf32>
    %cst_25 = arith.constant dense<0.000000e+00> : vector<16x96xf32>
    %24 = tpu.matmul %23, %1, %cst_25 {dimension_numbers = #tpu.dot_dimension_numbers<[1], [0], [0], [1], [0, 0, 1, 1], [], []>} : vector<16x32xf32>, vector<32x96xf32>, vector<16x96xf32> -> vector<16x96xf32>
    %c3_26 = arith.constant 3 : index
    %c0_27 = arith.constant 0 : index
    %c0_28 = arith.constant 0 : index
    %25 = vector.load %arg3[%c3_26, %c0_27, %c0_28] : memref<4x96x512xf32, #tpu.memory_space<vmem>>, vector<1x96x512xf32>
    %26 = vector.shape_cast %25 : vector<1x96x512xf32> to vector<96x512xf32>
    %cst_29 = arith.constant dense<0.000000e+00> : vector<16x512xf32>
    %27 = tpu.matmul %24, %26, %cst_29 {dimension_numbers = #tpu.dot_dimension_numbers<[1], [0], [0], [1], [0, 0, 1, 1], [], []>} : vector<16x96xf32>, vector<96x512xf32>, vector<16x512xf32> -> vector<16x512xf32>
    %28 = arith.addf %21, %27 : vector<16x512xf32>
    %c0_30 = arith.constant 0 : index
    %c0_31 = arith.constant 0 : index
    %29 = vector.load %arg4[%c0_30, %c0_31] : memref<1x512xf32, #tpu.memory_space<vmem>>, vector<1x512xf32>
    %30 = vector.broadcast %29 : vector<1x512xf32> to vector<16x512xf32>
    %31 = arith.addf %28, %30 : vector<16x512xf32>
    %cst_32 = arith.constant 0.000000e+00 : f32
    %32 = vector.broadcast %cst_32 : f32 to vector<16x512xf32>
    %33 = arith.maximumf %31, %32 : vector<16x512xf32>
    %c0_33 = arith.constant 0 : index
    %c0_34 = arith.constant 0 : index
    %c0_35 = arith.constant 0 : index
    %34 = vector.load %arg5[%c0_33, %c0_34, %c0_35] : memref<4x8x16xf32, #tpu.memory_space<vmem>>, vector<1x8x16xf32>
    %35 = vector.shape_cast %34 : vector<1x8x16xf32> to vector<8x16xf32>
    %cst_36 = arith.constant dense<0.000000e+00> : vector<8x512xf32>
    %36 = tpu.matmul %35, %33, %cst_36 {dimension_numbers = #tpu.dot_dimension_numbers<[1], [0], [0], [1], [0, 0, 1, 1], [], []>} : vector<8x16xf32>, vector<16x512xf32>, vector<8x512xf32> -> vector<8x512xf32>
    %c0_37 = arith.constant 0 : index
    %c0_38 = arith.constant 0 : index
    %c0_39 = arith.constant 0 : index
    %37 = vector.load %arg6[%c0_37, %c0_38, %c0_39] : memref<4x512x256xf32, #tpu.memory_space<vmem>>, vector<1x512x256xf32>
    %38 = vector.shape_cast %37 : vector<1x512x256xf32> to vector<512x256xf32>
    %cst_40 = arith.constant dense<0.000000e+00> : vector<8x256xf32>
    %39 = tpu.matmul %36, %38, %cst_40 {dimension_numbers = #tpu.dot_dimension_numbers<[1], [0], [0], [1], [0, 0, 1, 1], [], []>} : vector<8x512xf32>, vector<512x256xf32>, vector<8x256xf32> -> vector<8x256xf32>
    %c1_41 = arith.constant 1 : index
    %c0_42 = arith.constant 0 : index
    %c0_43 = arith.constant 0 : index
    %40 = vector.load %arg5[%c1_41, %c0_42, %c0_43] : memref<4x8x16xf32, #tpu.memory_space<vmem>>, vector<1x8x16xf32>
    %41 = vector.shape_cast %40 : vector<1x8x16xf32> to vector<8x16xf32>
    %cst_44 = arith.constant dense<0.000000e+00> : vector<8x512xf32>
    %42 = tpu.matmul %41, %33, %cst_44 {dimension_numbers = #tpu.dot_dimension_numbers<[1], [0], [0], [1], [0, 0, 1, 1], [], []>} : vector<8x16xf32>, vector<16x512xf32>, vector<8x512xf32> -> vector<8x512xf32>
    %c1_45 = arith.constant 1 : index
    %c0_46 = arith.constant 0 : index
    %c0_47 = arith.constant 0 : index
    %43 = vector.load %arg6[%c1_45, %c0_46, %c0_47] : memref<4x512x256xf32, #tpu.memory_space<vmem>>, vector<1x512x256xf32>
    %44 = vector.shape_cast %43 : vector<1x512x256xf32> to vector<512x256xf32>
    %cst_48 = arith.constant dense<0.000000e+00> : vector<8x256xf32>
    %45 = tpu.matmul %42, %44, %cst_48 {dimension_numbers = #tpu.dot_dimension_numbers<[1], [0], [0], [1], [0, 0, 1, 1], [], []>} : vector<8x512xf32>, vector<512x256xf32>, vector<8x256xf32> -> vector<8x256xf32>
    %46 = arith.addf %39, %45 : vector<8x256xf32>
    %c2_49 = arith.constant 2 : index
    %c0_50 = arith.constant 0 : index
    %c0_51 = arith.constant 0 : index
    %47 = vector.load %arg5[%c2_49, %c0_50, %c0_51] : memref<4x8x16xf32, #tpu.memory_space<vmem>>, vector<1x8x16xf32>
    %48 = vector.shape_cast %47 : vector<1x8x16xf32> to vector<8x16xf32>
    %cst_52 = arith.constant dense<0.000000e+00> : vector<8x512xf32>
    %49 = tpu.matmul %48, %33, %cst_52 {dimension_numbers = #tpu.dot_dimension_numbers<[1], [0], [0], [1], [0, 0, 1, 1], [], []>} : vector<8x16xf32>, vector<16x512xf32>, vector<8x512xf32> -> vector<8x512xf32>
    %c2_53 = arith.constant 2 : index
    %c0_54 = arith.constant 0 : index
    %c0_55 = arith.constant 0 : index
    %50 = vector.load %arg6[%c2_53, %c0_54, %c0_55] : memref<4x512x256xf32, #tpu.memory_space<vmem>>, vector<1x512x256xf32>
    %51 = vector.shape_cast %50 : vector<1x512x256xf32> to vector<512x256xf32>
    %cst_56 = arith.constant dense<0.000000e+00> : vector<8x256xf32>
    %52 = tpu.matmul %49, %51, %cst_56 {dimension_numbers = #tpu.dot_dimension_numbers<[1], [0], [0], [1], [0, 0, 1, 1], [], []>} : vector<8x512xf32>, vector<512x256xf32>, vector<8x256xf32> -> vector<8x256xf32>
    %53 = arith.addf %46, %52 : vector<8x256xf32>
    %c3_57 = arith.constant 3 : index
    %c0_58 = arith.constant 0 : index
    %c0_59 = arith.constant 0 : index
    %54 = vector.load %arg5[%c3_57, %c0_58, %c0_59] : memref<4x8x16xf32, #tpu.memory_space<vmem>>, vector<1x8x16xf32>
    %55 = vector.shape_cast %54 : vector<1x8x16xf32> to vector<8x16xf32>
    %cst_60 = arith.constant dense<0.000000e+00> : vector<8x512xf32>
    %56 = tpu.matmul %55, %33, %cst_60 {dimension_numbers = #tpu.dot_dimension_numbers<[1], [0], [0], [1], [0, 0, 1, 1], [], []>} : vector<8x16xf32>, vector<16x512xf32>, vector<8x512xf32> -> vector<8x512xf32>
    %c3_61 = arith.constant 3 : index
    %c0_62 = arith.constant 0 : index
    %c0_63 = arith.constant 0 : index
    %57 = vector.load %arg6[%c3_61, %c0_62, %c0_63] : memref<4x512x256xf32, #tpu.memory_space<vmem>>, vector<1x512x256xf32>
    %58 = vector.shape_cast %57 : vector<1x512x256xf32> to vector<512x256xf32>
    %cst_64 = arith.constant dense<0.000000e+00> : vector<8x256xf32>
    %59 = tpu.matmul %56, %58, %cst_64 {dimension_numbers = #tpu.dot_dimension_numbers<[1], [0], [0], [1], [0, 0, 1, 1], [], []>} : vector<8x512xf32>, vector<512x256xf32>, vector<8x256xf32> -> vector<8x256xf32>
    %60 = arith.addf %53, %59 : vector<8x256xf32>
    %c0_65 = arith.constant 0 : index
    %c0_66 = arith.constant 0 : index
    %61 = vector.load %arg7[%c0_65, %c0_66] : memref<1x256xf32, #tpu.memory_space<vmem>>, vector<1x256xf32>
    %62 = vector.broadcast %61 : vector<1x256xf32> to vector<8x256xf32>
    %63 = arith.addf %60, %62 : vector<8x256xf32>
    %cst_67 = arith.constant 0.000000e+00 : f32
    %64 = vector.broadcast %cst_67 : f32 to vector<8x256xf32>
    %65 = arith.maximumf %63, %64 : vector<8x256xf32>
    %c0_68 = arith.constant 0 : index
    %c0_69 = arith.constant 0 : index
    %c0_70 = arith.constant 0 : index
    %66 = vector.load %arg8[%c0_68, %c0_69, %c0_70] : memref<4x4x8xf32, #tpu.memory_space<vmem>>, vector<1x4x8xf32>
    %67 = vector.shape_cast %66 : vector<1x4x8xf32> to vector<4x8xf32>
    %cst_71 = arith.constant dense<0.000000e+00> : vector<4x256xf32>
    %68 = tpu.matmul %67, %65, %cst_71 {dimension_numbers = #tpu.dot_dimension_numbers<[1], [0], [0], [1], [0, 0, 1, 1], [], []>} : vector<4x8xf32>, vector<8x256xf32>, vector<4x256xf32> -> vector<4x256xf32>
    %c0_72 = arith.constant 0 : index
    %c0_73 = arith.constant 0 : index
    %c0_74 = arith.constant 0 : index
    %69 = vector.load %arg9[%c0_72, %c0_73, %c0_74] : memref<4x256x256xf32, #tpu.memory_space<vmem>>, vector<1x256x256xf32>
    %70 = vector.shape_cast %69 : vector<1x256x256xf32> to vector<256x256xf32>
    %cst_75 = arith.constant dense<0.000000e+00> : vector<4x256xf32>
    %71 = tpu.matmul %68, %70, %cst_75 {dimension_numbers = #tpu.dot_dimension_numbers<[1], [0], [0], [1], [0, 0, 1, 1], [], []>} : vector<4x256xf32>, vector<256x256xf32>, vector<4x256xf32> -> vector<4x256xf32>
    %c1_76 = arith.constant 1 : index
    %c0_77 = arith.constant 0 : index
    %c0_78 = arith.constant 0 : index
    %72 = vector.load %arg8[%c1_76, %c0_77, %c0_78] : memref<4x4x8xf32, #tpu.memory_space<vmem>>, vector<1x4x8xf32>
    %73 = vector.shape_cast %72 : vector<1x4x8xf32> to vector<4x8xf32>
    %cst_79 = arith.constant dense<0.000000e+00> : vector<4x256xf32>
    %74 = tpu.matmul %73, %65, %cst_79 {dimension_numbers = #tpu.dot_dimension_numbers<[1], [0], [0], [1], [0, 0, 1, 1], [], []>} : vector<4x8xf32>, vector<8x256xf32>, vector<4x256xf32> -> vector<4x256xf32>
    %c1_80 = arith.constant 1 : index
    %c0_81 = arith.constant 0 : index
    %c0_82 = arith.constant 0 : index
    %75 = vector.load %arg9[%c1_80, %c0_81, %c0_82] : memref<4x256x256xf32, #tpu.memory_space<vmem>>, vector<1x256x256xf32>
    %76 = vector.shape_cast %75 : vector<1x256x256xf32> to vector<256x256xf32>
    %cst_83 = arith.constant dense<0.000000e+00> : vector<4x256xf32>
    %77 = tpu.matmul %74, %76, %cst_83 {dimension_numbers = #tpu.dot_dimension_numbers<[1], [0], [0], [1], [0, 0, 1, 1], [], []>} : vector<4x256xf32>, vector<256x256xf32>, vector<4x256xf32> -> vector<4x256xf32>
    %78 = arith.addf %71, %77 : vector<4x256xf32>
    %c2_84 = arith.constant 2 : index
    %c0_85 = arith.constant 0 : index
    %c0_86 = arith.constant 0 : index
    %79 = vector.load %arg8[%c2_84, %c0_85, %c0_86] : memref<4x4x8xf32, #tpu.memory_space<vmem>>, vector<1x4x8xf32>
    %80 = vector.shape_cast %79 : vector<1x4x8xf32> to vector<4x8xf32>
    %cst_87 = arith.constant dense<0.000000e+00> : vector<4x256xf32>
    %81 = tpu.matmul %80, %65, %cst_87 {dimension_numbers = #tpu.dot_dimension_numbers<[1], [0], [0], [1], [0, 0, 1, 1], [], []>} : vector<4x8xf32>, vector<8x256xf32>, vector<4x256xf32> -> vector<4x256xf32>
    %c2_88 = arith.constant 2 : index
    %c0_89 = arith.constant 0 : index
    %c0_90 = arith.constant 0 : index
    %82 = vector.load %arg9[%c2_88, %c0_89, %c0_90] : memref<4x256x256xf32, #tpu.memory_space<vmem>>, vector<1x256x256xf32>
    %83 = vector.shape_cast %82 : vector<1x256x256xf32> to vector<256x256xf32>
    %cst_91 = arith.constant dense<0.000000e+00> : vector<4x256xf32>
    %84 = tpu.matmul %81, %83, %cst_91 {dimension_numbers = #tpu.dot_dimension_numbers<[1], [0], [0], [1], [0, 0, 1, 1], [], []>} : vector<4x256xf32>, vector<256x256xf32>, vector<4x256xf32> -> vector<4x256xf32>
    %85 = arith.addf %78, %84 : vector<4x256xf32>
    %c3_92 = arith.constant 3 : index
    %c0_93 = arith.constant 0 : index
    %c0_94 = arith.constant 0 : index
    %86 = vector.load %arg8[%c3_92, %c0_93, %c0_94] : memref<4x4x8xf32, #tpu.memory_space<vmem>>, vector<1x4x8xf32>
    %87 = vector.shape_cast %86 : vector<1x4x8xf32> to vector<4x8xf32>
    %cst_95 = arith.constant dense<0.000000e+00> : vector<4x256xf32>
    %88 = tpu.matmul %87, %65, %cst_95 {dimension_numbers = #tpu.dot_dimension_numbers<[1], [0], [0], [1], [0, 0, 1, 1], [], []>} : vector<4x8xf32>, vector<8x256xf32>, vector<4x256xf32> -> vector<4x256xf32>
    %c3_96 = arith.constant 3 : index
    %c0_97 = arith.constant 0 : index
    %c0_98 = arith.constant 0 : index
    %89 = vector.load %arg9[%c3_96, %c0_97, %c0_98] : memref<4x256x256xf32, #tpu.memory_space<vmem>>, vector<1x256x256xf32>
    %90 = vector.shape_cast %89 : vector<1x256x256xf32> to vector<256x256xf32>
    %cst_99 = arith.constant dense<0.000000e+00> : vector<4x256xf32>
    %91 = tpu.matmul %88, %90, %cst_99 {dimension_numbers = #tpu.dot_dimension_numbers<[1], [0], [0], [1], [0, 0, 1, 1], [], []>} : vector<4x256xf32>, vector<256x256xf32>, vector<4x256xf32> -> vector<4x256xf32>
    %92 = arith.addf %85, %91 : vector<4x256xf32>
    %c0_100 = arith.constant 0 : index
    %c0_101 = arith.constant 0 : index
    %93 = vector.load %arg10[%c0_100, %c0_101] : memref<1x256xf32, #tpu.memory_space<vmem>>, vector<1x256xf32>
    %94 = vector.broadcast %93 : vector<1x256xf32> to vector<4x256xf32>
    %95 = arith.addf %92, %94 : vector<4x256xf32>
    %cst_102 = arith.constant 0.000000e+00 : f32
    %96 = vector.broadcast %cst_102 : f32 to vector<4x256xf32>
    %97 = arith.maximumf %95, %96 : vector<4x256xf32>
    %c0_103 = arith.constant 0 : index
    %c0_104 = arith.constant 0 : index
    %c0_105 = arith.constant 0 : index
    %98 = vector.load %arg11[%c0_103, %c0_104, %c0_105] : memref<4x2x4xf32, #tpu.memory_space<vmem>>, vector<1x2x4xf32>
    %99 = vector.shape_cast %98 : vector<1x2x4xf32> to vector<2x4xf32>
    %cst_106 = arith.constant dense<0.000000e+00> : vector<2x256xf32>
    %100 = tpu.matmul %99, %97, %cst_106 {dimension_numbers = #tpu.dot_dimension_numbers<[1], [0], [0], [1], [0, 0, 1, 1], [], []>} : vector<2x4xf32>, vector<4x256xf32>, vector<2x256xf32> -> vector<2x256xf32>
    %c0_107 = arith.constant 0 : index
    %c0_108 = arith.constant 0 : index
    %c0_109 = arith.constant 0 : index
    %101 = vector.load %arg12[%c0_107, %c0_108, %c0_109] : memref<4x256x128xf32, #tpu.memory_space<vmem>>, vector<1x256x128xf32>
    %102 = vector.shape_cast %101 : vector<1x256x128xf32> to vector<256x128xf32>
    %cst_110 = arith.constant dense<0.000000e+00> : vector<2x128xf32>
    %103 = tpu.matmul %100, %102, %cst_110 {dimension_numbers = #tpu.dot_dimension_numbers<[1], [0], [0], [1], [0, 0, 1, 1], [], []>} : vector<2x256xf32>, vector<256x128xf32>, vector<2x128xf32> -> vector<2x128xf32>
    %c1_111 = arith.constant 1 : index
    %c0_112 = arith.constant 0 : index
    %c0_113 = arith.constant 0 : index
    %104 = vector.load %arg11[%c1_111, %c0_112, %c0_113] : memref<4x2x4xf32, #tpu.memory_space<vmem>>, vector<1x2x4xf32>
    %105 = vector.shape_cast %104 : vector<1x2x4xf32> to vector<2x4xf32>
    %cst_114 = arith.constant dense<0.000000e+00> : vector<2x256xf32>
    %106 = tpu.matmul %105, %97, %cst_114 {dimension_numbers = #tpu.dot_dimension_numbers<[1], [0], [0], [1], [0, 0, 1, 1], [], []>} : vector<2x4xf32>, vector<4x256xf32>, vector<2x256xf32> -> vector<2x256xf32>
    %c1_115 = arith.constant 1 : index
    %c0_116 = arith.constant 0 : index
    %c0_117 = arith.constant 0 : index
    %107 = vector.load %arg12[%c1_115, %c0_116, %c0_117] : memref<4x256x128xf32, #tpu.memory_space<vmem>>, vector<1x256x128xf32>
    %108 = vector.shape_cast %107 : vector<1x256x128xf32> to vector<256x128xf32>
    %cst_118 = arith.constant dense<0.000000e+00> : vector<2x128xf32>
    %109 = tpu.matmul %106, %108, %cst_118 {dimension_numbers = #tpu.dot_dimension_numbers<[1], [0], [0], [1], [0, 0, 1, 1], [], []>} : vector<2x256xf32>, vector<256x128xf32>, vector<2x128xf32> -> vector<2x128xf32>
    %110 = arith.addf %103, %109 : vector<2x128xf32>
    %c2_119 = arith.constant 2 : index
    %c0_120 = arith.constant 0 : index
    %c0_121 = arith.constant 0 : index
    %111 = vector.load %arg11[%c2_119, %c0_120, %c0_121] : memref<4x2x4xf32, #tpu.memory_space<vmem>>, vector<1x2x4xf32>
    %112 = vector.shape_cast %111 : vector<1x2x4xf32> to vector<2x4xf32>
    %cst_122 = arith.constant dense<0.000000e+00> : vector<2x256xf32>
    %113 = tpu.matmul %112, %97, %cst_122 {dimension_numbers = #tpu.dot_dimension_numbers<[1], [0], [0], [1], [0, 0, 1, 1], [], []>} : vector<2x4xf32>, vector<4x256xf32>, vector<2x256xf32> -> vector<2x256xf32>
    %c2_123 = arith.constant 2 : index
    %c0_124 = arith.constant 0 : index
    %c0_125 = arith.constant 0 : index
    %114 = vector.load %arg12[%c2_123, %c0_124, %c0_125] : memref<4x256x128xf32, #tpu.memory_space<vmem>>, vector<1x256x128xf32>
    %115 = vector.shape_cast %114 : vector<1x256x128xf32> to vector<256x128xf32>
    %cst_126 = arith.constant dense<0.000000e+00> : vector<2x128xf32>
    %116 = tpu.matmul %113, %115, %cst_126 {dimension_numbers = #tpu.dot_dimension_numbers<[1], [0], [0], [1], [0, 0, 1, 1], [], []>} : vector<2x256xf32>, vector<256x128xf32>, vector<2x128xf32> -> vector<2x128xf32>
    %117 = arith.addf %110, %116 : vector<2x128xf32>
    %c3_127 = arith.constant 3 : index
    %c0_128 = arith.constant 0 : index
    %c0_129 = arith.constant 0 : index
    %118 = vector.load %arg11[%c3_127, %c0_128, %c0_129] : memref<4x2x4xf32, #tpu.memory_space<vmem>>, vector<1x2x4xf32>
    %119 = vector.shape_cast %118 : vector<1x2x4xf32> to vector<2x4xf32>
    %cst_130 = arith.constant dense<0.000000e+00> : vector<2x256xf32>
    %120 = tpu.matmul %119, %97, %cst_130 {dimension_numbers = #tpu.dot_dimension_numbers<[1], [0], [0], [1], [0, 0, 1, 1], [], []>} : vector<2x4xf32>, vector<4x256xf32>, vector<2x256xf32> -> vector<2x256xf32>
    %c3_131 = arith.constant 3 : index
    %c0_132 = arith.constant 0 : index
    %c0_133 = arith.constant 0 : index
    %121 = vector.load %arg12[%c3_131, %c0_132, %c0_133] : memref<4x256x128xf32, #tpu.memory_space<vmem>>, vector<1x256x128xf32>
    %122 = vector.shape_cast %121 : vector<1x256x128xf32> to vector<256x128xf32>
    %cst_134 = arith.constant dense<0.000000e+00> : vector<2x128xf32>
    %123 = tpu.matmul %120, %122, %cst_134 {dimension_numbers = #tpu.dot_dimension_numbers<[1], [0], [0], [1], [0, 0, 1, 1], [], []>} : vector<2x256xf32>, vector<256x128xf32>, vector<2x128xf32> -> vector<2x128xf32>
    %124 = arith.addf %117, %123 : vector<2x128xf32>
    %c0_135 = arith.constant 0 : index
    %c0_136 = arith.constant 0 : index
    %125 = vector.load %arg13[%c0_135, %c0_136] : memref<1x128xf32, #tpu.memory_space<vmem>>, vector<1x128xf32>
    %126 = vector.broadcast %125 : vector<1x128xf32> to vector<2x128xf32>
    %127 = arith.addf %124, %126 : vector<2x128xf32>
    %c0_137 = arith.constant 0 : index
    %c0_138 = arith.constant 0 : index
    %c0_139 = arith.constant 0 : index
    %128 = vector.load %arg14[%c0_137, %c0_138, %c0_139] : memref<1x2x128xf32, #tpu.memory_space<vmem>>, vector<1x2x128xf32>
    %129 = vector.shape_cast %128 : vector<1x2x128xf32> to vector<2x128xf32>
    %130 = vector.shape_cast %127 : vector<2x128xf32> to vector<1x2x128xf32>
    tpu.vector_store %arg14[%c0_137, %c0_138, %c0_139], %130 {strides = array<i32>} : memref<1x2x128xf32, #tpu.memory_space<vmem>>, vector<1x2x128xf32>,
    return
  }
  func.func @transform_0(%arg0: i32) -> (i32, i32, i32) {
    %c0_i32 = arith.constant 0 : i32
    %c0_i32_0 = arith.constant 0 : i32
    %c0_i32_1 = arith.constant 0 : i32
    return %arg0, %c0_i32, %c0_i32_0 : i32, i32, i32
  }
  func.func @transform_1(%arg0: i32) -> (i32, i32, i32) {
    %c0_i32 = arith.constant 0 : i32
    %c0_i32_0 = arith.constant 0 : i32
    %c0_i32_1 = arith.constant 0 : i32
    %c0_i32_2 = arith.constant 0 : i32
    return %c0_i32, %c0_i32_0, %c0_i32_1 : i32, i32, i32
  }
  func.func @transform_2(%arg0: i32) -> (i32, i32, i32) {
    %c0_i32 = arith.constant 0 : i32
    %c0_i32_0 = arith.constant 0 : i32
    %c0_i32_1 = arith.constant 0 : i32
    %c0_i32_2 = arith.constant 0 : i32
    return %c0_i32, %c0_i32_0, %c0_i32_1 : i32, i32, i32
  }
  func.func @transform_3(%arg0: i32) -> (i32, i32) {
    %c0_i32 = arith.constant 0 : i32
    %c0_i32_0 = arith.constant 0 : i32
    %c0_i32_1 = arith.constant 0 : i32
    return %c0_i32, %c0_i32_0 : i32, i32
  }
  func.func @transform_4(%arg0: i32) -> (i32, i32, i32) {
    %c0_i32 = arith.constant 0 : i32
    %c0_i32_0 = arith.constant 0 : i32
    %c0_i32_1 = arith.constant 0 : i32
    %c0_i32_2 = arith.constant 0 : i32
    return %c0_i32, %c0_i32_0, %c0_i32_1 : i32, i32, i32
  }
  func.func @transform_5(%arg0: i32) -> (i32, i32, i32) {
    %c0_i32 = arith.constant 0 : i32
    %c0_i32_0 = arith.constant 0 : i32
    %c0_i32_1 = arith.constant 0 : i32
    %c0_i32_2 = arith.constant 0 : i32
    return %c0_i32, %c0_i32_0, %c0_i32_1 : i32, i32, i32
  }
  func.func @transform_6(%arg0: i32) -> (i32, i32) {
    %c0_i32 = arith.constant 0 : i32
    %c0_i32_0 = arith.constant 0 : i32
    %c0_i32_1 = arith.constant 0 : i32
    return %c0_i32, %c0_i32_0 : i32, i32
  }
  func.func @transform_7(%arg0: i32) -> (i32, i32, i32) {
    %c0_i32 = arith.constant 0 : i32
    %c0_i32_0 = arith.constant 0 : i32
    %c0_i32_1 = arith.constant 0 : i32
    %c0_i32_2 = arith.constant 0 : i32
    return %c0_i32, %c0_i32_0, %c0_i32_1 : i32, i32, i32
  }
  func.func @transform_8(%arg0: i32) -> (i32, i32, i32) {
    %c0_i32 = arith.constant 0 : i32
    %c0_i32_0 = arith.constant 0 : i32
    %c0_i32_1 = arith.constant 0 : i32
    %c0_i32_2 = arith.constant 0 : i32
    return %c0_i32, %c0_i32_0, %c0_i32_1 : i32, i32, i32
  }
  func.func @transform_9(%arg0: i32) -> (i32, i32) {
    %c0_i32 = arith.constant 0 : i32
    %c0_i32_0 = arith.constant 0 : i32
    %c0_i32_1 = arith.constant 0 : i32
    return %c0_i32, %c0_i32_0 : i32, i32
  }
  func.func @transform_10(%arg0: i32) -> (i32, i32, i32) {
    %c0_i32 = arith.constant 0 : i32
    %c0_i32_0 = arith.constant 0 : i32
    %c0_i32_1 = arith.constant 0 : i32
    %c0_i32_2 = arith.constant 0 : i32
    return %c0_i32, %c0_i32_0, %c0_i32_1 : i32, i32, i32
  }
  func.func @transform_11(%arg0: i32) -> (i32, i32, i32) {
    %c0_i32 = arith.constant 0 : i32
    %c0_i32_0 = arith.constant 0 : i32
    %c0_i32_1 = arith.constant 0 : i32
    %c0_i32_2 = arith.constant 0 : i32
    return %c0_i32, %c0_i32_0, %c0_i32_1 : i32, i32, i32
  }
  func.func @transform_12(%arg0: i32) -> (i32, i32) {
    %c0_i32 = arith.constant 0 : i32
    %c0_i32_0 = arith.constant 0 : i32
    %c0_i32_1 = arith.constant 0 : i32
    return %c0_i32, %c0_i32_0 : i32, i32
  }
  func.func @transform_13(%arg0: i32) -> (i32, i32, i32) {
    %c0_i32 = arith.constant 0 : i32
    %c0_i32_0 = arith.constant 0 : i32
    %c0_i32_1 = arith.constant 0 : i32
    return %arg0, %c0_i32, %c0_i32_0 : i32, i32, i32
  }
}

</mosaic_0001>

<llo_original>
// kernel: tile.23
$region0: #{tile.23}
  #allocation0 [shape = 's32[1]{0}', space=sflag, size = 0x4, scoped, tag = 'scoped memory for tile.23']
  %s0 = inlined_call_operand.vmem [shape: f32[32], index: 0, kind: input, shape index: {}]
  %s1 = inlined_call_operand.vmem [shape: f32[16,32], index: 1, kind: output, shape index: {}]
  // Predicated region
  $region2: #{tile.23} parent=0 // pred_check
    _
  $region3: #{tile.23} parent=0 // pred_check_branch
    %3 = sbr.rel (0) target = $region5
  $region4: #{tile.23} parent=0 // pred_region
    _
  $region5: #{tile.23} parent=0 // pred_fallthru
    _
  %v4 = vld [vmem:[%s0] ss:$0 sm:$0xff]
  %5 = vst [vmem:[%s1] sm:$0xff] %v4
  %s6 = scalar_lea.vmem %s1, 8
  %7 = vst [vmem:[%s6] sm:$0xff] %v4

// kernel: tile.24
$region0: #{tile.24}
  %s0 = inlined_call_operand.vmem [shape: f32[16,32], index: 0, kind: input, shape index: {}]
  %s1 = inlined_call_operand.vmem [shape: f32[1,512], index: 1, kind: output, shape index: {}]
  $region1: #{tile.24} parent=0
    #allocation0 [shape = 'u8[16384]{0}', space=vmem, size = 0x4000, scoped, tag = 'scoped mem for output reshape']
    %v2 = vld [vmem:[%s0] ss:$4 sm:$0xf]
    %vm3 = vcmask 261120
    %4 = vst.msk [vmem:[#allocation0] ss:$8 sm:$0xf] %vm3, %v2
    %s5 = scalar_lea.vmem %s0, 3
    %v6 = vld [vmem:[%s5] ss:$4 sm:$0xf]
    %7 = vrot.lane.b32.xlu0 %v6, 96
    %v8 = vpop.permute.xlu0 %7
    %vm9 = vcmask 1048320
    %10 = vst.msk [vmem:[#allocation0] ss:$8 sm:$0xf] %vm9, %v8
    %s11 = scalar_lea.vmem %s0, 2
    %v12 = vld [vmem:[%s11] ss:$4 sm:$0xf]
    %13 = vrot.lane.b32.xlu0 %v12, 64
    %v14 = vpop.permute.xlu0 %13
    %vm15 = vcmask 785920
    %16 = vst.msk [vmem:[#allocation0] ss:$8 sm:$0xf] %vm15, %v14
    %s17 = scalar_lea.vmem %s0, 1
    %v18 = vld [vmem:[%s17] ss:$4 sm:$0xf]
    %19 = vrot.lane.b32.xlu0 %v18, 32
    %v20 = vpop.permute.xlu0 %19
    %vm21 = vcmask 523520
    %22 = vst.msk [vmem:[#allocation0] ss:$8 sm:$0xf] %vm21, %v20
    %s24 = sshll.u32 1, 1
    %s25 = ssub.s32 %s24, 1
    %v27 = vld [vmem:[#allocation0] sm:%s25]
    %s28 = sshll.u32 1, 1
    %s29 = ssub.s32 %s28, 1
    %30 = vst [vmem:[%s1] sm:%s29] %v27
    %s31 = scalar_lea.vmem [#allocation0], 8
    %v32 = vld [vmem:[%s31] sm:%s25]
    %s33 = sshll.u32 1, 1
    %s34 = ssub.s32 %s33, 1
    %s35 = scalar_lea.vmem %s1, 1
    %36 = vst [vmem:[%s35] sm:%s34] %v32
    %s37 = scalar_lea.vmem [#allocation0], 16
    %v38 = vld [vmem:[%s37] sm:%s25]
    %s39 = sshll.u32 1, 1
    %s40 = ssub.s32 %s39, 1
    %s41 = smul.addr 1, 2
    %s42 = scalar_lea.vmem %s1, %s41
    %43 = vst [vmem:[%s42] sm:%s40] %v38
    %s44 = scalar_lea.vmem [#allocation0], 24
    %v45 = vld [vmem:[%s44] sm:%s25]
    %s46 = sshll.u32 1, 1
    %s47 = ssub.s32 %s46, 1
    %s48 = smul.addr 1, 3
    %s49 = scalar_lea.vmem %s1, %s48
    %50 = vst [vmem:[%s49] sm:%s47] %v45

// kernel: tile.28
$region0: #{tile.28}
  #allocation0 [shape = 's32[1]{0}', space=sflag, size = 0x4, scoped, tag = 'scoped memory for tile.28']
  %s0 = inlined_call_operand.vmem [shape: f32[32], index: 0, kind: input, shape index: {}]
  %s1 = inlined_call_operand.vmem [shape: f32[8,32], index: 1, kind: output, shape index: {}]
  // Predicated region
  $region2: #{tile.28} parent=0 // pred_check
    _
  $region3: #{tile.28} parent=0 // pred_check_branch
    %3 = sbr.rel (0) target = $region5
  $region4: #{tile.28} parent=0 // pred_region
    _
  $region5: #{tile.28} parent=0 // pred_fallthru
    _
  %v4 = vld [vmem:[%s0] ss:$0 sm:$0xff]
  %5 = vst [vmem:[%s1] sm:$0xff] %v4

// kernel: tile.29
$region0: #{tile.29}
  %s0 = inlined_call_operand.vmem [shape: f32[8,32], index: 0, kind: input, shape index: {}]
  %s1 = inlined_call_operand.vmem [shape: f32[1,256], index: 1, kind: output, shape index: {}]
  $region1: #{tile.29} parent=0
    #allocation0 [shape = 'u8[8192]{0}', space=vmem, size = 0x2000, scoped, tag = 'scoped mem for output reshape']
    %s2 = smov 3
    %v3 = vld [vmem:[%s0] ss:$4 sm:%s2]
    %vm4 = vcmask 261120
    %5 = vst.msk [vmem:[#allocation0] ss:$8 sm:$0x3] %vm4, %v3
    %s6 = scalar_lea.vmem %s0, 3
    %s7 = smov 3
    %v8 = vld [vmem:[%s6] ss:$4 sm:%s7]
    %9 = vrot.lane.b32.xlu0 %v8, 96
    %v10 = vpop.permute.xlu0 %9
    %vm11 = vcmask 1048320
    %12 = vst.msk [vmem:[#allocation0] ss:$8 sm:$0x3] %vm11, %v10
    %s13 = scalar_lea.vmem %s0, 2
    %s14 = smov 3
    %v15 = vld [vmem:[%s13] ss:$4 sm:%s14]
    %16 = vrot.lane.b32.xlu0 %v15, 64
    %v17 = vpop.permute.xlu0 %16
    %vm18 = vcmask 785920
    %19 = vst.msk [vmem:[#allocation0] ss:$8 sm:$0x3] %vm18, %v17
    %s20 = scalar_lea.vmem %s0, 1
    %s21 = smov 3
    %v22 = vld [vmem:[%s20] ss:$4 sm:%s21]
    %23 = vrot.lane.b32.xlu0 %v22, 32
    %v24 = vpop.permute.xlu0 %23
    %vm25 = vcmask 523520
    %26 = vst.msk [vmem:[#allocation0] ss:$8 sm:$0x3] %vm25, %v24
    %s28 = sshll.u32 1, 1
    %s29 = ssub.s32 %s28, 1
    %v31 = vld [vmem:[#allocation0] sm:%s29]
    %s32 = sshll.u32 1, 1
    %s33 = ssub.s32 %s32, 1
    %34 = vst [vmem:[%s1] sm:%s33] %v31
    %s35 = scalar_lea.vmem [#allocation0], 8
    %v36 = vld [vmem:[%s35] sm:%s29]
    %s37 = sshll.u32 1, 1
    %s38 = ssub.s32 %s37, 1
    %s39 = scalar_lea.vmem %s1, 1
    %40 = vst [vmem:[%s39] sm:%s38] %v36

// kernel: tile.33
$region0: #{tile.33}
  #allocation0 [shape = 's32[1]{0}', space=sflag, size = 0x4, scoped, tag = 'scoped memory for tile.33']
  %s0 = inlined_call_operand.vmem [shape: f32[64], index: 0, kind: input, shape index: {}]
  %s1 = inlined_call_operand.vmem [shape: f32[4,64], index: 1, kind: output, shape index: {}]
  // Predicated region
  $region2: #{tile.33} parent=0 // pred_check
    _
  $region3: #{tile.33} parent=0 // pred_check_branch
    %3 = sbr.rel (0) target = $region5
  $region4: #{tile.33} parent=0 // pred_region
    _
  $region5: #{tile.33} parent=0 // pred_fallthru
    _
  %v4 = vld [vmem:[%s0] ss:$0 sm:$0xff]
  %5 = vst [vmem:[%s1] sm:$0xf] %v4

// kernel: tile.34
$region0: #{tile.34}
  %s0 = inlined_call_operand.vmem [shape: f32[4,64], index: 0, kind: input, shape index: {}]
  %s1 = inlined_call_operand.vmem [shape: f32[1,256], index: 1, kind: output, shape index: {}]
  $region1: #{tile.34} parent=0
    #allocation0 [shape = 'u8[8192]{0}', space=vmem, size = 0x2000, scoped, tag = 'scoped mem for output reshape']
    #allocation1 [shape = 'u8[4096]{0}', space=vmem, size = 0x1000, scoped, tag = 'scoped mem for input reshape']
    %s3 = sshll.u32 1, 4
    %s4 = ssub.s32 %s3, 1
    %v5 = vld [vmem:[%s0] sm:%s4]
    %6 = vst [vmem:[#allocation1] sm:%s4] %v5
    %s7 = smov 3
    %v8 = vld [vmem:[#allocation1] ss:$2 sm:%s7]
    %vm9 = vcmask 523264
    %10 = vst.msk [vmem:[#allocation0] ss:$8 sm:$0x3] %vm9, %v8
    %s11 = scalar_lea.vmem [#allocation1], 1
    %s12 = smov 3
    %v13 = vld [vmem:[%s11] ss:$2 sm:%s12]
    %14 = vrot.lane.b32.xlu0 %v13, 64
    %v15 = vpop.permute.xlu0 %14
    %vm16 = vcmask 1048064
    %17 = vst.msk [vmem:[#allocation0] ss:$8 sm:$0x3] %vm16, %v15
    %s19 = sshll.u32 1, 1
    %s20 = ssub.s32 %s19, 1
    %v22 = vld [vmem:[#allocation0] sm:%s20]
    %s23 = sshll.u32 1, 1
    %s24 = ssub.s32 %s23, 1
    %25 = vst [vmem:[%s1] sm:%s24] %v22
    %s26 = scalar_lea.vmem [#allocation0], 8
    %v27 = vld [vmem:[%s26] sm:%s20]
    %s28 = sshll.u32 1, 1
    %s29 = ssub.s32 %s28, 1
    %s30 = scalar_lea.vmem %s1, 1
    %31 = vst [vmem:[%s30] sm:%s29] %v27

// kernel: tile.38
$region0: #{tile.38}
  #allocation0 [shape = 's32[1]{0}', space=sflag, size = 0x4, scoped, tag = 'scoped memory for tile.38']
  %s0 = inlined_call_operand.vmem [shape: f32[64], index: 0, kind: input, shape index: {}]
  %s1 = inlined_call_operand.vmem [shape: f32[2,64], index: 1, kind: output, shape index: {}]
  // Predicated region
  $region2: #{tile.38} parent=0 // pred_check
    _
  $region3: #{tile.38} parent=0 // pred_check_branch
    %3 = sbr.rel (0) target = $region5
  $region4: #{tile.38} parent=0 // pred_region
    _
  $region5: #{tile.38} parent=0 // pred_fallthru
    _
  %v4 = vld [vmem:[%s0] ss:$0 sm:$0xff]
  %5 = vst [vmem:[%s1] sm:$0x3] %v4

// kernel: tile.39
$region0: #{tile.39}
  %s0 = inlined_call_operand.vmem [shape: f32[2,64], index: 0, kind: input, shape index: {}]
  %s1 = inlined_call_operand.vmem [shape: f32[1,128], index: 1, kind: output, shape index: {}]
  $region1: #{tile.39} parent=0
    #allocation0 [shape = 'u8[4096]{0}', space=vmem, size = 0x1000, scoped, tag = 'scoped mem for output reshape']
    #allocation1 [shape = 'u8[4096]{0}', space=vmem, size = 0x1000, scoped, tag = 'scoped mem for input reshape']
    %s3 = sshll.u32 1, 2
    %s4 = ssub.s32 %s3, 1
    %v5 = vld [vmem:[%s0] sm:%s4]
    %6 = vst [vmem:[#allocation1] sm:%s4] %v5
    %v7 = vld [vmem:[#allocation1] sm:$0x1]
    %vm8 = vcmask 523264
    %9 = vst.msk [vmem:[#allocation0] sm:$0x1] %vm8, %v7
    %s10 = scalar_lea.vmem [#allocation1], 1
    %v11 = vld [vmem:[%s10] sm:$0x1]
    %12 = vrot.lane.b32.xlu0 %v11, 64
    %v13 = vpop.permute.xlu0 %12
    %vm14 = vcmask 1048064
    %15 = vst.msk [vmem:[#allocation0] sm:$0x1] %vm14, %v13
    %s17 = sshll.u32 1, 1
    %s18 = ssub.s32 %s17, 1
    %v20 = vld [vmem:[#allocation0] sm:%s18]
    %s21 = sshll.u32 1, 1
    %s22 = ssub.s32 %s21, 1
    %23 = vst [vmem:[%s1] sm:%s22] %v20

// kernel: conv_pre_encoder.1
$region0: #{conv_pre_encoder.1}
  #allocation0 [shape = 'u32[]', space=smem, size = 0x4, offset = 0x4, fixed_abs, tag = 'smem constant byte address 0x4 - core index']
  #allocation1 [shape = 'u32[144,128]{1,0:T(1,128)}', space=vmem, size = 0x12000, scoped, tag = 'internal scratch']
  %s0 = inlined_call_operand.vmem [shape: f32[2,32,96], index: 0, kind: input, shape index: {}]
  %s1 = inlined_call_operand.vmem [shape: f32[4,16,32], index: 1, kind: input, shape index: {}]
  %s2 = inlined_call_operand.vmem [shape: f32[4,96,512], index: 2, kind: input, shape index: {}]
  %s3 = inlined_call_operand.vmem [shape: f32[1,512], index: 3, kind: input, shape index: {}]
  %s4 = inlined_call_operand.vmem [shape: f32[4,8,16], index: 4, kind: input, shape index: {}]
  %s5 = inlined_call_operand.vmem [shape: f32[4,512,256], index: 5, kind: input, shape index: {}]
  %s6 = inlined_call_operand.vmem [shape: f32[1,256], index: 6, kind: input, shape index: {}]
  %s7 = inlined_call_operand.vmem [shape: f32[4,4,8], index: 7, kind: input, shape index: {}]
  %s8 = inlined_call_operand.vmem [shape: f32[4,256,256], index: 8, kind: input, shape index: {}]
  %s9 = inlined_call_operand.vmem [shape: f32[1,256], index: 9, kind: input, shape index: {}]
  %s10 = inlined_call_operand.vmem [shape: f32[4,2,4], index: 10, kind: input, shape index: {}]
  %s11 = inlined_call_operand.vmem [shape: f32[4,256,128], index: 11, kind: input, shape index: {}]
  %s12 = inlined_call_operand.vmem [shape: f32[1,128], index: 12, kind: input, shape index: {}]
  %s13 = inlined_call_operand.vmem [shape: f32[2,2,128], index: 13, kind: output, shape index: {}]
  %s14 = sld [smem:[#allocation0]]
  $region85: #{conv_pre_encoder.1} parent=0
    _
  %s16 = ssub.s32 1, %s14
  %s17 = scalar_select 0, %s16, %s14
  loop: start=0, step=1, limit=4
  $region2: #{conv_pre_encoder.1} parent=0 // loop_pre_header
    _
  $region3: #{conv_pre_encoder.1} parent=0 // loop_header
    %s19 = sphi 0, %s23
    %p20 = scmp.ge.s32.totalorder %s19, 4
    %s29 = sphi 0, %s31
    %s32 = sphi 0, %s29
    %s33 = sphi 0, %s32
    %s49 = sphi 0, %s33
    %s53 = sphi 0, %s53
    %s55 = sphi 0, %s53
    %s56 = sphi 0, %s55
    %s70 = sphi 0, %s56
    %s74 = sphi 0, %s74
    %s76 = sphi 0, %s74
    %s77 = sphi 0, %s76
    %s91 = sphi 0, %s77
    %s95 = sphi 0, %s95
    %s97 = sphi 0, %s95
    %s98 = sphi 0, %s97
    %s112 = sphi 0, %s98
    %s116 = sphi 0, %s116
    %s118 = sphi 0, %s116
    %s119 = sphi 0, %s118
    %s133 = sphi 0, %s119
    %s137 = sphi 0, %s137
    %s139 = sphi 0, %s137
    %s140 = sphi 0, %s139
    %s154 = sphi 0, %s140
    %s158 = sphi 0, %s158
    %s160 = sphi 0, %s158
    %s161 = sphi 0, %s160
    %s175 = sphi 0, %s161
    %s179 = sphi 0, %s179
    %s181 = sphi 0, %s179
    %s182 = sphi 0, %s181
    %s196 = sphi 0, %s182
    %s200 = sphi 0, %s200
    %s202 = sphi 0, %s200
    %s203 = sphi 0, %s202
    %s217 = sphi 0, %s203
    %s221 = sphi 0, %s221
    %s223 = sphi 0, %s221
    %s224 = sphi 0, %s223
    %s238 = sphi 0, %s224
    %s242 = sphi 0, %s242
    %s244 = sphi 0, %s242
    %s245 = sphi 0, %s244
    %s259 = sphi 0, %s245
    %s263 = sphi 0, %s263
    %s265 = sphi 0, %s263
    %s266 = sphi 0, %s265
    %s280 = sphi 0, %s266
    %s284 = sphi 0, %s284
    %s286 = sphi 0, %s284
    %s287 = sphi 0, %s286
    %s301 = sphi 0, %s287
    %s307 = sphi 0, %s309
    %s310 = sphi 0, %s307
    %s311 = sphi 0, %s310
    %s327 = sphi 0, %s311
  $region4: #{conv_pre_encoder.1} parent=0 // loop_header_branch
    %22 = sbr.rel (%p20) target = $region8
  $region5: #{conv_pre_encoder.1} parent=0 // loop_body
    %s24 = ssub.s32 %s19, 1
    %s25 = ssub.s32 %s19, 2
    %s26 = sadd.s32 %s19, 1
    %s27 = ssub.s32 %s19, %s26
    %p28 = scmp.eq.s32.totalorder %s27, 0
    %s30 = sadd.s32 %s29, 1
    %s31 = scalar_select %p28, %s29, %s30
    %p34 = pneg %p28
    %p35 = scmp.eq.s32.totalorder %s19, 1
    %p36 = por %p34, %p35
    %p37 = scmp.ne.s32.totalorder %s29, %s32
    %p38 = scmp.eq.s32.totalorder %s19, 0
    %p39 = por %p37, %p38
    %p40 = scmp.ne.s32.totalorder %s29, %s32
    %p41 = scmp.eq.s32.totalorder %s24, 1
    %p42 = por %p40, %p41
    %p43 = scmp.ne.s32.totalorder %s32, %s33
    %p44 = scmp.eq.s32.totalorder %s24, 0
    %p45 = por %p43, %p44
    %p46 = scmp.ne.s32.totalorder %s32, %s33
    %p47 = scmp.eq.s32.totalorder %s25, 1
    %p48 = por %p46, %p47
    %p50 = scmp.ne.s32.totalorder %s33, %s49
    %p51 = scmp.eq.s32.totalorder %s25, 0
    %p52 = por %p50, %p51
    %s54 = sadd.s32 %s53, 1
    %p57 = scmp.eq.s32.totalorder %s19, 1
    %p58 = scmp.ne.s32.totalorder %s53, %s55
    %p59 = scmp.eq.s32.totalorder %s19, 0
    %p60 = por %p58, %p59
    %p61 = scmp.ne.s32.totalorder %s53, %s55
    %p62 = scmp.eq.s32.totalorder %s24, 1
    %p63 = por %p61, %p62
    %p64 = scmp.ne.s32.totalorder %s55, %s56
    %p65 = scmp.eq.s32.totalorder %s24, 0
    %p66 = por %p64, %p65
    %p67 = scmp.ne.s32.totalorder %s55, %s56
    %p68 = scmp.eq.s32.totalorder %s25, 1
    %p69 = por %p67, %p68
    %p71 = scmp.ne.s32.totalorder %s56, %s70
    %p72 = scmp.eq.s32.totalorder %s25, 0
    %p73 = por %p71, %p72
    %s75 = sadd.s32 %s74, 1
    %p78 = scmp.eq.s32.totalorder %s19, 1
    %p79 = scmp.ne.s32.totalorder %s74, %s76
    %p80 = scmp.eq.s32.totalorder %s19, 0
    %p81 = por %p79, %p80
    %p82 = scmp.ne.s32.totalorder %s74, %s76
    %p83 = scmp.eq.s32.totalorder %s24, 1
    %p84 = por %p82, %p83
    %p85 = scmp.ne.s32.totalorder %s76, %s77
    %p86 = scmp.eq.s32.totalorder %s24, 0
    %p87 = por %p85, %p86
    %p88 = scmp.ne.s32.totalorder %s76, %s77
    %p89 = scmp.eq.s32.totalorder %s25, 1
    %p90 = por %p88, %p89
    %p92 = scmp.ne.s32.totalorder %s77, %s91
    %p93 = scmp.eq.s32.totalorder %s25, 0
    %p94 = por %p92, %p93
    %s96 = sadd.s32 %s95, 1
    %p99 = scmp.eq.s32.totalorder %s19, 1
    %p100 = scmp.ne.s32.totalorder %s95, %s97
    %p101 = scmp.eq.s32.totalorder %s19, 0
    %p102 = por %p100, %p101
    %p103 = scmp.ne.s32.totalorder %s95, %s97
    %p104 = scmp.eq.s32.totalorder %s24, 1
    %p105 = por %p103, %p104
    %p106 = scmp.ne.s32.totalorder %s97, %s98
    %p107 = scmp.eq.s32.totalorder %s24, 0
    %p108 = por %p106, %p107
    %p109 = scmp.ne.s32.totalorder %s97, %s98
    %p110 = scmp.eq.s32.totalorder %s25, 1
    %p111 = por %p109, %p110
    %p113 = scmp.ne.s32.totalorder %s98, %s112
    %p114 = scmp.eq.s32.totalorder %s25, 0
    %p115 = por %p113, %p114
    %s117 = sadd.s32 %s116, 1
    %p120 = scmp.eq.s32.totalorder %s19, 1
    %p121 = scmp.ne.s32.totalorder %s116, %s118
    %p122 = scmp.eq.s32.totalorder %s19, 0
    %p123 = por %p121, %p122
    %p124 = scmp.ne.s32.totalorder %s116, %s118
    %p125 = scmp.eq.s32.totalorder %s24, 1
    %p126 = por %p124, %p125
    %p127 = scmp.ne.s32.totalorder %s118, %s119
    %p128 = scmp.eq.s32.totalorder %s24, 0
    %p129 = por %p127, %p128
    %p130 = scmp.ne.s32.totalorder %s118, %s119
    %p131 = scmp.eq.s32.totalorder %s25, 1
    %p132 = por %p130, %p131
    %p134 = scmp.ne.s32.totalorder %s119, %s133
    %p135 = scmp.eq.s32.totalorder %s25, 0
    %p136 = por %p134, %p135
    %s138 = sadd.s32 %s137, 1
    %p141 = scmp.eq.s32.totalorder %s19, 1
    %p142 = scmp.ne.s32.totalorder %s137, %s139
    %p143 = scmp.eq.s32.totalorder %s19, 0
    %p144 = por %p142, %p143
    %p145 = scmp.ne.s32.totalorder %s137, %s139
    %p146 = scmp.eq.s32.totalorder %s24, 1
    %p147 = por %p145, %p146
    %p148 = scmp.ne.s32.totalorder %s139, %s140
    %p149 = scmp.eq.s32.totalorder %s24, 0
    %p150 = por %p148, %p149
    %p151 = scmp.ne.s32.totalorder %s139, %s140
    %p152 = scmp.eq.s32.totalorder %s25, 1
    %p153 = por %p151, %p152
    %p155 = scmp.ne.s32.totalorder %s140, %s154
    %p156 = scmp.eq.s32.totalorder %s25, 0
    %p157 = por %p155, %p156
    %s159 = sadd.s32 %s158, 1
    %p162 = scmp.eq.s32.totalorder %s19, 1
    %p163 = scmp.ne.s32.totalorder %s158, %s160
    %p164 = scmp.eq.s32.totalorder %s19, 0
    %p165 = por %p163, %p164
    %p166 = scmp.ne.s32.totalorder %s158, %s160
    %p167 = scmp.eq.s32.totalorder %s24, 1
    %p168 = por %p166, %p167
    %p169 = scmp.ne.s32.totalorder %s160, %s161
    %p170 = scmp.eq.s32.totalorder %s24, 0
    %p171 = por %p169, %p170
    %p172 = scmp.ne.s32.totalorder %s160, %s161
    %p173 = scmp.eq.s32.totalorder %s25, 1
    %p174 = por %p172, %p173
    %p176 = scmp.ne.s32.totalorder %s161, %s175
    %p177 = scmp.eq.s32.totalorder %s25, 0
    %p178 = por %p176, %p177
    %s180 = sadd.s32 %s179, 1
    %p183 = scmp.eq.s32.totalorder %s19, 1
    %p184 = scmp.ne.s32.totalorder %s179, %s181
    %p185 = scmp.eq.s32.totalorder %s19, 0
    %p186 = por %p184, %p185
    %p187 = scmp.ne.s32.totalorder %s179, %s181
    %p188 = scmp.eq.s32.totalorder %s24, 1
    %p189 = por %p187, %p188
    %p190 = scmp.ne.s32.totalorder %s181, %s182
    %p191 = scmp.eq.s32.totalorder %s24, 0
    %p192 = por %p190, %p191
    %p193 = scmp.ne.s32.totalorder %s181, %s182
    %p194 = scmp.eq.s32.totalorder %s25, 1
    %p195 = por %p193, %p194
    %p197 = scmp.ne.s32.totalorder %s182, %s196
    %p198 = scmp.eq.s32.totalorder %s25, 0
    %p199 = por %p197, %p198
    %s201 = sadd.s32 %s200, 1
    %p204 = scmp.eq.s32.totalorder %s19, 1
    %p205 = scmp.ne.s32.totalorder %s200, %s202
    %p206 = scmp.eq.s32.totalorder %s19, 0
    %p207 = por %p205, %p206
    %p208 = scmp.ne.s32.totalorder %s200, %s202
    %p209 = scmp.eq.s32.totalorder %s24, 1
    %p210 = por %p208, %p209
    %p211 = scmp.ne.s32.totalorder %s202, %s203
    %p212 = scmp.eq.s32.totalorder %s24, 0
    %p213 = por %p211, %p212
    %p214 = scmp.ne.s32.totalorder %s202, %s203
    %p215 = scmp.eq.s32.totalorder %s25, 1
    %p216 = por %p214, %p215
    %p218 = scmp.ne.s32.totalorder %s203, %s217
    %p219 = scmp.eq.s32.totalorder %s25, 0
    %p220 = por %p218, %p219
    %s222 = sadd.s32 %s221, 1
    %p225 = scmp.eq.s32.totalorder %s19, 1
    %p226 = scmp.ne.s32.totalorder %s221, %s223
    %p227 = scmp.eq.s32.totalorder %s19, 0
    %p228 = por %p226, %p227
    %p229 = scmp.ne.s32.totalorder %s221, %s223
    %p230 = scmp.eq.s32.totalorder %s24, 1
    %p231 = por %p229, %p230
    %p232 = scmp.ne.s32.totalorder %s223, %s224
    %p233 = scmp.eq.s32.totalorder %s24, 0
    %p234 = por %p232, %p233
    %p235 = scmp.ne.s32.totalorder %s223, %s224
    %p236 = scmp.eq.s32.totalorder %s25, 1
    %p237 = por %p235, %p236
    %p239 = scmp.ne.s32.totalorder %s224, %s238
    %p240 = scmp.eq.s32.totalorder %s25, 0
    %p241 = por %p239, %p240
    %s243 = sadd.s32 %s242, 1
    %p246 = scmp.eq.s32.totalorder %s19, 1
    %p247 = scmp.ne.s32.totalorder %s242, %s244
    %p248 = scmp.eq.s32.totalorder %s19, 0
    %p249 = por %p247, %p248
    %p250 = scmp.ne.s32.totalorder %s242, %s244
    %p251 = scmp.eq.s32.totalorder %s24, 1
    %p252 = por %p250, %p251
    %p253 = scmp.ne.s32.totalorder %s244, %s245
    %p254 = scmp.eq.s32.totalorder %s24, 0
    %p255 = por %p253, %p254
    %p256 = scmp.ne.s32.totalorder %s244, %s245
    %p257 = scmp.eq.s32.totalorder %s25, 1
    %p258 = por %p256, %p257
    %p260 = scmp.ne.s32.totalorder %s245, %s259
    %p261 = scmp.eq.s32.totalorder %s25, 0
    %p262 = por %p260, %p261
    %s264 = sadd.s32 %s263, 1
    %p267 = scmp.eq.s32.totalorder %s19, 1
    %p268 = scmp.ne.s32.totalorder %s263, %s265
    %p269 = scmp.eq.s32.totalorder %s19, 0
    %p270 = por %p268, %p269
    %p271 = scmp.ne.s32.totalorder %s263, %s265
    %p272 = scmp.eq.s32.totalorder %s24, 1
    %p273 = por %p271, %p272
    %p274 = scmp.ne.s32.totalorder %s265, %s266
    %p275 = scmp.eq.s32.totalorder %s24, 0
    %p276 = por %p274, %p275
    %p277 = scmp.ne.s32.totalorder %s265, %s266
    %p278 = scmp.eq.s32.totalorder %s25, 1
    %p279 = por %p277, %p278
    %p281 = scmp.ne.s32.totalorder %s266, %s280
    %p282 = scmp.eq.s32.totalorder %s25, 0
    %p283 = por %p281, %p282
    %s285 = sadd.s32 %s284, 1
    %p288 = scmp.eq.s32.totalorder %s19, 1
    %p289 = scmp.ne.s32.totalorder %s284, %s286
    %p290 = scmp.eq.s32.totalorder %s19, 0
    %p291 = por %p289, %p290
    %p292 = scmp.ne.s32.totalorder %s284, %s286
    %p293 = scmp.eq.s32.totalorder %s24, 1
    %p294 = por %p292, %p293
    %p295 = scmp.ne.s32.totalorder %s286, %s287
    %p296 = scmp.eq.s32.totalorder %s24, 0
    %p297 = por %p295, %p296
    %p298 = scmp.ne.s32.totalorder %s286, %s287
    %p299 = scmp.eq.s32.totalorder %s25, 1
    %p300 = por %p298, %p299
    %p302 = scmp.ne.s32.totalorder %s287, %s301
    %p303 = scmp.eq.s32.totalorder %s25, 0
    %p304 = por %p302, %p303
    %s305 = ssub.s32 %s19, %s26
    %p306 = scmp.eq.s32.totalorder %s305, 0
    %s308 = sadd.s32 %s307, 1
    %s309 = scalar_select %p306, %s307, %s308
    %p312 = pneg %p306
    %p313 = scmp.eq.s32.totalorder %s19, 1
    %p314 = por %p312, %p313
    %p315 = scmp.ne.s32.totalorder %s307, %s310
    %p316 = scmp.eq.s32.totalorder %s19, 0
    %p317 = por %p315, %p316
    %p318 = scmp.ne.s32.totalorder %s307, %s310
    %p319 = scmp.eq.s32.totalorder %s24, 1
    %p320 = por %p318, %p319
    %p321 = scmp.ne.s32.totalorder %s310, %s311
    %p322 = scmp.eq.s32.totalorder %s24, 0
    %p323 = por %p321, %p322
    %p324 = scmp.ne.s32.totalorder %s310, %s311
    %p325 = scmp.eq.s32.totalorder %s25, 1
    %p326 = por %p324, %p325
    %p328 = scmp.ne.s32.totalorder %s311, %s327
    %p329 = scmp.eq.s32.totalorder %s25, 0
    %p330 = por %p328, %p329
    %p331 = scmp.le.s32.totalorder 1, %s19
    %p332 = scmp.lt.s32.totalorder %s19, 3
    %p333 = pnand %p331, %p332
    %p334 = pneg %p333
    // Predicated region
    $region9: #{conv_pre_encoder.1} parent=5 // pred_check
      _
    $region10: #{conv_pre_encoder.1} parent=5 // pred_check_branch
      %336 = sbr.rel (%p333) target = $region12
    $region11: #{conv_pre_encoder.1} parent=5 // pred_region
      %s337 = ssub.s32 %s19, 1
      // Predicated region
      $region13: #{conv_pre_encoder.1} parent=11 // pred_check
        %p338 = pneg %p66
      $region14: #{conv_pre_encoder.1} parent=11 // pred_check_branch
        %340 = sbr.rel (%p338) target = $region16
      $region15: #{conv_pre_encoder.1} parent=11 // pred_region
        _
      $region16: #{conv_pre_encoder.1} parent=11 // pred_fallthru
        _
      // Predicated region
      $region17: #{conv_pre_encoder.1} parent=11 // pred_check
        %p341 = pneg %p87
      $region18: #{conv_pre_encoder.1} parent=11 // pred_check_branch
        %343 = sbr.rel (%p341) target = $region20
      $region19: #{conv_pre_encoder.1} parent=11 // pred_region
        _
      $region20: #{conv_pre_encoder.1} parent=11 // pred_fallthru
        _
      // Predicated region
      $region21: #{conv_pre_encoder.1} parent=11 // pred_check
        %p344 = pneg %p108
      $region22: #{conv_pre_encoder.1} parent=11 // pred_check_branch
        %346 = sbr.rel (%p344) target = $region24
      $region23: #{conv_pre_encoder.1} parent=11 // pred_region
        _
      $region24: #{conv_pre_encoder.1} parent=11 // pred_fallthru
        _
      // Predicated region
      $region25: #{conv_pre_encoder.1} parent=11 // pred_check
        %p347 = pneg %p129
      $region26: #{conv_pre_encoder.1} parent=11 // pred_check_branch
        %349 = sbr.rel (%p347) target = $region28
      $region27: #{conv_pre_encoder.1} parent=11 // pred_region
        _
      $region28: #{conv_pre_encoder.1} parent=11 // pred_fallthru
        _
      // Predicated region
      $region29: #{conv_pre_encoder.1} parent=11 // pred_check
        %p350 = pneg %p150
      $region30: #{conv_pre_encoder.1} parent=11 // pred_check_branch
        %352 = sbr.rel (%p350) target = $region32
      $region31: #{conv_pre_encoder.1} parent=11 // pred_region
        _
      $region32: #{conv_pre_encoder.1} parent=11 // pred_fallthru
        _
      // Predicated region
      $region33: #{conv_pre_encoder.1} parent=11 // pred_check
        %p353 = pneg %p171
      $region34: #{conv_pre_encoder.1} parent=11 // pred_check_branch
        %355 = sbr.rel (%p353) target = $region36
      $region35: #{conv_pre_encoder.1} parent=11 // pred_region
        _
      $region36: #{conv_pre_encoder.1} parent=11 // pred_fallthru
        _
      // Predicated region
      $region37: #{conv_pre_encoder.1} parent=11 // pred_check
        %p356 = pneg %p192
      $region38: #{conv_pre_encoder.1} parent=11 // pred_check_branch
        %358 = sbr.rel (%p356) target = $region40
      $region39: #{conv_pre_encoder.1} parent=11 // pred_region
        _
      $region40: #{conv_pre_encoder.1} parent=11 // pred_fallthru
        _
      // Predicated region
      $region41: #{conv_pre_encoder.1} parent=11 // pred_check
        %p359 = pneg %p213
      $region42: #{conv_pre_encoder.1} parent=11 // pred_check_branch
        %361 = sbr.rel (%p359) target = $region44
      $region43: #{conv_pre_encoder.1} parent=11 // pred_region
        _
      $region44: #{conv_pre_encoder.1} parent=11 // pred_fallthru
        _
      // Predicated region
      $region45: #{conv_pre_encoder.1} parent=11 // pred_check
        %p362 = pneg %p234
      $region46: #{conv_pre_encoder.1} parent=11 // pred_check_branch
        %364 = sbr.rel (%p362) target = $region48
      $region47: #{conv_pre_encoder.1} parent=11 // pred_region
        _
      $region48: #{conv_pre_encoder.1} parent=11 // pred_fallthru
        _
      // Predicated region
      $region49: #{conv_pre_encoder.1} parent=11 // pred_check
        %p365 = pneg %p255
      $region50: #{conv_pre_encoder.1} parent=11 // pred_check_branch
        %367 = sbr.rel (%p365) target = $region52
      $region51: #{conv_pre_encoder.1} parent=11 // pred_region
        _
      $region52: #{conv_pre_encoder.1} parent=11 // pred_fallthru
        _
      // Predicated region
      $region53: #{conv_pre_encoder.1} parent=11 // pred_check
        %p368 = pneg %p276
      $region54: #{conv_pre_encoder.1} parent=11 // pred_check_branch
        %370 = sbr.rel (%p368) target = $region56
      $region55: #{conv_pre_encoder.1} parent=11 // pred_region
        _
      $region56: #{conv_pre_encoder.1} parent=11 // pred_fallthru
        _
      // Predicated region
      $region57: #{conv_pre_encoder.1} parent=11 // pred_check
        %p371 = pneg %p297
      $region58: #{conv_pre_encoder.1} parent=11 // pred_check_branch
        %373 = sbr.rel (%p371) target = $region60
      $region59: #{conv_pre_encoder.1} parent=11 // pred_region
        _
      $region60: #{conv_pre_encoder.1} parent=11 // pred_fallthru
        _
    $region12: #{conv_pre_encoder.1} parent=5 // pred_fallthru
      _
    %p374 = scmp.lt.s32.totalorder %s19, 2
    // Predicated region
    $region61: #{conv_pre_encoder.1} parent=5 // pred_check
      %p375 = pneg %p374
    $region62: #{conv_pre_encoder.1} parent=5 // pred_check_branch
      %377 = sbr.rel (%p375) target = $region64
    $region63: #{conv_pre_encoder.1} parent=5 // pred_region
      // Predicated region
      $region65: #{conv_pre_encoder.1} parent=63 // pred_check
        %p378 = pneg %p39
      $region66: #{conv_pre_encoder.1} parent=63 // pred_check_branch
        %380 = sbr.rel (%p378) target = $region68
      $region67: #{conv_pre_encoder.1} parent=63 // pred_region
        %p381 = scmp.lt.s32.totalorder %s19, 1
        %s382 = scalar_select %p381, %s19, 1
        %s383 = smul.addr %s382, 4
        %s384 = smul.addr %s383, 8
        %s385 = scalar_lea.vmem %s0, %s384
      $region68: #{conv_pre_encoder.1} parent=63 // pred_fallthru
        _
    $region64: #{conv_pre_encoder.1} parent=5 // pred_fallthru
      _
    %p386 = scmp.le.s32.totalorder 1, %s19
    %p387 = scmp.lt.s32.totalorder %s19, 3
    %p388 = pnand %p386, %p387
    %p389 = pneg %p388
    // Predicated region
    $region69: #{conv_pre_encoder.1} parent=5 // pred_check
      _
    $region70: #{conv_pre_encoder.1} parent=5 // pred_check_branch
      %391 = sbr.rel (%p388) target = $region72
    $region71: #{conv_pre_encoder.1} parent=5 // pred_region
      %s392 = ssub.s32 %s19, 1
      %p393 = scmp.lt.s32.totalorder %s24, 1
      %s394 = scalar_select %p393, %s24, 1
      %s395 = smul.addr %s394, 4
      %s396 = smul.addr %s395, 8
      %s397 = scalar_lea.vmem %s0, %s396
      %p398 = pneg %p45
      %p399 = pneg %p42
      %p400 = pneg %p66
      %p401 = pneg %p63
      %p402 = pneg %p87
      %p403 = pneg %p84
      %p404 = pneg %p108
      %p405 = pneg %p105
      %p406 = pneg %p129
      %p407 = pneg %p126
      %p408 = pneg %p150
      %p409 = pneg %p147
      %p410 = pneg %p171
      %p411 = pneg %p168
      %p412 = pneg %p192
      %p413 = pneg %p189
      %p414 = pneg %p213
      %p415 = pneg %p210
      %p416 = pneg %p234
      %p417 = pneg %p231
      %p418 = pneg %p255
      %p419 = pneg %p252
      %p420 = pneg %p276
      %p421 = pneg %p273
      %p422 = pneg %p297
      %p423 = pneg %p294
      %p424 = pneg %p323
      %p425 = pneg %p320
      %p426 = scmp.lt.s32.totalorder %s24, 1
      %s427 = scalar_select %p426, %s24, 1
      %s428 = smul.addr %s427, 2
      %s429 = scalar_lea.vmem %s13, %s428
      %p430 = scmp.lt.s32.totalorder %s24, 1
      %s431 = scalar_select %p430, %s24, 1
      %s432 = smul.addr %s431, 4
      %s433 = smul.addr %s432, 8
      %s434 = scalar_lea.vmem %s0, %s433
      %p435 = scmp.lt.s32.totalorder %s24, 1
      %s436 = scalar_select %p435, %s24, 1
      %s437 = smul.addr %s436, 2
      %s438 = scalar_lea.vmem %s13, %s437
      %v439 = vld [vmem:[%s434] sm:$0xff]
      %v440 = vld [vmem:[%s434 + $0x8] sm:$0xff]
      %v441 = vld [vmem:[%s434 + $0x10] sm:$0xff]
      %v442 = vld [vmem:[%s434 + $0x18] sm:$0xff]
      %v443 = vld [vmem:[%s1] sm:$0xff]
      %v444 = vld [vmem:[%s1 + $0x8] sm:$0xff]
      %vm445 = vcmask 261120
      %v447 = vsel %vm445, %v443, 0
      %v450 = vsel %vm445, %v444, 0
      %452 = vmatprep.subr.mxu0 0.0
      %453 = vmatpush1.msra.mxu0 0.0
      %454 = vmatprep.subr.mxu0 0.0
      %455 = vmatpush1.msra.mxu0 0.0
      %456 = vmatprep.subr.mxu0 0.0
      %457 = vmatpush1.msra.mxu0 0.0
      %458 = vmatprep.subr.mxu0 0.0
      %459 = vmatpush1.msra.mxu0 0.0
      %460 = vmatprep.subr.mxu0 0.0
      %461 = vmatpush1.msra.mxu0 0.0
      %462 = vmatprep.subr.mxu0 0.0
      %463 = vmatpush1.msra.mxu0 0.0
      %464 = vmatprep.subr.mxu0 0.0
      %465 = vmatpush1.msra.mxu0 0.0
      %466 = vmatprep.subr.mxu0 0.0
      %467 = vmatpush1.msra.mxu0 0.0
      %468 = vmatprep.subr.mxu0 0.0
      %469 = vmatpush1.msra.mxu0 0.0
      %470 = vmatprep.subr.mxu0 0.0
      %471 = vmatpush1.msra.mxu0 0.0
      %472 = vmatprep.subr.mxu0 0.0
      %473 = vmatpush1.msra.mxu0 0.0
      %474 = vmatprep.subr.mxu0 0.0
      %475 = vmatpush1.msra.mxu0 0.0
      %476 = vmatprep.subr.mxu0 0.0
      %477 = vmatpush1.msra.mxu0 %v442
      %478 = vmatprep.subr.mxu0 0.0
      %479 = vmatpush1.msra.mxu0 %v441
      %480 = vmatprep.subr.mxu0 0.0
      %481 = vmatpush1.msra.mxu0 %v440
      %482 = vmatprep.subr.mxu0 0.0
      %483 = vmatpush1.msra.mxu0 %v439
      %484 = vmatprep.subr.mxu0 0.0
      %485 = vmatpush2.msra.mxu0 0.0
      %486 = vmatprep.subr.mxu0 0.0
      %487 = vmatpush2.msra.mxu0 0.0
      %488 = vmatprep.subr.mxu0 0.0
      %489 = vmatpush2.msra.mxu0 0.0
      %490 = vmatprep.subr.mxu0 0.0
      %491 = vmatpush2.msra.mxu0 0.0
      %492 = vmatprep.subr.mxu0 0.0
      %493 = vmatpush2.msra.mxu0 0.0
      %494 = vmatprep.subr.mxu0 0.0
      %495 = vmatpush2.msra.mxu0 0.0
      %496 = vmatprep.subr.mxu0 0.0
      %497 = vmatpush2.msra.mxu0 0.0
      %498 = vmatprep.subr.mxu0 0.0
      %499 = vmatpush2.msra.mxu0 0.0
      %500 = vmatprep.subr.mxu0 0.0
      %501 = vmatpush2.msra.mxu0 0.0
      %502 = vmatprep.subr.mxu0 0.0
      %503 = vmatpush2.msra.mxu0 0.0
      %504 = vmatprep.subr.mxu0 0.0
      %505 = vmatpush2.msra.mxu0 0.0
      %506 = vmatprep.subr.mxu0 0.0
      %507 = vmatpush2.msra.mxu0 0.0
      %508 = vmatprep.subr.mxu0 0.0
      %509 = vmatpush2.msra.mxu0 0.0
      %510 = vmatprep.subr.mxu0 0.0
      %511 = vmatpush2.msra.mxu0 0.0
      %512 = vmatprep.subr.mxu0 0.0
      %513 = vmatpush2.msra.mxu0 0.0
      %514 = vmatprep.subr.mxu0 0.0
      %515 = vmatpush2.msra.mxu0 0.0
      %516 = vmatprep.mubr.f32.mxu0 0.0
      %517 = vmatmul.mubr.f32.gmra.mxu0 %v447
      %v518 = vpop.f32.mrf.mxu0
      %v519 = vadd.f32 0.0, %v518
      %v520 = vpop.f32.mrf.mxu0
      %521 = vmatprep.mubr.f32.mxu0 0.0
      %522 = vmatmul.mubr.f32.gmra.mxu0 %v450
      %v523 = vpop.f32.mrf.mxu0
      %v524 = vadd.f32 0.0, %v523
      %v525 = vpop.f32.mrf.mxu0
      %526 = vdwg.mxu0
      %v527 = vld [vmem:[%s2] sm:$0xff]
      %v528 = vld [vmem:[%s2 + $0x8] sm:$0xff]
      %v529 = vld [vmem:[%s2 + $0x10] sm:$0xff]
      %v530 = vld [vmem:[%s2 + $0x18] sm:$0xff]
      %v531 = vld [vmem:[%s2 + $0x20] sm:$0xff]
      %v532 = vld [vmem:[%s2 + $0x28] sm:$0xff]
      %v533 = vld [vmem:[%s2 + $0x30] sm:$0xff]
      %v534 = vld [vmem:[%s2 + $0x38] sm:$0xff]
      %v535 = vld [vmem:[%s2 + $0x40] sm:$0xff]
      %v536 = vld [vmem:[%s2 + $0x48] sm:$0xff]
      %v537 = vld [vmem:[%s2 + $0x50] sm:$0xff]
      %v538 = vld [vmem:[%s2 + $0x58] sm:$0xff]
      %v539 = vld [vmem:[%s2 + $0x60] sm:$0xff]
      %v540 = vld [vmem:[%s2 + $0x68] sm:$0xff]
      %v541 = vld [vmem:[%s2 + $0x70] sm:$0xff]
      %v542 = vld [vmem:[%s2 + $0x78] sm:$0xff]
      %v543 = vld [vmem:[%s2 + $0x80] sm:$0xff]
      %v544 = vld [vmem:[%s2 + $0x88] sm:$0xff]
      %v545 = vld [vmem:[%s2 + $0x90] sm:$0xff]
      %v546 = vld [vmem:[%s2 + $0x98] sm:$0xff]
      %v547 = vld [vmem:[%s2 + $0xa0] sm:$0xff]
      %v548 = vld [vmem:[%s2 + $0xa8] sm:$0xff]
      %v549 = vld [vmem:[%s2 + $0xb0] sm:$0xff]
      %v550 = vld [vmem:[%s2 + $0xb8] sm:$0xff]
      %v551 = vld [vmem:[%s2 + $0xc0] sm:$0xff]
      %v552 = vld [vmem:[%s2 + $0xc8] sm:$0xff]
      %v553 = vld [vmem:[%s2 + $0xd0] sm:$0xff]
      %v554 = vld [vmem:[%s2 + $0xd8] sm:$0xff]
      %v555 = vld [vmem:[%s2 + $0xe0] sm:$0xff]
      %v556 = vld [vmem:[%s2 + $0xe8] sm:$0xff]
      %v557 = vld [vmem:[%s2 + $0xf0] sm:$0xff]
      %v558 = vld [vmem:[%s2 + $0xf8] sm:$0xff]
      %v559 = vld [vmem:[%s2 + $0x100] sm:$0xff]
      %v560 = vld [vmem:[%s2 + $0x108] sm:$0xff]
      %v561 = vld [vmem:[%s2 + $0x110] sm:$0xff]
      %v562 = vld [vmem:[%s2 + $0x118] sm:$0xff]
      %v563 = vld [vmem:[%s2 + $0x120] sm:$0xff]
      %v564 = vld [vmem:[%s2 + $0x128] sm:$0xff]
      %v565 = vld [vmem:[%s2 + $0x130] sm:$0xff]
      %v566 = vld [vmem:[%s2 + $0x138] sm:$0xff]
      %v567 = vld [vmem:[%s2 + $0x140] sm:$0xff]
      %v568 = vld [vmem:[%s2 + $0x148] sm:$0xff]
      %v569 = vld [vmem:[%s2 + $0x150] sm:$0xff]
      %v570 = vld [vmem:[%s2 + $0x158] sm:$0xff]
      %v571 = vld [vmem:[%s2 + $0x160] sm:$0xff]
      %v572 = vld [vmem:[%s2 + $0x168] sm:$0xff]
      %v573 = vld [vmem:[%s2 + $0x170] sm:$0xff]
      %v574 = vld [vmem:[%s2 + $0x178] sm:$0xff]
      %s575 = scalar_lea.vmem %s1, 16
      %v576 = vld [vmem:[%s575] sm:$0xff]
      %v577 = vld [vmem:[%s575 + $0x8] sm:$0xff]
      %v579 = vsel %vm445, %v576, 0
      %v582 = vsel %vm445, %v577, 0
      %584 = vmatprep.subr.mxu0 0.0
      %585 = vmatpush1.msra.mxu0 0.0
      %586 = vmatprep.subr.mxu0 0.0
      %587 = vmatpush1.msra.mxu0 0.0
      %588 = vmatprep.subr.mxu0 0.0
      %589 = vmatpush1.msra.mxu0 0.0
      %590 = vmatprep.subr.mxu0 0.0
      %591 = vmatpush1.msra.mxu0 0.0
      %592 = vmatprep.subr.mxu0 0.0
      %593 = vmatpush1.msra.mxu0 0.0
      %594 = vmatprep.subr.mxu0 0.0
      %595 = vmatpush1.msra.mxu0 0.0
      %596 = vmatprep.subr.mxu0 0.0
      %597 = vmatpush1.msra.mxu0 0.0
      %598 = vmatprep.subr.mxu0 0.0
      %599 = vmatpush1.msra.mxu0 0.0
      %600 = vmatprep.subr.mxu0 0.0
      %601 = vmatpush1.msra.mxu0 0.0
      %602 = vmatprep.subr.mxu0 0.0
      %603 = vmatpush1.msra.mxu0 0.0
      %604 = vmatprep.subr.mxu0 0.0
      %605 = vmatpush1.msra.mxu0 0.0
      %606 = vmatprep.subr.mxu0 0.0
      %607 = vmatpush1.msra.mxu0 0.0
      %608 = vmatprep.subr.mxu0 0.0
      %609 = vmatpush1.msra.mxu0 %v442
      %610 = vmatprep.subr.mxu0 0.0
      %611 = vmatpush1.msra.mxu0 %v441
      %612 = vmatprep.subr.mxu0 0.0
      %613 = vmatpush1.msra.mxu0 %v440
      %614 = vmatprep.subr.mxu0 0.0
      %615 = vmatpush1.msra.mxu0 %v439
      %616 = vmatprep.subr.mxu0 0.0
      %617 = vmatpush2.msra.mxu0 0.0
      %618 = vmatprep.subr.mxu0 0.0
      %619 = vmatpush2.msra.mxu0 0.0
      %620 = vmatprep.subr.mxu0 0.0
      %621 = vmatpush2.msra.mxu0 0.0
      %622 = vmatprep.subr.mxu0 0.0
      %623 = vmatpush2.msra.mxu0 0.0
      %624 = vmatprep.subr.mxu0 0.0
      %625 = vmatpush2.msra.mxu0 0.0
      %626 = vmatprep.subr.mxu0 0.0
      %627 = vmatpush2.msra.mxu0 0.0
      %628 = vmatprep.subr.mxu0 0.0
      %629 = vmatpush2.msra.mxu0 0.0
      %630 = vmatprep.subr.mxu0 0.0
      %631 = vmatpush2.msra.mxu0 0.0
      %632 = vmatprep.subr.mxu0 0.0
      %633 = vmatpush2.msra.mxu0 0.0
      %634 = vmatprep.subr.mxu0 0.0
      %635 = vmatpush2.msra.mxu0 0.0
      %636 = vmatprep.subr.mxu0 0.0
      %637 = vmatpush2.msra.mxu0 0.0
      %638 = vmatprep.subr.mxu0 0.0
      %639 = vmatpush2.msra.mxu0 0.0
      %640 = vmatprep.subr.mxu0 0.0
      %641 = vmatpush2.msra.mxu0 0.0
      %642 = vmatprep.subr.mxu0 0.0
      %643 = vmatpush2.msra.mxu0 0.0
      %644 = vmatprep.subr.mxu0 0.0
      %645 = vmatpush2.msra.mxu0 0.0
      %646 = vmatprep.subr.mxu0 0.0
      %647 = vmatpush2.msra.mxu0 0.0
      %648 = vmatprep.mubr.f32.mxu0 0.0
      %649 = vmatmul.mubr.f32.gmra.mxu0 %v579
      %v650 = vpop.f32.mrf.mxu0
      %v651 = vadd.f32 0.0, %v650
      %v652 = vpop.f32.mrf.mxu0
      %653 = vmatprep.mubr.f32.mxu0 0.0
      %654 = vmatmul.mubr.f32.gmra.mxu0 %v582
      %v655 = vpop.f32.mrf.mxu0
      %v656 = vadd.f32 0.0, %v655
      %v657 = vpop.f32.mrf.mxu0
      %658 = vdwg.mxu0
      %s659 = scalar_lea.vmem %s2, 384
      %v660 = vld [vmem:[%s659] sm:$0xff]
      %v661 = vld [vmem:[%s659 + $0x8] sm:$0xff]
      %v662 = vld [vmem:[%s659 + $0x10] sm:$0xff]
      %v663 = vld [vmem:[%s659 + $0x18] sm:$0xff]
      %v664 = vld [vmem:[%s659 + $0x20] sm:$0xff]
      %v665 = vld [vmem:[%s659 + $0x28] sm:$0xff]
      %v666 = vld [vmem:[%s659 + $0x30] sm:$0xff]
      %v667 = vld [vmem:[%s659 + $0x38] sm:$0xff]
      %v668 = vld [vmem:[%s659 + $0x40] sm:$0xff]
      %v669 = vld [vmem:[%s659 + $0x48] sm:$0xff]
      %v670 = vld [vmem:[%s659 + $0x50] sm:$0xff]
      %v671 = vld [vmem:[%s659 + $0x58] sm:$0xff]
      %v672 = vld [vmem:[%s659 + $0x60] sm:$0xff]
      %v673 = vld [vmem:[%s659 + $0x68] sm:$0xff]
      %v674 = vld [vmem:[%s659 + $0x70] sm:$0xff]
      %v675 = vld [vmem:[%s659 + $0x78] sm:$0xff]
      %v676 = vld [vmem:[%s659 + $0x80] sm:$0xff]
      %v677 = vld [vmem:[%s659 + $0x88] sm:$0xff]
      %v678 = vld [vmem:[%s659 + $0x90] sm:$0xff]
      %v679 = vld [vmem:[%s659 + $0x98] sm:$0xff]
      %v680 = vld [vmem:[%s659 + $0xa0] sm:$0xff]
      %v681 = vld [vmem:[%s659 + $0xa8] sm:$0xff]
      %v682 = vld [vmem:[%s659 + $0xb0] sm:$0xff]
      %v683 = vld [vmem:[%s659 + $0xb8] sm:$0xff]
      %v684 = vld [vmem:[%s659 + $0xc0] sm:$0xff]
      %v685 = vld [vmem:[%s659 + $0xc8] sm:$0xff]
      %v686 = vld [vmem:[%s659 + $0xd0] sm:$0xff]
      %v687 = vld [vmem:[%s659 + $0xd8] sm:$0xff]
      %v688 = vld [vmem:[%s659 + $0xe0] sm:$0xff]
      %v689 = vld [vmem:[%s659 + $0xe8] sm:$0xff]
      %v690 = vld [vmem:[%s659 + $0xf0] sm:$0xff]
      %v691 = vld [vmem:[%s659 + $0xf8] sm:$0xff]
      %v692 = vld [vmem:[%s659 + $0x100] sm:$0xff]
      %v693 = vld [vmem:[%s659 + $0x108] sm:$0xff]
      %v694 = vld [vmem:[%s659 + $0x110] sm:$0xff]
      %v695 = vld [vmem:[%s659 + $0x118] sm:$0xff]
      %v696 = vld [vmem:[%s659 + $0x120] sm:$0xff]
      %v697 = vld [vmem:[%s659 + $0x128] sm:$0xff]
      %v698 = vld [vmem:[%s659 + $0x130] sm:$0xff]
      %v699 = vld [vmem:[%s659 + $0x138] sm:$0xff]
      %v700 = vld [vmem:[%s659 + $0x140] sm:$0xff]
      %v701 = vld [vmem:[%s659 + $0x148] sm:$0xff]
      %v702 = vld [vmem:[%s659 + $0x150] sm:$0xff]
      %v703 = vld [vmem:[%s659 + $0x158] sm:$0xff]
      %v704 = vld [vmem:[%s659 + $0x160] sm:$0xff]
      %v705 = vld [vmem:[%s659 + $0x168] sm:$0xff]
      %v706 = vld [vmem:[%s659 + $0x170] sm:$0xff]
      %v707 = vld [vmem:[%s659 + $0x178] sm:$0xff]
      %vm708 = vcmask 785408
      %v710 = vsel %vm708, %v651, 0
      %v713 = vsel %vm708, %v656, 0
      %715 = vmatprep.subr.mxu0 0.0
      %716 = vmatpush1.msra.mxu0 0.0
      %717 = vmatprep.subr.mxu0 0.0
      %718 = vmatpush1.msra.mxu0 0.0
      %719 = vmatprep.subr.mxu0 0.0
      %720 = vmatpush1.msra.mxu0 0.0
      %721 = vmatprep.subr.mxu0 0.0
      %722 = vmatpush1.msra.mxu0 0.0
      %723 = vmatprep.subr.mxu0 %v705
      %724 = vmatpush1.msra.mxu0 %v704
      %725 = vmatprep.subr.mxu0 %v701
      %726 = vmatpush1.msra.mxu0 %v700
      %727 = vmatprep.subr.mxu0 %v697
      %728 = vmatpush1.msra.mxu0 %v696
      %729 = vmatprep.subr.mxu0 %v693
      %730 = vmatpush1.msra.mxu0 %v692
      %731 = vmatprep.subr.mxu0 %v689
      %732 = vmatpush1.msra.mxu0 %v688
      %733 = vmatprep.subr.mxu0 %v685
      %734 = vmatpush1.msra.mxu0 %v684
      %735 = vmatprep.subr.mxu0 %v681
      %736 = vmatpush1.msra.mxu0 %v680
      %737 = vmatprep.subr.mxu0 %v677
      %738 = vmatpush1.msra.mxu0 %v676
      %739 = vmatprep.subr.mxu0 %v673
      %740 = vmatpush1.msra.mxu0 %v672
      %741 = vmatprep.subr.mxu0 %v669
      %742 = vmatpush1.msra.mxu0 %v668
      %743 = vmatprep.subr.mxu0 %v665
      %744 = vmatpush1.msra.mxu0 %v664
      %745 = vmatprep.subr.mxu0 %v661
      %746 = vmatpush1.msra.mxu0 %v660
      %747 = vmatprep.subr.mxu0 0.0
      %748 = vmatpush2.msra.mxu0 0.0
      %749 = vmatprep.subr.mxu0 0.0
      %750 = vmatpush2.msra.mxu0 0.0
      %751 = vmatprep.subr.mxu0 0.0
      %752 = vmatpush2.msra.mxu0 0.0
      %753 = vmatprep.subr.mxu0 0.0
      %754 = vmatpush2.msra.mxu0 0.0
      %755 = vmatprep.subr.mxu0 0.0
      %756 = vmatpush2.msra.mxu0 0.0
      %757 = vmatprep.subr.mxu0 0.0
      %758 = vmatpush2.msra.mxu0 0.0
      %759 = vmatprep.subr.mxu0 0.0
      %760 = vmatpush2.msra.mxu0 0.0
      %761 = vmatprep.subr.mxu0 0.0
      %762 = vmatpush2.msra.mxu0 0.0
      %763 = vmatprep.subr.mxu0 0.0
      %764 = vmatpush2.msra.mxu0 0.0
      %765 = vmatprep.subr.mxu0 0.0
      %766 = vmatpush2.msra.mxu0 0.0
      %767 = vmatprep.subr.mxu0 0.0
      %768 = vmatpush2.msra.mxu0 0.0
      %769 = vmatprep.subr.mxu0 0.0
      %770 = vmatpush2.msra.mxu0 0.0
      %771 = vmatprep.subr.mxu0 0.0
      %772 = vmatpush2.msra.mxu0 0.0
      %773 = vmatprep.subr.mxu0 0.0
      %774 = vmatpush2.msra.mxu0 0.0
      %775 = vmatprep.subr.mxu0 0.0
      %776 = vmatpush2.msra.mxu0 0.0
      %777 = vmatprep.subr.mxu0 0.0
      %778 = vmatpush2.msra.mxu0 0.0
      %779 = vmatprep.mubr.f32.mxu0 0.0
      %780 = vmatmul.mubr.f32.gmra.mxu0 %v710
      %v781 = vpop.f32.mrf.mxu0
      %v782 = vadd.f32 0.0, %v781
      %v783 = vpop.f32.mrf.mxu0
      %v784 = vadd.f32 0.0, %v783
      %785 = vmatprep.mubr.f32.mxu0 0.0
      %786 = vmatmul.mubr.f32.gmra.mxu0 %v713
      %v787 = vpop.f32.mrf.mxu0
      %v788 = vadd.f32 0.0, %v787
      %v789 = vpop.f32.mrf.mxu0
      %v790 = vadd.f32 0.0, %v789
      %791 = vdwg.mxu0
      %792 = vmatprep.subr.mxu0 0.0
      %793 = vmatpush1.msra.mxu0 0.0
      %794 = vmatprep.subr.mxu0 0.0
      %795 = vmatpush1.msra.mxu0 0.0
      %796 = vmatprep.subr.mxu0 0.0
      %797 = vmatpush1.msra.mxu0 0.0
      %798 = vmatprep.subr.mxu0 0.0
      %799 = vmatpush1.msra.mxu0 0.0
      %800 = vmatprep.subr.mxu0 %v707
      %801 = vmatpush1.msra.mxu0 %v706
      %802 = vmatprep.subr.mxu0 %v703
      %803 = vmatpush1.msra.mxu0 %v702
      %804 = vmatprep.subr.mxu0 %v699
      %805 = vmatpush1.msra.mxu0 %v698
      %806 = vmatprep.subr.mxu0 %v695
      %807 = vmatpush1.msra.mxu0 %v694
      %808 = vmatprep.subr.mxu0 %v691
      %809 = vmatpush1.msra.mxu0 %v690
      %810 = vmatprep.subr.mxu0 %v687
      %811 = vmatpush1.msra.mxu0 %v686
      %812 = vmatprep.subr.mxu0 %v683
      %813 = vmatpush1.msra.mxu0 %v682
      %814 = vmatprep.subr.mxu0 %v679
      %815 = vmatpush1.msra.mxu0 %v678
      %816 = vmatprep.subr.mxu0 %v675
      %817 = vmatpush1.msra.mxu0 %v674
      %818 = vmatprep.subr.mxu0 %v671
      %819 = vmatpush1.msra.mxu0 %v670
      %820 = vmatprep.subr.mxu0 %v667
      %821 = vmatpush1.msra.mxu0 %v666
      %822 = vmatprep.subr.mxu0 %v663
      %823 = vmatpush1.msra.mxu0 %v662
      %824 = vmatprep.subr.mxu0 0.0
      %825 = vmatpush2.msra.mxu0 0.0
      %826 = vmatprep.subr.mxu0 0.0
      %827 = vmatpush2.msra.mxu0 0.0
      %828 = vmatprep.subr.mxu0 0.0
      %829 = vmatpush2.msra.mxu0 0.0
      %830 = vmatprep.subr.mxu0 0.0
      %831 = vmatpush2.msra.mxu0 0.0
      %832 = vmatprep.subr.mxu0 0.0
      %833 = vmatpush2.msra.mxu0 0.0
      %834 = vmatprep.subr.mxu0 0.0
      %835 = vmatpush2.msra.mxu0 0.0
      %836 = vmatprep.subr.mxu0 0.0
      %837 = vmatpush2.msra.mxu0 0.0
      %838 = vmatprep.subr.mxu0 0.0
      %839 = vmatpush2.msra.mxu0 0.0
      %840 = vmatprep.subr.mxu0 0.0
      %841 = vmatpush2.msra.mxu0 0.0
      %842 = vmatprep.subr.mxu0 0.0
      %843 = vmatpush2.msra.mxu0 0.0
      %844 = vmatprep.subr.mxu0 0.0
      %845 = vmatpush2.msra.mxu0 0.0
      %846 = vmatprep.subr.mxu0 0.0
      %847 = vmatpush2.msra.mxu0 0.0
      %848 = vmatprep.subr.mxu0 0.0
      %849 = vmatpush2.msra.mxu0 0.0
      %850 = vmatprep.subr.mxu0 0.0
      %851 = vmatpush2.msra.mxu0 0.0
      %852 = vmatprep.subr.mxu0 0.0
      %853 = vmatpush2.msra.mxu0 0.0
      %854 = vmatprep.subr.mxu0 0.0
      %855 = vmatpush2.msra.mxu0 0.0
      %856 = vmatprep.mubr.f32.mxu0 0.0
      %857 = vmatmul.mubr.f32.gmra.mxu0 %v710
      %v858 = vpop.f32.mrf.mxu0
      %v859 = vadd.f32 0.0, %v858
      %v860 = vpop.f32.mrf.mxu0
      %v861 = vadd.f32 0.0, %v860
      %862 = vmatprep.mubr.f32.mxu0 0.0
      %863 = vmatmul.mubr.f32.gmra.mxu0 %v713
      %v864 = vpop.f32.mrf.mxu0
      %v865 = vadd.f32 0.0, %v864
      %v866 = vpop.f32.mrf.mxu0
      %v867 = vadd.f32 0.0, %v866
      %868 = vdwg.mxu0
      %v870 = vsel %vm708, %v519, 0
      %v873 = vsel %vm708, %v524, 0
      %875 = vmatprep.subr.mxu0 0.0
      %876 = vmatpush1.msra.mxu0 0.0
      %877 = vmatprep.subr.mxu0 0.0
      %878 = vmatpush1.msra.mxu0 0.0
      %879 = vmatprep.subr.mxu0 0.0
      %880 = vmatpush1.msra.mxu0 0.0
      %881 = vmatprep.subr.mxu0 0.0
      %882 = vmatpush1.msra.mxu0 0.0
      %883 = vmatprep.subr.mxu0 %v572
      %884 = vmatpush1.msra.mxu0 %v571
      %885 = vmatprep.subr.mxu0 %v568
      %886 = vmatpush1.msra.mxu0 %v567
      %887 = vmatprep.subr.mxu0 %v564
      %888 = vmatpush1.msra.mxu0 %v563
      %889 = vmatprep.subr.mxu0 %v560
      %890 = vmatpush1.msra.mxu0 %v559
      %891 = vmatprep.subr.mxu0 %v556
      %892 = vmatpush1.msra.mxu0 %v555
      %893 = vmatprep.subr.mxu0 %v552
      %894 = vmatpush1.msra.mxu0 %v551
      %895 = vmatprep.subr.mxu0 %v548
      %896 = vmatpush1.msra.mxu0 %v547
      %897 = vmatprep.subr.mxu0 %v544
      %898 = vmatpush1.msra.mxu0 %v543
      %899 = vmatprep.subr.mxu0 %v540
      %900 = vmatpush1.msra.mxu0 %v539
      %901 = vmatprep.subr.mxu0 %v536
      %902 = vmatpush1.msra.mxu0 %v535
      %903 = vmatprep.subr.mxu0 %v532
      %904 = vmatpush1.msra.mxu0 %v531
      %905 = vmatprep.subr.mxu0 %v528
      %906 = vmatpush1.msra.mxu0 %v527
      %907 = vmatprep.subr.mxu0 0.0
      %908 = vmatpush2.msra.mxu0 0.0
      %909 = vmatprep.subr.mxu0 0.0
      %910 = vmatpush2.msra.mxu0 0.0
      %911 = vmatprep.subr.mxu0 0.0
      %912 = vmatpush2.msra.mxu0 0.0
      %913 = vmatprep.subr.mxu0 0.0
      %914 = vmatpush2.msra.mxu0 0.0
      %915 = vmatprep.subr.mxu0 0.0
      %916 = vmatpush2.msra.mxu0 0.0
      %917 = vmatprep.subr.mxu0 0.0
      %918 = vmatpush2.msra.mxu0 0.0
      %919 = vmatprep.subr.mxu0 0.0
      %920 = vmatpush2.msra.mxu0 0.0
      %921 = vmatprep.subr.mxu0 0.0
      %922 = vmatpush2.msra.mxu0 0.0
      %923 = vmatprep.subr.mxu0 0.0
      %924 = vmatpush2.msra.mxu0 0.0
      %925 = vmatprep.subr.mxu0 0.0
      %926 = vmatpush2.msra.mxu0 0.0
      %927 = vmatprep.subr.mxu0 0.0
      %928 = vmatpush2.msra.mxu0 0.0
      %929 = vmatprep.subr.mxu0 0.0
      %930 = vmatpush2.msra.mxu0 0.0
      %931 = vmatprep.subr.mxu0 0.0
      %932 = vmatpush2.msra.mxu0 0.0
      %933 = vmatprep.subr.mxu0 0.0
      %934 = vmatpush2.msra.mxu0 0.0
      %935 = vmatprep.subr.mxu0 0.0
      %936 = vmatpush2.msra.mxu0 0.0
      %937 = vmatprep.subr.mxu0 0.0
      %938 = vmatpush2.msra.mxu0 0.0
      %939 = vmatprep.mubr.f32.mxu0 0.0
      %940 = vmatmul.mubr.f32.gmra.mxu0 %v870
      %v941 = vpop.f32.mrf.mxu0
      %v942 = vadd.f32 %v782, %v941
      %v943 = vpop.f32.mrf.mxu0
      %v944 = vadd.f32 %v784, %v943
      %945 = vmatprep.mubr.f32.mxu0 0.0
      %946 = vmatmul.mubr.f32.gmra.mxu0 %v873
      %v947 = vpop.f32.mrf.mxu0
      %v948 = vadd.f32 %v788, %v947
      %v949 = vpop.f32.mrf.mxu0
      %v950 = vadd.f32 %v790, %v949
      %951 = vdwg.mxu0
      %952 = vmatprep.subr.mxu0 0.0
      %953 = vmatpush1.msra.mxu0 0.0
      %954 = vmatprep.subr.mxu0 0.0
      %955 = vmatpush1.msra.mxu0 0.0
      %956 = vmatprep.subr.mxu0 0.0
      %957 = vmatpush1.msra.mxu0 0.0
      %958 = vmatprep.subr.mxu0 0.0
      %959 = vmatpush1.msra.mxu0 0.0
      %960 = vmatprep.subr.mxu0 %v574
      %961 = vmatpush1.msra.mxu0 %v573
      %962 = vmatprep.subr.mxu0 %v570
      %963 = vmatpush1.msra.mxu0 %v569
      %964 = vmatprep.subr.mxu0 %v566
      %965 = vmatpush1.msra.mxu0 %v565
      %966 = vmatprep.subr.mxu0 %v562
      %967 = vmatpush1.msra.mxu0 %v561
      %968 = vmatprep.subr.mxu0 %v558
      %969 = vmatpush1.msra.mxu0 %v557
      %970 = vmatprep.subr.mxu0 %v554
      %971 = vmatpush1.msra.mxu0 %v553
      %972 = vmatprep.subr.mxu0 %v550
      %973 = vmatpush1.msra.mxu0 %v549
      %974 = vmatprep.subr.mxu0 %v546
      %975 = vmatpush1.msra.mxu0 %v545
      %976 = vmatprep.subr.mxu0 %v542
      %977 = vmatpush1.msra.mxu0 %v541
      %978 = vmatprep.subr.mxu0 %v538
      %979 = vmatpush1.msra.mxu0 %v537
      %980 = vmatprep.subr.mxu0 %v534
      %981 = vmatpush1.msra.mxu0 %v533
      %982 = vmatprep.subr.mxu0 %v530
      %983 = vmatpush1.msra.mxu0 %v529
      %984 = vmatprep.subr.mxu0 0.0
      %985 = vmatpush2.msra.mxu0 0.0
      %986 = vmatprep.subr.mxu0 0.0
      %987 = vmatpush2.msra.mxu0 0.0
      %988 = vmatprep.subr.mxu0 0.0
      %989 = vmatpush2.msra.mxu0 0.0
      %990 = vmatprep.subr.mxu0 0.0
      %991 = vmatpush2.msra.mxu0 0.0
      %992 = vmatprep.subr.mxu0 0.0
      %993 = vmatpush2.msra.mxu0 0.0
      %994 = vmatprep.subr.mxu0 0.0
      %995 = vmatpush2.msra.mxu0 0.0
      %996 = vmatprep.subr.mxu0 0.0
      %997 = vmatpush2.msra.mxu0 0.0
      %998 = vmatprep.subr.mxu0 0.0
      %999 = vmatpush2.msra.mxu0 0.0
      %1000 = vmatprep.subr.mxu0 0.0
      %1001 = vmatpush2.msra.mxu0 0.0
      %1002 = vmatprep.subr.mxu0 0.0
      %1003 = vmatpush2.msra.mxu0 0.0
      %1004 = vmatprep.subr.mxu0 0.0
      %1005 = vmatpush2.msra.mxu0 0.0
      %1006 = vmatprep.subr.mxu0 0.0
      %1007 = vmatpush2.msra.mxu0 0.0
      %1008 = vmatprep.subr.mxu0 0.0
      %1009 = vmatpush2.msra.mxu0 0.0
      %1010 = vmatprep.subr.mxu0 0.0
      %1011 = vmatpush2.msra.mxu0 0.0
      %1012 = vmatprep.subr.mxu0 0.0
      %1013 = vmatpush2.msra.mxu0 0.0
      %1014 = vmatprep.subr.mxu0 0.0
      %1015 = vmatpush2.msra.mxu0 0.0
      %1016 = vmatprep.mubr.f32.mxu0 0.0
      %1017 = vmatmul.mubr.f32.gmra.mxu0 %v870
      %v1018 = vpop.f32.mrf.mxu0
      %v1019 = vadd.f32 %v859, %v1018
      %v1020 = vpop.f32.mrf.mxu0
      %v1021 = vadd.f32 %v861, %v1020
      %1022 = vmatprep.mubr.f32.mxu0 0.0
      %1023 = vmatmul.mubr.f32.gmra.mxu0 %v873
      %v1024 = vpop.f32.mrf.mxu0
      %v1025 = vadd.f32 %v865, %v1024
      %v1026 = vpop.f32.mrf.mxu0
      %v1027 = vadd.f32 %v867, %v1026
      %1028 = vdwg.mxu0
      %s1029 = scalar_lea.vmem %s1, 32
      %v1030 = vld [vmem:[%s1029] sm:$0xff]
      %v1031 = vld [vmem:[%s1029 + $0x8] sm:$0xff]
      %v1033 = vsel %vm445, %v1030, 0
      %v1036 = vsel %vm445, %v1031, 0
      %1038 = vmatprep.subr.mxu0 0.0
      %1039 = vmatpush1.msra.mxu0 0.0
      %1040 = vmatprep.subr.mxu0 0.0
      %1041 = vmatpush1.msra.mxu0 0.0
      %1042 = vmatprep.subr.mxu0 0.0
      %1043 = vmatpush1.msra.mxu0 0.0
      %1044 = vmatprep.subr.mxu0 0.0
      %1045 = vmatpush1.msra.mxu0 0.0
      %1046 = vmatprep.subr.mxu0 0.0
      %1047 = vmatpush1.msra.mxu0 0.0
      %1048 = vmatprep.subr.mxu0 0.0
      %1049 = vmatpush1.msra.mxu0 0.0
      %1050 = vmatprep.subr.mxu0 0.0
      %1051 = vmatpush1.msra.mxu0 0.0
      %1052 = vmatprep.subr.mxu0 0.0
      %1053 = vmatpush1.msra.mxu0 0.0
      %1054 = vmatprep.subr.mxu0 0.0
      %1055 = vmatpush1.msra.mxu0 0.0
      %1056 = vmatprep.subr.mxu0 0.0
      %1057 = vmatpush1.msra.mxu0 0.0
      %1058 = vmatprep.subr.mxu0 0.0
      %1059 = vmatpush1.msra.mxu0 0.0
      %1060 = vmatprep.subr.mxu0 0.0
      %1061 = vmatpush1.msra.mxu0 0.0
      %1062 = vmatprep.subr.mxu0 0.0
      %1063 = vmatpush1.msra.mxu0 %v442
      %1064 = vmatprep.subr.mxu0 0.0
      %1065 = vmatpush1.msra.mxu0 %v441
      %1066 = vmatprep.subr.mxu0 0.0
      %1067 = vmatpush1.msra.mxu0 %v440
      %1068 = vmatprep.subr.mxu0 0.0
      %1069 = vmatpush1.msra.mxu0 %v439
      %1070 = vmatprep.subr.mxu0 0.0
      %1071 = vmatpush2.msra.mxu0 0.0
      %1072 = vmatprep.subr.mxu0 0.0
      %1073 = vmatpush2.msra.mxu0 0.0
      %1074 = vmatprep.subr.mxu0 0.0
      %1075 = vmatpush2.msra.mxu0 0.0
      %1076 = vmatprep.subr.mxu0 0.0
      %1077 = vmatpush2.msra.mxu0 0.0
      %1078 = vmatprep.subr.mxu0 0.0
      %1079 = vmatpush2.msra.mxu0 0.0
      %1080 = vmatprep.subr.mxu0 0.0
      %1081 = vmatpush2.msra.mxu0 0.0
      %1082 = vmatprep.subr.mxu0 0.0
      %1083 = vmatpush2.msra.mxu0 0.0
      %1084 = vmatprep.subr.mxu0 0.0
      %1085 = vmatpush2.msra.mxu0 0.0
      %1086 = vmatprep.subr.mxu0 0.0
      %1087 = vmatpush2.msra.mxu0 0.0
      %1088 = vmatprep.subr.mxu0 0.0
      %1089 = vmatpush2.msra.mxu0 0.0
      %1090 = vmatprep.subr.mxu0 0.0
      %1091 = vmatpush2.msra.mxu0 0.0
      %1092 = vmatprep.subr.mxu0 0.0
      %1093 = vmatpush2.msra.mxu0 0.0
      %1094 = vmatprep.subr.mxu0 0.0
      %1095 = vmatpush2.msra.mxu0 0.0
      %1096 = vmatprep.subr.mxu0 0.0
      %1097 = vmatpush2.msra.mxu0 0.0
      %1098 = vmatprep.subr.mxu0 0.0
      %1099 = vmatpush2.msra.mxu0 0.0
      %1100 = vmatprep.subr.mxu0 0.0
      %1101 = vmatpush2.msra.mxu0 0.0
      %1102 = vmatprep.mubr.f32.mxu0 0.0
      %1103 = vmatmul.mubr.f32.gmra.mxu0 %v1033
      %v1104 = vpop.f32.mrf.mxu0
      %v1105 = vadd.f32 0.0, %v1104
      %v1106 = vpop.f32.mrf.mxu0
      %1107 = vmatprep.mubr.f32.mxu0 0.0
      %1108 = vmatmul.mubr.f32.gmra.mxu0 %v1036
      %v1109 = vpop.f32.mrf.mxu0
      %v1110 = vadd.f32 0.0, %v1109
      %v1111 = vpop.f32.mrf.mxu0
      %1112 = vdwg.mxu0
      %s1113 = scalar_lea.vmem %s2, 768
      %v1114 = vld [vmem:[%s1113] sm:$0xff]
      %v1115 = vld [vmem:[%s1113 + $0x8] sm:$0xff]
      %v1116 = vld [vmem:[%s1113 + $0x10] sm:$0xff]
      %v1117 = vld [vmem:[%s1113 + $0x18] sm:$0xff]
      %v1118 = vld [vmem:[%s1113 + $0x20] sm:$0xff]
      %v1119 = vld [vmem:[%s1113 + $0x28] sm:$0xff]
      %v1120 = vld [vmem:[%s1113 + $0x30] sm:$0xff]
      %v1121 = vld [vmem:[%s1113 + $0x38] sm:$0xff]
      %v1122 = vld [vmem:[%s1113 + $0x40] sm:$0xff]
      %v1123 = vld [vmem:[%s1113 + $0x48] sm:$0xff]
      %v1124 = vld [vmem:[%s1113 + $0x50] sm:$0xff]
      %v1125 = vld [vmem:[%s1113 + $0x58] sm:$0xff]
      %v1126 = vld [vmem:[%s1113 + $0x60] sm:$0xff]
      %v1127 = vld [vmem:[%s1113 + $0x68] sm:$0xff]
      %v1128 = vld [vmem:[%s1113 + $0x70] sm:$0xff]
      %v1129 = vld [vmem:[%s1113 + $0x78] sm:$0xff]
      %v1130 = vld [vmem:[%s1113 + $0x80] sm:$0xff]
      %v1131 = vld [vmem:[%s1113 + $0x88] sm:$0xff]
      %v1132 = vld [vmem:[%s1113 + $0x90] sm:$0xff]
      %v1133 = vld [vmem:[%s1113 + $0x98] sm:$0xff]
      %v1134 = vld [vmem:[%s1113 + $0xa0] sm:$0xff]
      %v1135 = vld [vmem:[%s1113 + $0xa8] sm:$0xff]
      %v1136 = vld [vmem:[%s1113 + $0xb0] sm:$0xff]
      %v1137 = vld [vmem:[%s1113 + $0xb8] sm:$0xff]
      %v1138 = vld [vmem:[%s1113 + $0xc0] sm:$0xff]
      %v1139 = vld [vmem:[%s1113 + $0xc8] sm:$0xff]
      %v1140 = vld [vmem:[%s1113 + $0xd0] sm:$0xff]
      %v1141 = vld [vmem:[%s1113 + $0xd8] sm:$0xff]
      %v1142 = vld [vmem:[%s1113 + $0xe0] sm:$0xff]
      %v1143 = vld [vmem:[%s1113 + $0xe8] sm:$0xff]
      %v1144 = vld [vmem:[%s1113 + $0xf0] sm:$0xff]
      %v1145 = vld [vmem:[%s1113 + $0xf8] sm:$0xff]
      %v1146 = vld [vmem:[%s1113 + $0x100] sm:$0xff]
      %v1147 = vld [vmem:[%s1113 + $0x108] sm:$0xff]
      %v1148 = vld [vmem:[%s1113 + $0x110] sm:$0xff]
      %v1149 = vld [vmem:[%s1113 + $0x118] sm:$0xff]
      %v1150 = vld [vmem:[%s1113 + $0x120] sm:$0xff]
      %v1151 = vld [vmem:[%s1113 + $0x128] sm:$0xff]
      %v1152 = vld [vmem:[%s1113 + $0x130] sm:$0xff]
      %v1153 = vld [vmem:[%s1113 + $0x138] sm:$0xff]
      %v1154 = vld [vmem:[%s1113 + $0x140] sm:$0xff]
      %v1155 = vld [vmem:[%s1113 + $0x148] sm:$0xff]
      %v1156 = vld [vmem:[%s1113 + $0x150] sm:$0xff]
      %v1157 = vld [vmem:[%s1113 + $0x158] sm:$0xff]
      %v1158 = vld [vmem:[%s1113 + $0x160] sm:$0xff]
      %v1159 = vld [vmem:[%s1113 + $0x168] sm:$0xff]
      %v1160 = vld [vmem:[%s1113 + $0x170] sm:$0xff]
      %v1161 = vld [vmem:[%s1113 + $0x178] sm:$0xff]
      %v1163 = vsel %vm708, %v1105, 0
      %v1166 = vsel %vm708, %v1110, 0
      %1168 = vmatprep.subr.mxu0 0.0
      %1169 = vmatpush1.msra.mxu0 0.0
      %1170 = vmatprep.subr.mxu0 0.0
      %1171 = vmatpush1.msra.mxu0 0.0
      %1172 = vmatprep.subr.mxu0 0.0
      %1173 = vmatpush1.msra.mxu0 0.0
      %1174 = vmatprep.subr.mxu0 0.0
      %1175 = vmatpush1.msra.mxu0 0.0
      %1176 = vmatprep.subr.mxu0 %v1159
      %1177 = vmatpush1.msra.mxu0 %v1158
      %1178 = vmatprep.subr.mxu0 %v1155
      %1179 = vmatpush1.msra.mxu0 %v1154
      %1180 = vmatprep.subr.mxu0 %v1151
      %1181 = vmatpush1.msra.mxu0 %v1150
      %1182 = vmatprep.subr.mxu0 %v1147
      %1183 = vmatpush1.msra.mxu0 %v1146
      %1184 = vmatprep.subr.mxu0 %v1143
      %1185 = vmatpush1.msra.mxu0 %v1142
      %1186 = vmatprep.subr.mxu0 %v1139
      %1187 = vmatpush1.msra.mxu0 %v1138
      %1188 = vmatprep.subr.mxu0 %v1135
      %1189 = vmatpush1.msra.mxu0 %v1134
      %1190 = vmatprep.subr.mxu0 %v1131
      %1191 = vmatpush1.msra.mxu0 %v1130
      %1192 = vmatprep.subr.mxu0 %v1127
      %1193 = vmatpush1.msra.mxu0 %v1126
      %1194 = vmatprep.subr.mxu0 %v1123
      %1195 = vmatpush1.msra.mxu0 %v1122
      %1196 = vmatprep.subr.mxu0 %v1119
      %1197 = vmatpush1.msra.mxu0 %v1118
      %1198 = vmatprep.subr.mxu0 %v1115
      %1199 = vmatpush1.msra.mxu0 %v1114
      %1200 = vmatprep.subr.mxu0 0.0
      %1201 = vmatpush2.msra.mxu0 0.0
      %1202 = vmatprep.subr.mxu0 0.0
      %1203 = vmatpush2.msra.mxu0 0.0
      %1204 = vmatprep.subr.mxu0 0.0
      %1205 = vmatpush2.msra.mxu0 0.0
      %1206 = vmatprep.subr.mxu0 0.0
      %1207 = vmatpush2.msra.mxu0 0.0
      %1208 = vmatprep.subr.mxu0 0.0
      %1209 = vmatpush2.msra.mxu0 0.0
      %1210 = vmatprep.subr.mxu0 0.0
      %1211 = vmatpush2.msra.mxu0 0.0
      %1212 = vmatprep.subr.mxu0 0.0
      %1213 = vmatpush2.msra.mxu0 0.0
      %1214 = vmatprep.subr.mxu0 0.0
      %1215 = vmatpush2.msra.mxu0 0.0
      %1216 = vmatprep.subr.mxu0 0.0
      %1217 = vmatpush2.msra.mxu0 0.0
      %1218 = vmatprep.subr.mxu0 0.0
      %1219 = vmatpush2.msra.mxu0 0.0
      %1220 = vmatprep.subr.mxu0 0.0
      %1221 = vmatpush2.msra.mxu0 0.0
      %1222 = vmatprep.subr.mxu0 0.0
      %1223 = vmatpush2.msra.mxu0 0.0
      %1224 = vmatprep.subr.mxu0 0.0
      %1225 = vmatpush2.msra.mxu0 0.0
      %1226 = vmatprep.subr.mxu0 0.0
      %1227 = vmatpush2.msra.mxu0 0.0
      %1228 = vmatprep.subr.mxu0 0.0
      %1229 = vmatpush2.msra.mxu0 0.0
      %1230 = vmatprep.subr.mxu0 0.0
      %1231 = vmatpush2.msra.mxu0 0.0
      %1232 = vmatprep.mubr.f32.mxu0 0.0
      %1233 = vmatmul.mubr.f32.gmra.mxu0 %v1163
      %v1234 = vpop.f32.mrf.mxu0
      %v1235 = vadd.f32 0.0, %v1234
      %v1236 = vpop.f32.mrf.mxu0
      %v1237 = vadd.f32 0.0, %v1236
      %1238 = vmatprep.mubr.f32.mxu0 0.0
      %1239 = vmatmul.mubr.f32.gmra.mxu0 %v1166
      %v1240 = vpop.f32.mrf.mxu0
      %v1241 = vadd.f32 0.0, %v1240
      %v1242 = vpop.f32.mrf.mxu0
      %v1243 = vadd.f32 0.0, %v1242
      %1244 = vdwg.mxu0
      %1245 = vmatprep.subr.mxu0 0.0
      %1246 = vmatpush1.msra.mxu0 0.0
      %1247 = vmatprep.subr.mxu0 0.0
      %1248 = vmatpush1.msra.mxu0 0.0
      %1249 = vmatprep.subr.mxu0 0.0
      %1250 = vmatpush1.msra.mxu0 0.0
      %1251 = vmatprep.subr.mxu0 0.0
      %1252 = vmatpush1.msra.mxu0 0.0
      %1253 = vmatprep.subr.mxu0 %v1161
      %1254 = vmatpush1.msra.mxu0 %v1160
      %1255 = vmatprep.subr.mxu0 %v1157
      %1256 = vmatpush1.msra.mxu0 %v1156
      %1257 = vmatprep.subr.mxu0 %v1153
      %1258 = vmatpush1.msra.mxu0 %v1152
      %1259 = vmatprep.subr.mxu0 %v1149
      %1260 = vmatpush1.msra.mxu0 %v1148
      %1261 = vmatprep.subr.mxu0 %v1145
      %1262 = vmatpush1.msra.mxu0 %v1144
      %1263 = vmatprep.subr.mxu0 %v1141
      %1264 = vmatpush1.msra.mxu0 %v1140
      %1265 = vmatprep.subr.mxu0 %v1137
      %1266 = vmatpush1.msra.mxu0 %v1136
      %1267 = vmatprep.subr.mxu0 %v1133
      %1268 = vmatpush1.msra.mxu0 %v1132
      %1269 = vmatprep.subr.mxu0 %v1129
      %1270 = vmatpush1.msra.mxu0 %v1128
      %1271 = vmatprep.subr.mxu0 %v1125
      %1272 = vmatpush1.msra.mxu0 %v1124
      %1273 = vmatprep.subr.mxu0 %v1121
      %1274 = vmatpush1.msra.mxu0 %v1120
      %1275 = vmatprep.subr.mxu0 %v1117
      %1276 = vmatpush1.msra.mxu0 %v1116
      %1277 = vmatprep.subr.mxu0 0.0
      %1278 = vmatpush2.msra.mxu0 0.0
      %1279 = vmatprep.subr.mxu0 0.0
      %1280 = vmatpush2.msra.mxu0 0.0
      %1281 = vmatprep.subr.mxu0 0.0
      %1282 = vmatpush2.msra.mxu0 0.0
      %1283 = vmatprep.subr.mxu0 0.0
      %1284 = vmatpush2.msra.mxu0 0.0
      %1285 = vmatprep.subr.mxu0 0.0
      %1286 = vmatpush2.msra.mxu0 0.0
      %1287 = vmatprep.subr.mxu0 0.0
      %1288 = vmatpush2.msra.mxu0 0.0
      %1289 = vmatprep.subr.mxu0 0.0
      %1290 = vmatpush2.msra.mxu0 0.0
      %1291 = vmatprep.subr.mxu0 0.0
      %1292 = vmatpush2.msra.mxu0 0.0
      %1293 = vmatprep.subr.mxu0 0.0
      %1294 = vmatpush2.msra.mxu0 0.0
      %1295 = vmatprep.subr.mxu0 0.0
      %1296 = vmatpush2.msra.mxu0 0.0
      %1297 = vmatprep.subr.mxu0 0.0
      %1298 = vmatpush2.msra.mxu0 0.0
      %1299 = vmatprep.subr.mxu0 0.0
      %1300 = vmatpush2.msra.mxu0 0.0
      %1301 = vmatprep.subr.mxu0 0.0
      %1302 = vmatpush2.msra.mxu0 0.0
      %1303 = vmatprep.subr.mxu0 0.0
      %1304 = vmatpush2.msra.mxu0 0.0
      %1305 = vmatprep.subr.mxu0 0.0
      %1306 = vmatpush2.msra.mxu0 0.0
      %1307 = vmatprep.subr.mxu0 0.0
      %1308 = vmatpush2.msra.mxu0 0.0
      %1309 = vmatprep.mubr.f32.mxu0 0.0
      %1310 = vmatmul.mubr.f32.gmra.mxu0 %v1163
      %v1311 = vpop.f32.mrf.mxu0
      %v1312 = vadd.f32 0.0, %v1311
      %v1313 = vpop.f32.mrf.mxu0
      %v1314 = vadd.f32 0.0, %v1313
      %1315 = vmatprep.mubr.f32.mxu0 0.0
      %1316 = vmatmul.mubr.f32.gmra.mxu0 %v1166
      %v1317 = vpop.f32.mrf.mxu0
      %v1318 = vadd.f32 0.0, %v1317
      %v1319 = vpop.f32.mrf.mxu0
      %v1320 = vadd.f32 0.0, %v1319
      %1321 = vdwg.mxu0
      %v1322 = vadd.f32 %v942, %v1235
      %v1323 = vadd.f32 %v944, %v1237
      %v1324 = vadd.f32 %v1019, %v1312
      %v1325 = vadd.f32 %v1021, %v1314
      %v1326 = vadd.f32 %v948, %v1241
      %v1327 = vadd.f32 %v950, %v1243
      %v1328 = vadd.f32 %v1025, %v1318
      %v1329 = vadd.f32 %v1027, %v1320
      %s1330 = scalar_lea.vmem %s1, 48
      %v1331 = vld [vmem:[%s1330] sm:$0xff]
      %v1332 = vld [vmem:[%s1330 + $0x8] sm:$0xff]
      %v1334 = vsel %vm445, %v1331, 0
      %v1337 = vsel %vm445, %v1332, 0
      %1339 = vmatprep.subr.mxu0 0.0
      %1340 = vmatpush1.msra.mxu0 0.0
      %1341 = vmatprep.subr.mxu0 0.0
      %1342 = vmatpush1.msra.mxu0 0.0
      %1343 = vmatprep.subr.mxu0 0.0
      %1344 = vmatpush1.msra.mxu0 0.0
      %1345 = vmatprep.subr.mxu0 0.0
      %1346 = vmatpush1.msra.mxu0 0.0
      %1347 = vmatprep.subr.mxu0 0.0
      %1348 = vmatpush1.msra.mxu0 0.0
      %1349 = vmatprep.subr.mxu0 0.0
      %1350 = vmatpush1.msra.mxu0 0.0
      %1351 = vmatprep.subr.mxu0 0.0
      %1352 = vmatpush1.msra.mxu0 0.0
      %1353 = vmatprep.subr.mxu0 0.0
      %1354 = vmatpush1.msra.mxu0 0.0
      %1355 = vmatprep.subr.mxu0 0.0
      %1356 = vmatpush1.msra.mxu0 0.0
      %1357 = vmatprep.subr.mxu0 0.0
      %1358 = vmatpush1.msra.mxu0 0.0
      %1359 = vmatprep.subr.mxu0 0.0
      %1360 = vmatpush1.msra.mxu0 0.0
      %1361 = vmatprep.subr.mxu0 0.0
      %1362 = vmatpush1.msra.mxu0 0.0
      %1363 = vmatprep.subr.mxu0 0.0
      %1364 = vmatpush1.msra.mxu0 %v442
      %1365 = vmatprep.subr.mxu0 0.0
      %1366 = vmatpush1.msra.mxu0 %v441
      %1367 = vmatprep.subr.mxu0 0.0
      %1368 = vmatpush1.msra.mxu0 %v440
      %1369 = vmatprep.subr.mxu0 0.0
      %1370 = vmatpush1.msra.mxu0 %v439
      %1371 = vmatprep.subr.mxu0 0.0
      %1372 = vmatpush2.msra.mxu0 0.0
      %1373 = vmatprep.subr.mxu0 0.0
      %1374 = vmatpush2.msra.mxu0 0.0
      %1375 = vmatprep.subr.mxu0 0.0
      %1376 = vmatpush2.msra.mxu0 0.0
      %1377 = vmatprep.subr.mxu0 0.0
      %1378 = vmatpush2.msra.mxu0 0.0
      %1379 = vmatprep.subr.mxu0 0.0
      %1380 = vmatpush2.msra.mxu0 0.0
      %1381 = vmatprep.subr.mxu0 0.0
      %1382 = vmatpush2.msra.mxu0 0.0
      %1383 = vmatprep.subr.mxu0 0.0
      %1384 = vmatpush2.msra.mxu0 0.0
      %1385 = vmatprep.subr.mxu0 0.0
      %1386 = vmatpush2.msra.mxu0 0.0
      %1387 = vmatprep.subr.mxu0 0.0
      %1388 = vmatpush2.msra.mxu0 0.0
      %1389 = vmatprep.subr.mxu0 0.0
      %1390 = vmatpush2.msra.mxu0 0.0
      %1391 = vmatprep.subr.mxu0 0.0
      %1392 = vmatpush2.msra.mxu0 0.0
      %1393 = vmatprep.subr.mxu0 0.0
      %1394 = vmatpush2.msra.mxu0 0.0
      %1395 = vmatprep.subr.mxu0 0.0
      %1396 = vmatpush2.msra.mxu0 0.0
      %1397 = vmatprep.subr.mxu0 0.0
      %1398 = vmatpush2.msra.mxu0 0.0
      %1399 = vmatprep.subr.mxu0 0.0
      %1400 = vmatpush2.msra.mxu0 0.0
      %1401 = vmatprep.subr.mxu0 0.0
      %1402 = vmatpush2.msra.mxu0 0.0
      %1403 = vmatprep.mubr.f32.mxu0 0.0
      %1404 = vmatmul.mubr.f32.gmra.mxu0 %v1334
      %v1405 = vpop.f32.mrf.mxu0
      %v1406 = vadd.f32 0.0, %v1405
      %v1407 = vpop.f32.mrf.mxu0
      %1408 = vmatprep.mubr.f32.mxu0 0.0
      %1409 = vmatmul.mubr.f32.gmra.mxu0 %v1337
      %v1410 = vpop.f32.mrf.mxu0
      %v1411 = vadd.f32 0.0, %v1410
      %v1412 = vpop.f32.mrf.mxu0
      %1413 = vdwg.mxu0
      %s1414 = scalar_lea.vmem %s2, 1152
      %v1415 = vld [vmem:[%s1414] sm:$0xff]
      %v1416 = vld [vmem:[%s1414 + $0x8] sm:$0xff]
      %v1417 = vld [vmem:[%s1414 + $0x10] sm:$0xff]
      %v1418 = vld [vmem:[%s1414 + $0x18] sm:$0xff]
      %v1419 = vld [vmem:[%s1414 + $0x20] sm:$0xff]
      %v1420 = vld [vmem:[%s1414 + $0x28] sm:$0xff]
      %v1421 = vld [vmem:[%s1414 + $0x30] sm:$0xff]
      %v1422 = vld [vmem:[%s1414 + $0x38] sm:$0xff]
      %v1423 = vld [vmem:[%s1414 + $0x40] sm:$0xff]
      %v1424 = vld [vmem:[%s1414 + $0x48] sm:$0xff]
      %v1425 = vld [vmem:[%s1414 + $0x50] sm:$0xff]
      %v1426 = vld [vmem:[%s1414 + $0x58] sm:$0xff]
      %v1427 = vld [vmem:[%s1414 + $0x60] sm:$0xff]
      %v1428 = vld [vmem:[%s1414 + $0x68] sm:$0xff]
      %v1429 = vld [vmem:[%s1414 + $0x70] sm:$0xff]
      %v1430 = vld [vmem:[%s1414 + $0x78] sm:$0xff]
      %v1431 = vld [vmem:[%s1414 + $0x80] sm:$0xff]
      %v1432 = vld [vmem:[%s1414 + $0x88] sm:$0xff]
      %v1433 = vld [vmem:[%s1414 + $0x90] sm:$0xff]
      %v1434 = vld [vmem:[%s1414 + $0x98] sm:$0xff]
      %v1435 = vld [vmem:[%s1414 + $0xa0] sm:$0xff]
      %v1436 = vld [vmem:[%s1414 + $0xa8] sm:$0xff]
      %v1437 = vld [vmem:[%s1414 + $0xb0] sm:$0xff]
      %v1438 = vld [vmem:[%s1414 + $0xb8] sm:$0xff]
      %v1439 = vld [vmem:[%s1414 + $0xc0] sm:$0xff]
      %v1440 = vld [vmem:[%s1414 + $0xc8] sm:$0xff]
      %v1441 = vld [vmem:[%s1414 + $0xd0] sm:$0xff]
      %v1442 = vld [vmem:[%s1414 + $0xd8] sm:$0xff]
      %v1443 = vld [vmem:[%s1414 + $0xe0] sm:$0xff]
      %v1444 = vld [vmem:[%s1414 + $0xe8] sm:$0xff]
      %v1445 = vld [vmem:[%s1414 + $0xf0] sm:$0xff]
      %v1446 = vld [vmem:[%s1414 + $0xf8] sm:$0xff]
      %v1447 = vld [vmem:[%s1414 + $0x100] sm:$0xff]
      %v1448 = vld [vmem:[%s1414 + $0x108] sm:$0xff]
      %v1449 = vld [vmem:[%s1414 + $0x110] sm:$0xff]
      %v1450 = vld [vmem:[%s1414 + $0x118] sm:$0xff]
      %v1451 = vld [vmem:[%s1414 + $0x120] sm:$0xff]
      %v1452 = vld [vmem:[%s1414 + $0x128] sm:$0xff]
      %v1453 = vld [vmem:[%s1414 + $0x130] sm:$0xff]
      %v1454 = vld [vmem:[%s1414 + $0x138] sm:$0xff]
      %v1455 = vld [vmem:[%s1414 + $0x140] sm:$0xff]
      %v1456 = vld [vmem:[%s1414 + $0x148] sm:$0xff]
      %v1457 = vld [vmem:[%s1414 + $0x150] sm:$0xff]
      %v1458 = vld [vmem:[%s1414 + $0x158] sm:$0xff]
      %v1459 = vld [vmem:[%s1414 + $0x160] sm:$0xff]
      %v1460 = vld [vmem:[%s1414 + $0x168] sm:$0xff]
      %v1461 = vld [vmem:[%s1414 + $0x170] sm:$0xff]
      %v1462 = vld [vmem:[%s1414 + $0x178] sm:$0xff]
      %v1464 = vsel %vm708, %v1406, 0
      %v1467 = vsel %vm708, %v1411, 0
      %1469 = vmatprep.subr.mxu0 0.0
      %1470 = vmatpush1.msra.mxu0 0.0
      %1471 = vmatprep.subr.mxu0 0.0
      %1472 = vmatpush1.msra.mxu0 0.0
      %1473 = vmatprep.subr.mxu0 0.0
      %1474 = vmatpush1.msra.mxu0 0.0
      %1475 = vmatprep.subr.mxu0 0.0
      %1476 = vmatpush1.msra.mxu0 0.0
      %1477 = vmatprep.subr.mxu0 %v1460
      %1478 = vmatpush1.msra.mxu0 %v1459
      %1479 = vmatprep.subr.mxu0 %v1456
      %1480 = vmatpush1.msra.mxu0 %v1455
      %1481 = vmatprep.subr.mxu0 %v1452
      %1482 = vmatpush1.msra.mxu0 %v1451
      %1483 = vmatprep.subr.mxu0 %v1448
      %1484 = vmatpush1.msra.mxu0 %v1447
      %1485 = vmatprep.subr.mxu0 %v1444
      %1486 = vmatpush1.msra.mxu0 %v1443
      %1487 = vmatprep.subr.mxu0 %v1440
      %1488 = vmatpush1.msra.mxu0 %v1439
      %1489 = vmatprep.subr.mxu0 %v1436
      %1490 = vmatpush1.msra.mxu0 %v1435
      %1491 = vmatprep.subr.mxu0 %v1432
      %1492 = vmatpush1.msra.mxu0 %v1431
      %1493 = vmatprep.subr.mxu0 %v1428
      %1494 = vmatpush1.msra.mxu0 %v1427
      %1495 = vmatprep.subr.mxu0 %v1424
      %1496 = vmatpush1.msra.mxu0 %v1423
      %1497 = vmatprep.subr.mxu0 %v1420
      %1498 = vmatpush1.msra.mxu0 %v1419
      %1499 = vmatprep.subr.mxu0 %v1416
      %1500 = vmatpush1.msra.mxu0 %v1415
      %1501 = vmatprep.subr.mxu0 0.0
      %1502 = vmatpush2.msra.mxu0 0.0
      %1503 = vmatprep.subr.mxu0 0.0
      %1504 = vmatpush2.msra.mxu0 0.0
      %1505 = vmatprep.subr.mxu0 0.0
      %1506 = vmatpush2.msra.mxu0 0.0
      %1507 = vmatprep.subr.mxu0 0.0
      %1508 = vmatpush2.msra.mxu0 0.0
      %1509 = vmatprep.subr.mxu0 0.0
      %1510 = vmatpush2.msra.mxu0 0.0
      %1511 = vmatprep.subr.mxu0 0.0
      %1512 = vmatpush2.msra.mxu0 0.0
      %1513 = vmatprep.subr.mxu0 0.0
      %1514 = vmatpush2.msra.mxu0 0.0
      %1515 = vmatprep.subr.mxu0 0.0
      %1516 = vmatpush2.msra.mxu0 0.0
      %1517 = vmatprep.subr.mxu0 0.0
      %1518 = vmatpush2.msra.mxu0 0.0
      %1519 = vmatprep.subr.mxu0 0.0
      %1520 = vmatpush2.msra.mxu0 0.0
      %1521 = vmatprep.subr.mxu0 0.0
      %1522 = vmatpush2.msra.mxu0 0.0
      %1523 = vmatprep.subr.mxu0 0.0
      %1524 = vmatpush2.msra.mxu0 0.0
      %1525 = vmatprep.subr.mxu0 0.0
      %1526 = vmatpush2.msra.mxu0 0.0
      %1527 = vmatprep.subr.mxu0 0.0
      %1528 = vmatpush2.msra.mxu0 0.0
      %1529 = vmatprep.subr.mxu0 0.0
      %1530 = vmatpush2.msra.mxu0 0.0
      %1531 = vmatprep.subr.mxu0 0.0
      %1532 = vmatpush2.msra.mxu0 0.0
      %1533 = vmatprep.mubr.f32.mxu0 0.0
      %1534 = vmatmul.mubr.f32.gmra.mxu0 %v1464
      %v1535 = vpop.f32.mrf.mxu0
      %v1536 = vadd.f32 0.0, %v1535
      %v1537 = vpop.f32.mrf.mxu0
      %v1538 = vadd.f32 0.0, %v1537
      %1539 = vmatprep.mubr.f32.mxu0 0.0
      %1540 = vmatmul.mubr.f32.gmra.mxu0 %v1467
      %v1541 = vpop.f32.mrf.mxu0
      %v1542 = vadd.f32 0.0, %v1541
      %v1543 = vpop.f32.mrf.mxu0
      %v1544 = vadd.f32 0.0, %v1543
      %1545 = vdwg.mxu0
      %1546 = vmatprep.subr.mxu0 0.0
      %1547 = vmatpush1.msra.mxu0 0.0
      %1548 = vmatprep.subr.mxu0 0.0
      %1549 = vmatpush1.msra.mxu0 0.0
      %1550 = vmatprep.subr.mxu0 0.0
      %1551 = vmatpush1.msra.mxu0 0.0
      %1552 = vmatprep.subr.mxu0 0.0
      %1553 = vmatpush1.msra.mxu0 0.0
      %1554 = vmatprep.subr.mxu0 %v1462
      %1555 = vmatpush1.msra.mxu0 %v1461
      %1556 = vmatprep.subr.mxu0 %v1458
      %1557 = vmatpush1.msra.mxu0 %v1457
      %1558 = vmatprep.subr.mxu0 %v1454
      %1559 = vmatpush1.msra.mxu0 %v1453
      %1560 = vmatprep.subr.mxu0 %v1450
      %1561 = vmatpush1.msra.mxu0 %v1449
      %1562 = vmatprep.subr.mxu0 %v1446
      %1563 = vmatpush1.msra.mxu0 %v1445
      %1564 = vmatprep.subr.mxu0 %v1442
      %1565 = vmatpush1.msra.mxu0 %v1441
      %1566 = vmatprep.subr.mxu0 %v1438
      %1567 = vmatpush1.msra.mxu0 %v1437
      %1568 = vmatprep.subr.mxu0 %v1434
      %1569 = vmatpush1.msra.mxu0 %v1433
      %1570 = vmatprep.subr.mxu0 %v1430
      %1571 = vmatpush1.msra.mxu0 %v1429
      %1572 = vmatprep.subr.mxu0 %v1426
      %1573 = vmatpush1.msra.mxu0 %v1425
      %1574 = vmatprep.subr.mxu0 %v1422
      %1575 = vmatpush1.msra.mxu0 %v1421
      %1576 = vmatprep.subr.mxu0 %v1418
      %1577 = vmatpush1.msra.mxu0 %v1417
      %1578 = vmatprep.subr.mxu0 0.0
      %1579 = vmatpush2.msra.mxu0 0.0
      %1580 = vmatprep.subr.mxu0 0.0
      %1581 = vmatpush2.msra.mxu0 0.0
      %1582 = vmatprep.subr.mxu0 0.0
      %1583 = vmatpush2.msra.mxu0 0.0
      %1584 = vmatprep.subr.mxu0 0.0
      %1585 = vmatpush2.msra.mxu0 0.0
      %1586 = vmatprep.subr.mxu0 0.0
      %1587 = vmatpush2.msra.mxu0 0.0
      %1588 = vmatprep.subr.mxu0 0.0
      %1589 = vmatpush2.msra.mxu0 0.0
      %1590 = vmatprep.subr.mxu0 0.0
      %1591 = vmatpush2.msra.mxu0 0.0
      %1592 = vmatprep.subr.mxu0 0.0
      %1593 = vmatpush2.msra.mxu0 0.0
      %1594 = vmatprep.subr.mxu0 0.0
      %1595 = vmatpush2.msra.mxu0 0.0
      %1596 = vmatprep.subr.mxu0 0.0
      %1597 = vmatpush2.msra.mxu0 0.0
      %1598 = vmatprep.subr.mxu0 0.0
      %1599 = vmatpush2.msra.mxu0 0.0
      %1600 = vmatprep.subr.mxu0 0.0
      %1601 = vmatpush2.msra.mxu0 0.0
      %1602 = vmatprep.subr.mxu0 0.0
      %1603 = vmatpush2.msra.mxu0 0.0
      %1604 = vmatprep.subr.mxu0 0.0
      %1605 = vmatpush2.msra.mxu0 0.0
      %1606 = vmatprep.subr.mxu0 0.0
      %1607 = vmatpush2.msra.mxu0 0.0
      %1608 = vmatprep.subr.mxu0 0.0
      %1609 = vmatpush2.msra.mxu0 0.0
      %1610 = vmatprep.mubr.f32.mxu0 0.0
      %1611 = vmatmul.mubr.f32.gmra.mxu0 %v1464
      %v1612 = vpop.f32.mrf.mxu0
      %v1613 = vadd.f32 0.0, %v1612
      %v1614 = vpop.f32.mrf.mxu0
      %v1615 = vadd.f32 0.0, %v1614
      %1616 = vmatprep.mubr.f32.mxu0 0.0
      %1617 = vmatmul.mubr.f32.gmra.mxu0 %v1467
      %v1618 = vpop.f32.mrf.mxu0
      %v1619 = vadd.f32 0.0, %v1618
      %v1620 = vpop.f32.mrf.mxu0
      %v1621 = vadd.f32 0.0, %v1620
      %1622 = vdwg.mxu0
      %v1623 = vadd.f32 %v1322, %v1536
      %v1624 = vadd.f32 %v1323, %v1538
      %v1625 = vadd.f32 %v1324, %v1613
      %v1626 = vadd.f32 %v1325, %v1615
      %v1627 = vadd.f32 %v1326, %v1542
      %v1628 = vadd.f32 %v1327, %v1544
      %v1629 = vadd.f32 %v1328, %v1619
      %v1630 = vadd.f32 %v1329, %v1621
      %v1631 = vld [vmem:[%s3] sm:$0xf]
      %v1633 = vlaneseq
      %v1634 = vshrl.u32 %v1633, 7
      %v1635 = vsub.s32 0, %v1634
      %v1636 = vrot.slane %v1631, %v1635
      %v1637 = vlaneseq
      %v1638 = vshrl.u32 %v1637, 7
      %v1639 = vsub.s32 1, %v1638
      %v1640 = vrot.slane %v1631, %v1639
      %v1641 = vlaneseq
      %v1642 = vshrl.u32 %v1641, 7
      %v1643 = vsub.s32 2, %v1642
      %v1644 = vrot.slane %v1631, %v1643
      %v1645 = vlaneseq
      %v1646 = vshrl.u32 %v1645, 7
      %v1647 = vsub.s32 3, %v1646
      %v1648 = vrot.slane %v1631, %v1647
      %v1653 = vadd.f32 %v1623, %v1636
      %v1654 = vadd.f32 %v1624, %v1640
      %v1655 = vadd.f32 %v1625, %v1644
      %v1656 = vadd.f32 %v1626, %v1648
      %v1657 = vadd.f32 %v1627, %v1636
      %v1658 = vadd.f32 %v1628, %v1640
      %v1659 = vadd.f32 %v1629, %v1644
      %v1660 = vadd.f32 %v1630, %v1648
      %v1661 = vmax.f32 %v1653, 0.0
      %v1662 = vmax.f32 %v1654, 0.0
      %v1663 = vmax.f32 %v1655, 0.0
      %v1664 = vmax.f32 %v1656, 0.0
      %v1665 = vmax.f32 %v1657, 0.0
      %v1666 = vmax.f32 %v1658, 0.0
      %v1667 = vmax.f32 %v1659, 0.0
      %v1668 = vmax.f32 %v1660, 0.0
      %v1669 = vld [vmem:[%s4] sm:$0xff]
      %vm1670 = vcmask 130048
      %v1672 = vsel %vm1670, %v1669, 0
      %1674 = vmatprep.subr.mxu0 0.0
      %1675 = vmatpush1.msra.mxu0 0.0
      %1676 = vmatprep.subr.mxu0 0.0
      %1677 = vmatpush1.msra.mxu0 0.0
      %1678 = vmatprep.subr.mxu0 0.0
      %1679 = vmatpush1.msra.mxu0 0.0
      %1680 = vmatprep.subr.mxu0 0.0
      %1681 = vmatpush1.msra.mxu0 0.0
      %1682 = vmatprep.subr.mxu0 0.0
      %1683 = vmatpush1.msra.mxu0 0.0
      %1684 = vmatprep.subr.mxu0 0.0
      %1685 = vmatpush1.msra.mxu0 0.0
      %1686 = vmatprep.subr.mxu0 0.0
      %1687 = vmatpush1.msra.mxu0 0.0
      %1688 = vmatprep.subr.mxu0 0.0
      %1689 = vmatpush1.msra.mxu0 0.0
      %1690 = vmatprep.subr.mxu0 0.0
      %1691 = vmatpush1.msra.mxu0 0.0
      %1692 = vmatprep.subr.mxu0 0.0
      %1693 = vmatpush1.msra.mxu0 0.0
      %1694 = vmatprep.subr.mxu0 0.0
      %1695 = vmatpush1.msra.mxu0 0.0
      %1696 = vmatprep.subr.mxu0 0.0
      %1697 = vmatpush1.msra.mxu0 0.0
      %1698 = vmatprep.subr.mxu0 0.0
      %1699 = vmatpush1.msra.mxu0 0.0
      %1700 = vmatprep.subr.mxu0 0.0
      %1701 = vmatpush1.msra.mxu0 0.0
      %1702 = vmatprep.subr.mxu0 %v1666
      %1703 = vmatpush1.msra.mxu0 %v1665
      %1704 = vmatprep.subr.mxu0 %v1662
      %1705 = vmatpush1.msra.mxu0 %v1661
      %1706 = vmatprep.subr.mxu0 0.0
      %1707 = vmatpush2.msra.mxu0 0.0
      %1708 = vmatprep.subr.mxu0 0.0
      %1709 = vmatpush2.msra.mxu0 0.0
      %1710 = vmatprep.subr.mxu0 0.0
      %1711 = vmatpush2.msra.mxu0 0.0
      %1712 = vmatprep.subr.mxu0 0.0
      %1713 = vmatpush2.msra.mxu0 0.0
      %1714 = vmatprep.subr.mxu0 0.0
      %1715 = vmatpush2.msra.mxu0 0.0
      %1716 = vmatprep.subr.mxu0 0.0
      %1717 = vmatpush2.msra.mxu0 0.0
      %1718 = vmatprep.subr.mxu0 0.0
      %1719 = vmatpush2.msra.mxu0 0.0
      %1720 = vmatprep.subr.mxu0 0.0
      %1721 = vmatpush2.msra.mxu0 0.0
      %1722 = vmatprep.subr.mxu0 0.0
      %1723 = vmatpush2.msra.mxu0 0.0
      %1724 = vmatprep.subr.mxu0 0.0
      %1725 = vmatpush2.msra.mxu0 0.0
      %1726 = vmatprep.subr.mxu0 0.0
      %1727 = vmatpush2.msra.mxu0 0.0
      %1728 = vmatprep.subr.mxu0 0.0
      %1729 = vmatpush2.msra.mxu0 0.0
      %1730 = vmatprep.subr.mxu0 0.0
      %1731 = vmatpush2.msra.mxu0 0.0
      %1732 = vmatprep.subr.mxu0 0.0
      %1733 = vmatpush2.msra.mxu0 0.0
      %1734 = vmatprep.subr.mxu0 0.0
      %1735 = vmatpush2.msra.mxu0 0.0
      %1736 = vmatprep.subr.mxu0 0.0
      %1737 = vmatpush2.msra.mxu0 0.0
      %1738 = vmatprep.mubr.f32.mxu0 0.0
      %1739 = vmatmul.mubr.f32.gmra.mxu0 %v1672
      %v1740 = vpop.f32.mrf.mxu0
      %v1741 = vadd.f32 0.0, %v1740
      %v1742 = vpop.f32.mrf.mxu0
      %v1743 = vadd.f32 0.0, %v1742
      %1744 = vdwg.mxu0
      %1745 = vmatprep.subr.mxu0 0.0
      %1746 = vmatpush1.msra.mxu0 0.0
      %1747 = vmatprep.subr.mxu0 0.0
      %1748 = vmatpush1.msra.mxu0 0.0
      %1749 = vmatprep.subr.mxu0 0.0
      %1750 = vmatpush1.msra.mxu0 0.0
      %1751 = vmatprep.subr.mxu0 0.0
      %1752 = vmatpush1.msra.mxu0 0.0
      %1753 = vmatprep.subr.mxu0 0.0
      %1754 = vmatpush1.msra.mxu0 0.0
      %1755 = vmatprep.subr.mxu0 0.0
      %1756 = vmatpush1.msra.mxu0 0.0
      %1757 = vmatprep.subr.mxu0 0.0
      %1758 = vmatpush1.msra.mxu0 0.0
      %1759 = vmatprep.subr.mxu0 0.0
      %1760 = vmatpush1.msra.mxu0 0.0
      %1761 = vmatprep.subr.mxu0 0.0
      %1762 = vmatpush1.msra.mxu0 0.0
      %1763 = vmatprep.subr.mxu0 0.0
      %1764 = vmatpush1.msra.mxu0 0.0
      %1765 = vmatprep.subr.mxu0 0.0
      %1766 = vmatpush1.msra.mxu0 0.0
      %1767 = vmatprep.subr.mxu0 0.0
      %1768 = vmatpush1.msra.mxu0 0.0
      %1769 = vmatprep.subr.mxu0 0.0
      %1770 = vmatpush1.msra.mxu0 0.0
      %1771 = vmatprep.subr.mxu0 0.0
      %1772 = vmatpush1.msra.mxu0 0.0
      %1773 = vmatprep.subr.mxu0 %v1668
      %1774 = vmatpush1.msra.mxu0 %v1667
      %1775 = vmatprep.subr.mxu0 %v1664
      %1776 = vmatpush1.msra.mxu0 %v1663
      %1777 = vmatprep.subr.mxu0 0.0
      %1778 = vmatpush2.msra.mxu0 0.0
      %1779 = vmatprep.subr.mxu0 0.0
      %1780 = vmatpush2.msra.mxu0 0.0
      %1781 = vmatprep.subr.mxu0 0.0
      %1782 = vmatpush2.msra.mxu0 0.0
      %1783 = vmatprep.subr.mxu0 0.0
      %1784 = vmatpush2.msra.mxu0 0.0
      %1785 = vmatprep.subr.mxu0 0.0
      %1786 = vmatpush2.msra.mxu0 0.0
      %1787 = vmatprep.subr.mxu0 0.0
      %1788 = vmatpush2.msra.mxu0 0.0
      %1789 = vmatprep.subr.mxu0 0.0
      %1790 = vmatpush2.msra.mxu0 0.0
      %1791 = vmatprep.subr.mxu0 0.0
      %1792 = vmatpush2.msra.mxu0 0.0
      %1793 = vmatprep.subr.mxu0 0.0
      %1794 = vmatpush2.msra.mxu0 0.0
      %1795 = vmatprep.subr.mxu0 0.0
      %1796 = vmatpush2.msra.mxu0 0.0
      %1797 = vmatprep.subr.mxu0 0.0
      %1798 = vmatpush2.msra.mxu0 0.0
      %1799 = vmatprep.subr.mxu0 0.0
      %1800 = vmatpush2.msra.mxu0 0.0
      %1801 = vmatprep.subr.mxu0 0.0
      %1802 = vmatpush2.msra.mxu0 0.0
      %1803 = vmatprep.subr.mxu0 0.0
      %1804 = vmatpush2.msra.mxu0 0.0
      %1805 = vmatprep.subr.mxu0 0.0
      %1806 = vmatpush2.msra.mxu0 0.0
      %1807 = vmatprep.subr.mxu0 0.0
      %1808 = vmatpush2.msra.mxu0 0.0
      %1809 = vmatprep.mubr.f32.mxu0 0.0
      %1810 = vmatmul.mubr.f32.gmra.mxu0 %v1672
      %v1811 = vpop.f32.mrf.mxu0
      %v1812 = vadd.f32 0.0, %v1811
      %v1813 = vpop.f32.mrf.mxu0
      %v1814 = vadd.f32 0.0, %v1813
      %1815 = vdwg.mxu0
      %v1816 = vld [vmem:[%s5] sm:$0xff]
      %v1817 = vld [vmem:[%s5 + $0x8] sm:$0xff]
      %v1818 = vld [vmem:[%s5 + $0x10] sm:$0xff]
      %v1819 = vld [vmem:[%s5 + $0x18] sm:$0xff]
      %v1820 = vld [vmem:[%s5 + $0x20] sm:$0xff]
      %v1821 = vld [vmem:[%s5 + $0x28] sm:$0xff]
      %v1822 = vld [vmem:[%s5 + $0x30] sm:$0xff]
      %v1823 = vld [vmem:[%s5 + $0x38] sm:$0xff]
      %v1824 = vld [vmem:[%s5 + $0x40] sm:$0xff]
      %v1825 = vld [vmem:[%s5 + $0x48] sm:$0xff]
      %v1826 = vld [vmem:[%s5 + $0x50] sm:$0xff]
      %v1827 = vld [vmem:[%s5 + $0x58] sm:$0xff]
      %v1828 = vld [vmem:[%s5 + $0x60] sm:$0xff]
      %v1829 = vld [vmem:[%s5 + $0x68] sm:$0xff]
      %v1830 = vld [vmem:[%s5 + $0x70] sm:$0xff]
      %v1831 = vld [vmem:[%s5 + $0x78] sm:$0xff]
      %v1832 = vld [vmem:[%s5 + $0x80] sm:$0xff]
      %v1833 = vld [vmem:[%s5 + $0x88] sm:$0xff]
      %v1834 = vld [vmem:[%s5 + $0x90] sm:$0xff]
      %v1835 = vld [vmem:[%s5 + $0x98] sm:$0xff]
      %v1836 = vld [vmem:[%s5 + $0xa0] sm:$0xff]
      %v1837 = vld [vmem:[%s5 + $0xa8] sm:$0xff]
      %v1838 = vld [vmem:[%s5 + $0xb0] sm:$0xff]
      %v1839 = vld [vmem:[%s5 + $0xb8] sm:$0xff]
      %v1840 = vld [vmem:[%s5 + $0xc0] sm:$0xff]
      %v1841 = vld [vmem:[%s5 + $0xc8] sm:$0xff]
      %v1842 = vld [vmem:[%s5 + $0xd0] sm:$0xff]
      %v1843 = vld [vmem:[%s5 + $0xd8] sm:$0xff]
      %v1844 = vld [vmem:[%s5 + $0xe0] sm:$0xff]
      %v1845 = vld [vmem:[%s5 + $0xe8] sm:$0xff]
      %v1846 = vld [vmem:[%s5 + $0xf0] sm:$0xff]
      %v1847 = vld [vmem:[%s5 + $0xf8] sm:$0xff]
      %v1848 = vld [vmem:[%s5 + $0x100] sm:$0xff]
      %v1849 = vld [vmem:[%s5 + $0x108] sm:$0xff]
      %v1850 = vld [vmem:[%s5 + $0x110] sm:$0xff]
      %v1851 = vld [vmem:[%s5 + $0x118] sm:$0xff]
      %v1852 = vld [vmem:[%s5 + $0x120] sm:$0xff]
      %v1853 = vld [vmem:[%s5 + $0x128] sm:$0xff]
      %v1854 = vld [vmem:[%s5 + $0x130] sm:$0xff]
      %v1855 = vld [vmem:[%s5 + $0x138] sm:$0xff]
      %v1856 = vld [vmem:[%s5 + $0x140] sm:$0xff]
      %v1857 = vld [vmem:[%s5 + $0x148] sm:$0xff]
      %v1858 = vld [vmem:[%s5 + $0x150] sm:$0xff]
      %v1859 = vld [vmem:[%s5 + $0x158] sm:$0xff]
      %v1860 = vld [vmem:[%s5 + $0x160] sm:$0xff]
      %v1861 = vld [vmem:[%s5 + $0x168] sm:$0xff]
      %v1862 = vld [vmem:[%s5 + $0x170] sm:$0xff]
      %v1863 = vld [vmem:[%s5 + $0x178] sm:$0xff]
      %v1864 = vld [vmem:[%s5 + $0x180] sm:$0xff]
      %v1865 = vld [vmem:[%s5 + $0x188] sm:$0xff]
      %v1866 = vld [vmem:[%s5 + $0x190] sm:$0xff]
      %v1867 = vld [vmem:[%s5 + $0x198] sm:$0xff]
      %v1868 = vld [vmem:[%s5 + $0x1a0] sm:$0xff]
      %v1869 = vld [vmem:[%s5 + $0x1a8] sm:$0xff]
      %v1870 = vld [vmem:[%s5 + $0x1b0] sm:$0xff]
      %v1871 = vld [vmem:[%s5 + $0x1b8] sm:$0xff]
      %v1872 = vld [vmem:[%s5 + $0x1c0] sm:$0xff]
      %v1873 = vld [vmem:[%s5 + $0x1c8] sm:$0xff]
      %v1874 = vld [vmem:[%s5 + $0x1d0] sm:$0xff]
      %v1875 = vld [vmem:[%s5 + $0x1d8] sm:$0xff]
      %v1876 = vld [vmem:[%s5 + $0x1e0] sm:$0xff]
      %v1877 = vld [vmem:[%s5 + $0x1e8] sm:$0xff]
      %v1878 = vld [vmem:[%s5 + $0x1f0] sm:$0xff]
      %v1879 = vld [vmem:[%s5 + $0x1f8] sm:$0xff]
      %v1880 = vld [vmem:[%s5 + $0x200] sm:$0xff]
      %v1881 = vld [vmem:[%s5 + $0x208] sm:$0xff]
      %v1882 = vld [vmem:[%s5 + $0x210] sm:$0xff]
      %v1883 = vld [vmem:[%s5 + $0x218] sm:$0xff]
      %v1884 = vld [vmem:[%s5 + $0x220] sm:$0xff]
      %v1885 = vld [vmem:[%s5 + $0x228] sm:$0xff]
      %v1886 = vld [vmem:[%s5 + $0x230] sm:$0xff]
      %v1887 = vld [vmem:[%s5 + $0x238] sm:$0xff]
      %v1888 = vld [vmem:[%s5 + $0x240] sm:$0xff]
      %v1889 = vld [vmem:[%s5 + $0x248] sm:$0xff]
      %v1890 = vld [vmem:[%s5 + $0x250] sm:$0xff]
      %v1891 = vld [vmem:[%s5 + $0x258] sm:$0xff]
      %v1892 = vld [vmem:[%s5 + $0x260] sm:$0xff]
      %v1893 = vld [vmem:[%s5 + $0x268] sm:$0xff]
      %v1894 = vld [vmem:[%s5 + $0x270] sm:$0xff]
      %v1895 = vld [vmem:[%s5 + $0x278] sm:$0xff]
      %v1896 = vld [vmem:[%s5 + $0x280] sm:$0xff]
      %v1897 = vld [vmem:[%s5 + $0x288] sm:$0xff]
      %v1898 = vld [vmem:[%s5 + $0x290] sm:$0xff]
      %v1899 = vld [vmem:[%s5 + $0x298] sm:$0xff]
      %v1900 = vld [vmem:[%s5 + $0x2a0] sm:$0xff]
      %v1901 = vld [vmem:[%s5 + $0x2a8] sm:$0xff]
      %v1902 = vld [vmem:[%s5 + $0x2b0] sm:$0xff]
      %v1903 = vld [vmem:[%s5 + $0x2b8] sm:$0xff]
      %v1904 = vld [vmem:[%s5 + $0x2c0] sm:$0xff]
      %v1905 = vld [vmem:[%s5 + $0x2c8] sm:$0xff]
      %v1906 = vld [vmem:[%s5 + $0x2d0] sm:$0xff]
      %v1907 = vld [vmem:[%s5 + $0x2d8] sm:$0xff]
      %v1908 = vld [vmem:[%s5 + $0x2e0] sm:$0xff]
      %v1909 = vld [vmem:[%s5 + $0x2e8] sm:$0xff]
      %v1910 = vld [vmem:[%s5 + $0x2f0] sm:$0xff]
      %v1911 = vld [vmem:[%s5 + $0x2f8] sm:$0xff]
      %v1912 = vld [vmem:[%s5 + $0x300] sm:$0xff]
      %v1913 = vld [vmem:[%s5 + $0x308] sm:$0xff]
      %v1914 = vld [vmem:[%s5 + $0x310] sm:$0xff]
      %v1915 = vld [vmem:[%s5 + $0x318] sm:$0xff]
      %v1916 = vld [vmem:[%s5 + $0x320] sm:$0xff]
      %v1917 = vld [vmem:[%s5 + $0x328] sm:$0xff]
      %v1918 = vld [vmem:[%s5 + $0x330] sm:$0xff]
      %v1919 = vld [vmem:[%s5 + $0x338] sm:$0xff]
      %v1920 = vld [vmem:[%s5 + $0x340] sm:$0xff]
      %v1921 = vld [vmem:[%s5 + $0x348] sm:$0xff]
      %v1922 = vld [vmem:[%s5 + $0x350] sm:$0xff]
      %v1923 = vld [vmem:[%s5 + $0x358] sm:$0xff]
      %v1924 = vld [vmem:[%s5 + $0x360] sm:$0xff]
      %v1925 = vld [vmem:[%s5 + $0x368] sm:$0xff]
      %v1926 = vld [vmem:[%s5 + $0x370] sm:$0xff]
      %v1927 = vld [vmem:[%s5 + $0x378] sm:$0xff]
      %v1928 = vld [vmem:[%s5 + $0x380] sm:$0xff]
      %v1929 = vld [vmem:[%s5 + $0x388] sm:$0xff]
      %v1930 = vld [vmem:[%s5 + $0x390] sm:$0xff]
      %v1931 = vld [vmem:[%s5 + $0x398] sm:$0xff]
      %v1932 = vld [vmem:[%s5 + $0x3a0] sm:$0xff]
      %v1933 = vld [vmem:[%s5 + $0x3a8] sm:$0xff]
      %v1934 = vld [vmem:[%s5 + $0x3b0] sm:$0xff]
      %v1935 = vld [vmem:[%s5 + $0x3b8] sm:$0xff]
      %v1936 = vld [vmem:[%s5 + $0x3c0] sm:$0xff]
      %v1937 = vld [vmem:[%s5 + $0x3c8] sm:$0xff]
      %v1938 = vld [vmem:[%s5 + $0x3d0] sm:$0xff]
      %v1939 = vld [vmem:[%s5 + $0x3d8] sm:$0xff]
      %v1940 = vld [vmem:[%s5 + $0x3e0] sm:$0xff]
      %v1941 = vld [vmem:[%s5 + $0x3e8] sm:$0xff]
      %v1942 = vld [vmem:[%s5 + $0x3f0] sm:$0xff]
      %v1943 = vld [vmem:[%s5 + $0x3f8] sm:$0xff]
      %s1944 = scalar_lea.vmem %s4, 8
      %v1945 = vld [vmem:[%s1944] sm:$0xff]
      %v1947 = vsel %vm1670, %v1945, 0
      %1949 = vmatprep.subr.mxu0 0.0
      %1950 = vmatpush1.msra.mxu0 0.0
      %1951 = vmatprep.subr.mxu0 0.0
      %1952 = vmatpush1.msra.mxu0 0.0
      %1953 = vmatprep.subr.mxu0 0.0
      %1954 = vmatpush1.msra.mxu0 0.0
      %1955 = vmatprep.subr.mxu0 0.0
      %1956 = vmatpush1.msra.mxu0 0.0
      %1957 = vmatprep.subr.mxu0 0.0
      %1958 = vmatpush1.msra.mxu0 0.0
      %1959 = vmatprep.subr.mxu0 0.0
      %1960 = vmatpush1.msra.mxu0 0.0
      %1961 = vmatprep.subr.mxu0 0.0
      %1962 = vmatpush1.msra.mxu0 0.0
      %1963 = vmatprep.subr.mxu0 0.0
      %1964 = vmatpush1.msra.mxu0 0.0
      %1965 = vmatprep.subr.mxu0 0.0
      %1966 = vmatpush1.msra.mxu0 0.0
      %1967 = vmatprep.subr.mxu0 0.0
      %1968 = vmatpush1.msra.mxu0 0.0
      %1969 = vmatprep.subr.mxu0 0.0
      %1970 = vmatpush1.msra.mxu0 0.0
      %1971 = vmatprep.subr.mxu0 0.0
      %1972 = vmatpush1.msra.mxu0 0.0
      %1973 = vmatprep.subr.mxu0 0.0
      %1974 = vmatpush1.msra.mxu0 0.0
      %1975 = vmatprep.subr.mxu0 0.0
      %1976 = vmatpush1.msra.mxu0 0.0
      %1977 = vmatprep.subr.mxu0 %v1666
      %1978 = vmatpush1.msra.mxu0 %v1665
      %1979 = vmatprep.subr.mxu0 %v1662
      %1980 = vmatpush1.msra.mxu0 %v1661
      %1981 = vmatprep.subr.mxu0 0.0
      %1982 = vmatpush2.msra.mxu0 0.0
      %1983 = vmatprep.subr.mxu0 0.0
      %1984 = vmatpush2.msra.mxu0 0.0
      %1985 = vmatprep.subr.mxu0 0.0
      %1986 = vmatpush2.msra.mxu0 0.0
      %1987 = vmatprep.subr.mxu0 0.0
      %1988 = vmatpush2.msra.mxu0 0.0
      %1989 = vmatprep.subr.mxu0 0.0
      %1990 = vmatpush2.msra.mxu0 0.0
      %1991 = vmatprep.subr.mxu0 0.0
      %1992 = vmatpush2.msra.mxu0 0.0
      %1993 = vmatprep.subr.mxu0 0.0
      %1994 = vmatpush2.msra.mxu0 0.0
      %1995 = vmatprep.subr.mxu0 0.0
      %1996 = vmatpush2.msra.mxu0 0.0
      %1997 = vmatprep.subr.mxu0 0.0
      %1998 = vmatpush2.msra.mxu0 0.0
      %1999 = vmatprep.subr.mxu0 0.0
      %2000 = vmatpush2.msra.mxu0 0.0
      %2001 = vmatprep.subr.mxu0 0.0
      %2002 = vmatpush2.msra.mxu0 0.0
      %2003 = vmatprep.subr.mxu0 0.0
      %2004 = vmatpush2.msra.mxu0 0.0
      %2005 = vmatprep.subr.mxu0 0.0
      %2006 = vmatpush2.msra.mxu0 0.0
      %2007 = vmatprep.subr.mxu0 0.0
      %2008 = vmatpush2.msra.mxu0 0.0
      %2009 = vmatprep.subr.mxu0 0.0
      %2010 = vmatpush2.msra.mxu0 0.0
      %2011 = vmatprep.subr.mxu0 0.0
      %2012 = vmatpush2.msra.mxu0 0.0
      %2013 = vmatprep.mubr.f32.mxu0 0.0
      %2014 = vmatmul.mubr.f32.gmra.mxu0 %v1947
      %v2015 = vpop.f32.mrf.mxu0
      %v2016 = vadd.f32 0.0, %v2015
      %v2017 = vpop.f32.mrf.mxu0
      %v2018 = vadd.f32 0.0, %v2017
      %2019 = vdwg.mxu0
      %2020 = vmatprep.subr.mxu0 0.0
      %2021 = vmatpush1.msra.mxu0 0.0
      %2022 = vmatprep.subr.mxu0 0.0
      %2023 = vmatpush1.msra.mxu0 0.0
      %2024 = vmatprep.subr.mxu0 0.0
      %2025 = vmatpush1.msra.mxu0 0.0
      %2026 = vmatprep.subr.mxu0 0.0
      %2027 = vmatpush1.msra.mxu0 0.0
      %2028 = vmatprep.subr.mxu0 0.0
      %2029 = vmatpush1.msra.mxu0 0.0
      %2030 = vmatprep.subr.mxu0 0.0
      %2031 = vmatpush1.msra.mxu0 0.0
      %2032 = vmatprep.subr.mxu0 0.0
      %2033 = vmatpush1.msra.mxu0 0.0
      %2034 = vmatprep.subr.mxu0 0.0
      %2035 = vmatpush1.msra.mxu0 0.0
      %2036 = vmatprep.subr.mxu0 0.0
      %2037 = vmatpush1.msra.mxu0 0.0
      %2038 = vmatprep.subr.mxu0 0.0
      %2039 = vmatpush1.msra.mxu0 0.0
      %2040 = vmatprep.subr.mxu0 0.0
      %2041 = vmatpush1.msra.mxu0 0.0
      %2042 = vmatprep.subr.mxu0 0.0
      %2043 = vmatpush1.msra.mxu0 0.0
      %2044 = vmatprep.subr.mxu0 0.0
      %2045 = vmatpush1.msra.mxu0 0.0
      %2046 = vmatprep.subr.mxu0 0.0
      %2047 = vmatpush1.msra.mxu0 0.0
      %2048 = vmatprep.subr.mxu0 %v1668
      %2049 = vmatpush1.msra.mxu0 %v1667
      %2050 = vmatprep.subr.mxu0 %v1664
      %2051 = vmatpush1.msra.mxu0 %v1663
      %2052 = vmatprep.subr.mxu0 0.0
      %2053 = vmatpush2.msra.mxu0 0.0
      %2054 = vmatprep.subr.mxu0 0.0
      %2055 = vmatpush2.msra.mxu0 0.0
      %2056 = vmatprep.subr.mxu0 0.0
      %2057 = vmatpush2.msra.mxu0 0.0
      %2058 = vmatprep.subr.mxu0 0.0
      %2059 = vmatpush2.msra.mxu0 0.0
      %2060 = vmatprep.subr.mxu0 0.0
      %2061 = vmatpush2.msra.mxu0 0.0
      %2062 = vmatprep.subr.mxu0 0.0
      %2063 = vmatpush2.msra.mxu0 0.0
      %2064 = vmatprep.subr.mxu0 0.0
      %2065 = vmatpush2.msra.mxu0 0.0
      %2066 = vmatprep.subr.mxu0 0.0
      %2067 = vmatpush2.msra.mxu0 0.0
      %2068 = vmatprep.subr.mxu0 0.0
      %2069 = vmatpush2.msra.mxu0 0.0
      %2070 = vmatprep.subr.mxu0 0.0
      %2071 = vmatpush2.msra.mxu0 0.0
      %2072 = vmatprep.subr.mxu0 0.0
      %2073 = vmatpush2.msra.mxu0 0.0
      %2074 = vmatprep.subr.mxu0 0.0
      %2075 = vmatpush2.msra.mxu0 0.0
      %2076 = vmatprep.subr.mxu0 0.0
      %2077 = vmatpush2.msra.mxu0 0.0
      %2078 = vmatprep.subr.mxu0 0.0
      %2079 = vmatpush2.msra.mxu0 0.0
      %2080 = vmatprep.subr.mxu0 0.0
      %2081 = vmatpush2.msra.mxu0 0.0
      %2082 = vmatprep.subr.mxu0 0.0
      %2083 = vmatpush2.msra.mxu0 0.0
      %2084 = vmatprep.mubr.f32.mxu0 0.0
      %2085 = vmatmul.mubr.f32.gmra.mxu0 %v1947
      %v2086 = vpop.f32.mrf.mxu0
      %v2087 = vadd.f32 0.0, %v2086
      %v2088 = vpop.f32.mrf.mxu0
      %v2089 = vadd.f32 0.0, %v2088
      %2090 = vdwg.mxu0
      %s2091 = scalar_lea.vmem %s5, 1024
      %v2092 = vld [vmem:[%s2091] sm:$0xff]
      %v2093 = vld [vmem:[%s2091 + $0x8] sm:$0xff]
      %v2094 = vld [vmem:[%s2091 + $0x10] sm:$0xff]
      %v2095 = vld [vmem:[%s2091 + $0x18] sm:$0xff]
      %v2096 = vld [vmem:[%s2091 + $0x20] sm:$0xff]
      %v2097 = vld [vmem:[%s2091 + $0x28] sm:$0xff]
      %v2098 = vld [vmem:[%s2091 + $0x30] sm:$0xff]
      %v2099 = vld [vmem:[%s2091 + $0x38] sm:$0xff]
      %v2100 = vld [vmem:[%s2091 + $0x40] sm:$0xff]
      %v2101 = vld [vmem:[%s2091 + $0x48] sm:$0xff]
      %v2102 = vld [vmem:[%s2091 + $0x50] sm:$0xff]
      %v2103 = vld [vmem:[%s2091 + $0x58] sm:$0xff]
      %v2104 = vld [vmem:[%s2091 + $0x60] sm:$0xff]
      %v2105 = vld [vmem:[%s2091 + $0x68] sm:$0xff]
      %v2106 = vld [vmem:[%s2091 + $0x70] sm:$0xff]
      %v2107 = vld [vmem:[%s2091 + $0x78] sm:$0xff]
      %v2108 = vld [vmem:[%s2091 + $0x80] sm:$0xff]
      %v2109 = vld [vmem:[%s2091 + $0x88] sm:$0xff]
      %v2110 = vld [vmem:[%s2091 + $0x90] sm:$0xff]
      %v2111 = vld [vmem:[%s2091 + $0x98] sm:$0xff]
      %v2112 = vld [vmem:[%s2091 + $0xa0] sm:$0xff]
      %v2113 = vld [vmem:[%s2091 + $0xa8] sm:$0xff]
      %v2114 = vld [vmem:[%s2091 + $0xb0] sm:$0xff]
      %v2115 = vld [vmem:[%s2091 + $0xb8] sm:$0xff]
      %v2116 = vld [vmem:[%s2091 + $0xc0] sm:$0xff]
      %v2117 = vld [vmem:[%s2091 + $0xc8] sm:$0xff]
      %v2118 = vld [vmem:[%s2091 + $0xd0] sm:$0xff]
      %v2119 = vld [vmem:[%s2091 + $0xd8] sm:$0xff]
      %v2120 = vld [vmem:[%s2091 + $0xe0] sm:$0xff]
      %v2121 = vld [vmem:[%s2091 + $0xe8] sm:$0xff]
      %v2122 = vld [vmem:[%s2091 + $0xf0] sm:$0xff]
      %v2123 = vld [vmem:[%s2091 + $0xf8] sm:$0xff]
      %v2124 = vld [vmem:[%s2091 + $0x100] sm:$0xff]
      %v2125 = vld [vmem:[%s2091 + $0x108] sm:$0xff]
      %v2126 = vld [vmem:[%s2091 + $0x110] sm:$0xff]
      %v2127 = vld [vmem:[%s2091 + $0x118] sm:$0xff]
      %v2128 = vld [vmem:[%s2091 + $0x120] sm:$0xff]
      %v2129 = vld [vmem:[%s2091 + $0x128] sm:$0xff]
      %v2130 = vld [vmem:[%s2091 + $0x130] sm:$0xff]
      %v2131 = vld [vmem:[%s2091 + $0x138] sm:$0xff]
      %v2132 = vld [vmem:[%s2091 + $0x140] sm:$0xff]
      %v2133 = vld [vmem:[%s2091 + $0x148] sm:$0xff]
      %v2134 = vld [vmem:[%s2091 + $0x150] sm:$0xff]
      %v2135 = vld [vmem:[%s2091 + $0x158] sm:$0xff]
      %v2136 = vld [vmem:[%s2091 + $0x160] sm:$0xff]
      %v2137 = vld [vmem:[%s2091 + $0x168] sm:$0xff]
      %v2138 = vld [vmem:[%s2091 + $0x170] sm:$0xff]
      %v2139 = vld [vmem:[%s2091 + $0x178] sm:$0xff]
      %v2140 = vld [vmem:[%s2091 + $0x180] sm:$0xff]
      %v2141 = vld [vmem:[%s2091 + $0x188] sm:$0xff]
      %v2142 = vld [vmem:[%s2091 + $0x190] sm:$0xff]
      %v2143 = vld [vmem:[%s2091 + $0x198] sm:$0xff]
      %v2144 = vld [vmem:[%s2091 + $0x1a0] sm:$0xff]
      %v2145 = vld [vmem:[%s2091 + $0x1a8] sm:$0xff]
      %v2146 = vld [vmem:[%s2091 + $0x1b0] sm:$0xff]
      %v2147 = vld [vmem:[%s2091 + $0x1b8] sm:$0xff]
      %v2148 = vld [vmem:[%s2091 + $0x1c0] sm:$0xff]
      %v2149 = vld [vmem:[%s2091 + $0x1c8] sm:$0xff]
      %v2150 = vld [vmem:[%s2091 + $0x1d0] sm:$0xff]
      %v2151 = vld [vmem:[%s2091 + $0x1d8] sm:$0xff]
      %v2152 = vld [vmem:[%s2091 + $0x1e0] sm:$0xff]
      %v2153 = vld [vmem:[%s2091 + $0x1e8] sm:$0xff]
      %v2154 = vld [vmem:[%s2091 + $0x1f0] sm:$0xff]
      %v2155 = vld [vmem:[%s2091 + $0x1f8] sm:$0xff]
      %v2156 = vld [vmem:[%s2091 + $0x200] sm:$0xff]
      %v2157 = vld [vmem:[%s2091 + $0x208] sm:$0xff]
      %v2158 = vld [vmem:[%s2091 + $0x210] sm:$0xff]
      %v2159 = vld [vmem:[%s2091 + $0x218] sm:$0xff]
      %v2160 = vld [vmem:[%s2091 + $0x220] sm:$0xff]
      %v2161 = vld [vmem:[%s2091 + $0x228] sm:$0xff]
      %v2162 = vld [vmem:[%s2091 + $0x230] sm:$0xff]
      %v2163 = vld [vmem:[%s2091 + $0x238] sm:$0xff]
      %v2164 = vld [vmem:[%s2091 + $0x240] sm:$0xff]
      %v2165 = vld [vmem:[%s2091 + $0x248] sm:$0xff]
      %v2166 = vld [vmem:[%s2091 + $0x250] sm:$0xff]
      %v2167 = vld [vmem:[%s2091 + $0x258] sm:$0xff]
      %v2168 = vld [vmem:[%s2091 + $0x260] sm:$0xff]
      %v2169 = vld [vmem:[%s2091 + $0x268] sm:$0xff]
      %v2170 = vld [vmem:[%s2091 + $0x270] sm:$0xff]
      %v2171 = vld [vmem:[%s2091 + $0x278] sm:$0xff]
      %v2172 = vld [vmem:[%s2091 + $0x280] sm:$0xff]
      %v2173 = vld [vmem:[%s2091 + $0x288] sm:$0xff]
      %v2174 = vld [vmem:[%s2091 + $0x290] sm:$0xff]
      %v2175 = vld [vmem:[%s2091 + $0x298] sm:$0xff]
      %v2176 = vld [vmem:[%s2091 + $0x2a0] sm:$0xff]
      %v2177 = vld [vmem:[%s2091 + $0x2a8] sm:$0xff]
      %v2178 = vld [vmem:[%s2091 + $0x2b0] sm:$0xff]
      %v2179 = vld [vmem:[%s2091 + $0x2b8] sm:$0xff]
      %v2180 = vld [vmem:[%s2091 + $0x2c0] sm:$0xff]
      %v2181 = vld [vmem:[%s2091 + $0x2c8] sm:$0xff]
      %v2182 = vld [vmem:[%s2091 + $0x2d0] sm:$0xff]
      %v2183 = vld [vmem:[%s2091 + $0x2d8] sm:$0xff]
      %v2184 = vld [vmem:[%s2091 + $0x2e0] sm:$0xff]
      %v2185 = vld [vmem:[%s2091 + $0x2e8] sm:$0xff]
      %v2186 = vld [vmem:[%s2091 + $0x2f0] sm:$0xff]
      %v2187 = vld [vmem:[%s2091 + $0x2f8] sm:$0xff]
      %v2188 = vld [vmem:[%s2091 + $0x300] sm:$0xff]
      %v2189 = vld [vmem:[%s2091 + $0x308] sm:$0xff]
      %v2190 = vld [vmem:[%s2091 + $0x310] sm:$0xff]
      %v2191 = vld [vmem:[%s2091 + $0x318] sm:$0xff]
      %v2192 = vld [vmem:[%s2091 + $0x320] sm:$0xff]
      %v2193 = vld [vmem:[%s2091 + $0x328] sm:$0xff]
      %v2194 = vld [vmem:[%s2091 + $0x330] sm:$0xff]
      %v2195 = vld [vmem:[%s2091 + $0x338] sm:$0xff]
      %v2196 = vld [vmem:[%s2091 + $0x340] sm:$0xff]
      %v2197 = vld [vmem:[%s2091 + $0x348] sm:$0xff]
      %v2198 = vld [vmem:[%s2091 + $0x350] sm:$0xff]
      %v2199 = vld [vmem:[%s2091 + $0x358] sm:$0xff]
      %v2200 = vld [vmem:[%s2091 + $0x360] sm:$0xff]
      %v2201 = vld [vmem:[%s2091 + $0x368] sm:$0xff]
      %v2202 = vld [vmem:[%s2091 + $0x370] sm:$0xff]
      %v2203 = vld [vmem:[%s2091 + $0x378] sm:$0xff]
      %v2204 = vld [vmem:[%s2091 + $0x380] sm:$0xff]
      %v2205 = vld [vmem:[%s2091 + $0x388] sm:$0xff]
      %v2206 = vld [vmem:[%s2091 + $0x390] sm:$0xff]
      %v2207 = vld [vmem:[%s2091 + $0x398] sm:$0xff]
      %v2208 = vld [vmem:[%s2091 + $0x3a0] sm:$0xff]
      %v2209 = vld [vmem:[%s2091 + $0x3a8] sm:$0xff]
      %v2210 = vld [vmem:[%s2091 + $0x3b0] sm:$0xff]
      %v2211 = vld [vmem:[%s2091 + $0x3b8] sm:$0xff]
      %v2212 = vld [vmem:[%s2091 + $0x3c0] sm:$0xff]
      %v2213 = vld [vmem:[%s2091 + $0x3c8] sm:$0xff]
      %v2214 = vld [vmem:[%s2091 + $0x3d0] sm:$0xff]
      %v2215 = vld [vmem:[%s2091 + $0x3d8] sm:$0xff]
      %v2216 = vld [vmem:[%s2091 + $0x3e0] sm:$0xff]
      %v2217 = vld [vmem:[%s2091 + $0x3e8] sm:$0xff]
      %v2218 = vld [vmem:[%s2091 + $0x3f0] sm:$0xff]
      %v2219 = vld [vmem:[%s2091 + $0x3f8] sm:$0xff]
      %2220 = vmatprep.subr.mxu0 %v2123
      %2221 = vmatpush1.msra.mxu0 %v2122
      %2222 = vmatprep.subr.mxu0 %v2121
      %2223 = vmatpush1.msra.mxu0 %v2120
      %2224 = vmatprep.subr.mxu0 %v2119
      %2225 = vmatpush1.msra.mxu0 %v2118
      %2226 = vmatprep.subr.mxu0 %v2117
      %2227 = vmatpush1.msra.mxu0 %v2116
      %2228 = vmatprep.subr.mxu0 %v2115
      %2229 = vmatpush1.msra.mxu0 %v2114
      %2230 = vmatprep.subr.mxu0 %v2113
      %2231 = vmatpush1.msra.mxu0 %v2112
      %2232 = vmatprep.subr.mxu0 %v2111
      %2233 = vmatpush1.msra.mxu0 %v2110
      %2234 = vmatprep.subr.mxu0 %v2109
      %2235 = vmatpush1.msra.mxu0 %v2108
      %2236 = vmatprep.subr.mxu0 %v2107
      %2237 = vmatpush1.msra.mxu0 %v2106
      %2238 = vmatprep.subr.mxu0 %v2105
      %2239 = vmatpush1.msra.mxu0 %v2104
      %2240 = vmatprep.subr.mxu0 %v2103
      %2241 = vmatpush1.msra.mxu0 %v2102
      %2242 = vmatprep.subr.mxu0 %v2101
      %2243 = vmatpush1.msra.mxu0 %v2100
      %2244 = vmatprep.subr.mxu0 %v2099
      %2245 = vmatpush1.msra.mxu0 %v2098
      %2246 = vmatprep.subr.mxu0 %v2097
      %2247 = vmatpush1.msra.mxu0 %v2096
      %2248 = vmatprep.subr.mxu0 %v2095
      %2249 = vmatpush1.msra.mxu0 %v2094
      %2250 = vmatprep.subr.mxu0 %v2093
      %2251 = vmatpush1.msra.mxu0 %v2092
      %2252 = vmatprep.subr.mxu0 %v2155
      %2253 = vmatpush2.msra.mxu0 %v2154
      %2254 = vmatprep.subr.mxu0 %v2153
      %2255 = vmatpush2.msra.mxu0 %v2152
      %2256 = vmatprep.subr.mxu0 %v2151
      %2257 = vmatpush2.msra.mxu0 %v2150
      %2258 = vmatprep.subr.mxu0 %v2149
      %2259 = vmatpush2.msra.mxu0 %v2148
      %2260 = vmatprep.subr.mxu0 %v2147
      %2261 = vmatpush2.msra.mxu0 %v2146
      %2262 = vmatprep.subr.mxu0 %v2145
      %2263 = vmatpush2.msra.mxu0 %v2144
      %2264 = vmatprep.subr.mxu0 %v2143
      %2265 = vmatpush2.msra.mxu0 %v2142
      %2266 = vmatprep.subr.mxu0 %v2141
      %2267 = vmatpush2.msra.mxu0 %v2140
      %2268 = vmatprep.subr.mxu0 %v2139
      %2269 = vmatpush2.msra.mxu0 %v2138
      %2270 = vmatprep.subr.mxu0 %v2137
      %2271 = vmatpush2.msra.mxu0 %v2136
      %2272 = vmatprep.subr.mxu0 %v2135
      %2273 = vmatpush2.msra.mxu0 %v2134
      %2274 = vmatprep.subr.mxu0 %v2133
      %2275 = vmatpush2.msra.mxu0 %v2132
      %2276 = vmatprep.subr.mxu0 %v2131
      %2277 = vmatpush2.msra.mxu0 %v2130
      %2278 = vmatprep.subr.mxu0 %v2129
      %2279 = vmatpush2.msra.mxu0 %v2128
      %2280 = vmatprep.subr.mxu0 %v2127
      %2281 = vmatpush2.msra.mxu0 %v2126
      %2282 = vmatprep.subr.mxu0 %v2125
      %2283 = vmatpush2.msra.mxu0 %v2124
      %2284 = vmatprep.mubr.f32.mxu0 %v2018
      %2285 = vmatmul.mubr.f32.gmra.mxu0 %v2016
      %v2286 = vpop.f32.mrf.mxu0
      %v2287 = vadd.f32 0.0, %v2286
      %v2288 = vpop.f32.mrf.mxu0
      %v2289 = vadd.f32 0.0, %v2288
      %2290 = vdwg.mxu0
      %2291 = vmatprep.subr.mxu0 %v2187
      %2292 = vmatpush1.msra.mxu0 %v2186
      %2293 = vmatprep.subr.mxu0 %v2185
      %2294 = vmatpush1.msra.mxu0 %v2184
      %2295 = vmatprep.subr.mxu0 %v2183
      %2296 = vmatpush1.msra.mxu0 %v2182
      %2297 = vmatprep.subr.mxu0 %v2181
      %2298 = vmatpush1.msra.mxu0 %v2180
      %2299 = vmatprep.subr.mxu0 %v2179
      %2300 = vmatpush1.msra.mxu0 %v2178
      %2301 = vmatprep.subr.mxu0 %v2177
      %2302 = vmatpush1.msra.mxu0 %v2176
      %2303 = vmatprep.subr.mxu0 %v2175
      %2304 = vmatpush1.msra.mxu0 %v2174
      %2305 = vmatprep.subr.mxu0 %v2173
      %2306 = vmatpush1.msra.mxu0 %v2172
      %2307 = vmatprep.subr.mxu0 %v2171
      %2308 = vmatpush1.msra.mxu0 %v2170
      %2309 = vmatprep.subr.mxu0 %v2169
      %2310 = vmatpush1.msra.mxu0 %v2168
      %2311 = vmatprep.subr.mxu0 %v2167
      %2312 = vmatpush1.msra.mxu0 %v2166
      %2313 = vmatprep.subr.mxu0 %v2165
      %2314 = vmatpush1.msra.mxu0 %v2164
      %2315 = vmatprep.subr.mxu0 %v2163
      %2316 = vmatpush1.msra.mxu0 %v2162
      %2317 = vmatprep.subr.mxu0 %v2161
      %2318 = vmatpush1.msra.mxu0 %v2160
      %2319 = vmatprep.subr.mxu0 %v2159
      %2320 = vmatpush1.msra.mxu0 %v2158
      %2321 = vmatprep.subr.mxu0 %v2157
      %2322 = vmatpush1.msra.mxu0 %v2156
      %2323 = vmatprep.subr.mxu0 %v2219
      %2324 = vmatpush2.msra.mxu0 %v2218
      %2325 = vmatprep.subr.mxu0 %v2217
      %2326 = vmatpush2.msra.mxu0 %v2216
      %2327 = vmatprep.subr.mxu0 %v2215
      %2328 = vmatpush2.msra.mxu0 %v2214
      %2329 = vmatprep.subr.mxu0 %v2213
      %2330 = vmatpush2.msra.mxu0 %v2212
      %2331 = vmatprep.subr.mxu0 %v2211
      %2332 = vmatpush2.msra.mxu0 %v2210
      %2333 = vmatprep.subr.mxu0 %v2209
      %2334 = vmatpush2.msra.mxu0 %v2208
      %2335 = vmatprep.subr.mxu0 %v2207
      %2336 = vmatpush2.msra.mxu0 %v2206
      %2337 = vmatprep.subr.mxu0 %v2205
      %2338 = vmatpush2.msra.mxu0 %v2204
      %2339 = vmatprep.subr.mxu0 %v2203
      %2340 = vmatpush2.msra.mxu0 %v2202
      %2341 = vmatprep.subr.mxu0 %v2201
      %2342 = vmatpush2.msra.mxu0 %v2200
      %2343 = vmatprep.subr.mxu0 %v2199
      %2344 = vmatpush2.msra.mxu0 %v2198
      %2345 = vmatprep.subr.mxu0 %v2197
      %2346 = vmatpush2.msra.mxu0 %v2196
      %2347 = vmatprep.subr.mxu0 %v2195
      %2348 = vmatpush2.msra.mxu0 %v2194
      %2349 = vmatprep.subr.mxu0 %v2193
      %2350 = vmatpush2.msra.mxu0 %v2192
      %2351 = vmatprep.subr.mxu0 %v2191
      %2352 = vmatpush2.msra.mxu0 %v2190
      %2353 = vmatprep.subr.mxu0 %v2189
      %2354 = vmatpush2.msra.mxu0 %v2188
      %2355 = vmatprep.mubr.f32.mxu0 %v2089
      %2356 = vmatmul.mubr.f32.gmra.mxu0 %v2087
      %v2357 = vpop.f32.mrf.mxu0
      %v2358 = vadd.f32 %v2287, %v2357
      %v2359 = vpop.f32.mrf.mxu0
      %v2360 = vadd.f32 %v2289, %v2359
      %2361 = vdwg.mxu0
      %2362 = vmatprep.subr.mxu0 %v1847
      %2363 = vmatpush1.msra.mxu0 %v1846
      %2364 = vmatprep.subr.mxu0 %v1845
      %2365 = vmatpush1.msra.mxu0 %v1844
      %2366 = vmatprep.subr.mxu0 %v1843
      %2367 = vmatpush1.msra.mxu0 %v1842
      %2368 = vmatprep.subr.mxu0 %v1841
      %2369 = vmatpush1.msra.mxu0 %v1840
      %2370 = vmatprep.subr.mxu0 %v1839
      %2371 = vmatpush1.msra.mxu0 %v1838
      %2372 = vmatprep.subr.mxu0 %v1837
      %2373 = vmatpush1.msra.mxu0 %v1836
      %2374 = vmatprep.subr.mxu0 %v1835
      %2375 = vmatpush1.msra.mxu0 %v1834
      %2376 = vmatprep.subr.mxu0 %v1833
      %2377 = vmatpush1.msra.mxu0 %v1832
      %2378 = vmatprep.subr.mxu0 %v1831
      %2379 = vmatpush1.msra.mxu0 %v1830
      %2380 = vmatprep.subr.mxu0 %v1829
      %2381 = vmatpush1.msra.mxu0 %v1828
      %2382 = vmatprep.subr.mxu0 %v1827
      %2383 = vmatpush1.msra.mxu0 %v1826
      %2384 = vmatprep.subr.mxu0 %v1825
      %2385 = vmatpush1.msra.mxu0 %v1824
      %2386 = vmatprep.subr.mxu0 %v1823
      %2387 = vmatpush1.msra.mxu0 %v1822
      %2388 = vmatprep.subr.mxu0 %v1821
      %2389 = vmatpush1.msra.mxu0 %v1820
      %2390 = vmatprep.subr.mxu0 %v1819
      %2391 = vmatpush1.msra.mxu0 %v1818
      %2392 = vmatprep.subr.mxu0 %v1817
      %2393 = vmatpush1.msra.mxu0 %v1816
      %2394 = vmatprep.subr.mxu0 %v1879
      %2395 = vmatpush2.msra.mxu0 %v1878
      %2396 = vmatprep.subr.mxu0 %v1877
      %2397 = vmatpush2.msra.mxu0 %v1876
      %2398 = vmatprep.subr.mxu0 %v1875
      %2399 = vmatpush2.msra.mxu0 %v1874
      %2400 = vmatprep.subr.mxu0 %v1873
      %2401 = vmatpush2.msra.mxu0 %v1872
      %2402 = vmatprep.subr.mxu0 %v1871
      %2403 = vmatpush2.msra.mxu0 %v1870
      %2404 = vmatprep.subr.mxu0 %v1869
      %2405 = vmatpush2.msra.mxu0 %v1868
      %2406 = vmatprep.subr.mxu0 %v1867
      %2407 = vmatpush2.msra.mxu0 %v1866
      %2408 = vmatprep.subr.mxu0 %v1865
      %2409 = vmatpush2.msra.mxu0 %v1864
      %2410 = vmatprep.subr.mxu0 %v1863
      %2411 = vmatpush2.msra.mxu0 %v1862
      %2412 = vmatprep.subr.mxu0 %v1861
      %2413 = vmatpush2.msra.mxu0 %v1860
      %2414 = vmatprep.subr.mxu0 %v1859
      %2415 = vmatpush2.msra.mxu0 %v1858
      %2416 = vmatprep.subr.mxu0 %v1857
      %2417 = vmatpush2.msra.mxu0 %v1856
      %2418 = vmatprep.subr.mxu0 %v1855
      %2419 = vmatpush2.msra.mxu0 %v1854
      %2420 = vmatprep.subr.mxu0 %v1853
      %2421 = vmatpush2.msra.mxu0 %v1852
      %2422 = vmatprep.subr.mxu0 %v1851
      %2423 = vmatpush2.msra.mxu0 %v1850
      %2424 = vmatprep.subr.mxu0 %v1849
      %2425 = vmatpush2.msra.mxu0 %v1848
      %2426 = vmatprep.mubr.f32.mxu0 %v1743
      %2427 = vmatmul.mubr.f32.gmra.mxu0 %v1741
      %v2428 = vpop.f32.mrf.mxu0
      %v2429 = vadd.f32 %v2358, %v2428
      %v2430 = vpop.f32.mrf.mxu0
      %v2431 = vadd.f32 %v2360, %v2430
      %2432 = vdwg.mxu0
      %2433 = vmatprep.subr.mxu0 %v1911
      %2434 = vmatpush1.msra.mxu0 %v1910
      %2435 = vmatprep.subr.mxu0 %v1909
      %2436 = vmatpush1.msra.mxu0 %v1908
      %2437 = vmatprep.subr.mxu0 %v1907
      %2438 = vmatpush1.msra.mxu0 %v1906
      %2439 = vmatprep.subr.mxu0 %v1905
      %2440 = vmatpush1.msra.mxu0 %v1904
      %2441 = vmatprep.subr.mxu0 %v1903
      %2442 = vmatpush1.msra.mxu0 %v1902
      %2443 = vmatprep.subr.mxu0 %v1901
      %2444 = vmatpush1.msra.mxu0 %v1900
      %2445 = vmatprep.subr.mxu0 %v1899
      %2446 = vmatpush1.msra.mxu0 %v1898
      %2447 = vmatprep.subr.mxu0 %v1897
      %2448 = vmatpush1.msra.mxu0 %v1896
      %2449 = vmatprep.subr.mxu0 %v1895
      %2450 = vmatpush1.msra.mxu0 %v1894
      %2451 = vmatprep.subr.mxu0 %v1893
      %2452 = vmatpush1.msra.mxu0 %v1892
      %2453 = vmatprep.subr.mxu0 %v1891
      %2454 = vmatpush1.msra.mxu0 %v1890
      %2455 = vmatprep.subr.mxu0 %v1889
      %2456 = vmatpush1.msra.mxu0 %v1888
      %2457 = vmatprep.subr.mxu0 %v1887
      %2458 = vmatpush1.msra.mxu0 %v1886
      %2459 = vmatprep.subr.mxu0 %v1885
      %2460 = vmatpush1.msra.mxu0 %v1884
      %2461 = vmatprep.subr.mxu0 %v1883
      %2462 = vmatpush1.msra.mxu0 %v1882
      %2463 = vmatprep.subr.mxu0 %v1881
      %2464 = vmatpush1.msra.mxu0 %v1880
      %2465 = vmatprep.subr.mxu0 %v1943
      %2466 = vmatpush2.msra.mxu0 %v1942
      %2467 = vmatprep.subr.mxu0 %v1941
      %2468 = vmatpush2.msra.mxu0 %v1940
      %2469 = vmatprep.subr.mxu0 %v1939
      %2470 = vmatpush2.msra.mxu0 %v1938
      %2471 = vmatprep.subr.mxu0 %v1937
      %2472 = vmatpush2.msra.mxu0 %v1936
      %2473 = vmatprep.subr.mxu0 %v1935
      %2474 = vmatpush2.msra.mxu0 %v1934
      %2475 = vmatprep.subr.mxu0 %v1933
      %2476 = vmatpush2.msra.mxu0 %v1932
      %2477 = vmatprep.subr.mxu0 %v1931
      %2478 = vmatpush2.msra.mxu0 %v1930
      %2479 = vmatprep.subr.mxu0 %v1929
      %2480 = vmatpush2.msra.mxu0 %v1928
      %2481 = vmatprep.subr.mxu0 %v1927
      %2482 = vmatpush2.msra.mxu0 %v1926
      %2483 = vmatprep.subr.mxu0 %v1925
      %2484 = vmatpush2.msra.mxu0 %v1924
      %2485 = vmatprep.subr.mxu0 %v1923
      %2486 = vmatpush2.msra.mxu0 %v1922
      %2487 = vmatprep.subr.mxu0 %v1921
      %2488 = vmatpush2.msra.mxu0 %v1920
      %2489 = vmatprep.subr.mxu0 %v1919
      %2490 = vmatpush2.msra.mxu0 %v1918
      %2491 = vmatprep.subr.mxu0 %v1917
      %2492 = vmatpush2.msra.mxu0 %v1916
      %2493 = vmatprep.subr.mxu0 %v1915
      %2494 = vmatpush2.msra.mxu0 %v1914
      %2495 = vmatprep.subr.mxu0 %v1913
      %2496 = vmatpush2.msra.mxu0 %v1912
      %2497 = vmatprep.mubr.f32.mxu0 %v1814
      %2498 = vmatmul.mubr.f32.gmra.mxu0 %v1812
      %v2499 = vpop.f32.mrf.mxu0
      %v2500 = vadd.f32 %v2429, %v2499
      %v2501 = vpop.f32.mrf.mxu0
      %v2502 = vadd.f32 %v2431, %v2501
      %2503 = vdwg.mxu0
      %s2504 = scalar_lea.vmem %s4, 16
      %v2505 = vld [vmem:[%s2504] sm:$0xff]
      %v2507 = vsel %vm1670, %v2505, 0
      %2509 = vmatprep.subr.mxu0 0.0
      %2510 = vmatpush1.msra.mxu0 0.0
      %2511 = vmatprep.subr.mxu0 0.0
      %2512 = vmatpush1.msra.mxu0 0.0
      %2513 = vmatprep.subr.mxu0 0.0
      %2514 = vmatpush1.msra.mxu0 0.0
      %2515 = vmatprep.subr.mxu0 0.0
      %2516 = vmatpush1.msra.mxu0 0.0
      %2517 = vmatprep.subr.mxu0 0.0
      %2518 = vmatpush1.msra.mxu0 0.0
      %2519 = vmatprep.subr.mxu0 0.0
      %2520 = vmatpush1.msra.mxu0 0.0
      %2521 = vmatprep.subr.mxu0 0.0
      %2522 = vmatpush1.msra.mxu0 0.0
      %2523 = vmatprep.subr.mxu0 0.0
      %2524 = vmatpush1.msra.mxu0 0.0
      %2525 = vmatprep.subr.mxu0 0.0
      %2526 = vmatpush1.msra.mxu0 0.0
      %2527 = vmatprep.subr.mxu0 0.0
      %2528 = vmatpush1.msra.mxu0 0.0
      %2529 = vmatprep.subr.mxu0 0.0
      %2530 = vmatpush1.msra.mxu0 0.0
      %2531 = vmatprep.subr.mxu0 0.0
      %2532 = vmatpush1.msra.mxu0 0.0
      %2533 = vmatprep.subr.mxu0 0.0
      %2534 = vmatpush1.msra.mxu0 0.0
      %2535 = vmatprep.subr.mxu0 0.0
      %2536 = vmatpush1.msra.mxu0 0.0
      %2537 = vmatprep.subr.mxu0 %v1666
      %2538 = vmatpush1.msra.mxu0 %v1665
      %2539 = vmatprep.subr.mxu0 %v1662
      %2540 = vmatpush1.msra.mxu0 %v1661
      %2541 = vmatprep.subr.mxu0 0.0
      %2542 = vmatpush2.msra.mxu0 0.0
      %2543 = vmatprep.subr.mxu0 0.0
      %2544 = vmatpush2.msra.mxu0 0.0
      %2545 = vmatprep.subr.mxu0 0.0
      %2546 = vmatpush2.msra.mxu0 0.0
      %2547 = vmatprep.subr.mxu0 0.0
      %2548 = vmatpush2.msra.mxu0 0.0
      %2549 = vmatprep.subr.mxu0 0.0
      %2550 = vmatpush2.msra.mxu0 0.0
      %2551 = vmatprep.subr.mxu0 0.0
      %2552 = vmatpush2.msra.mxu0 0.0
      %2553 = vmatprep.subr.mxu0 0.0
      %2554 = vmatpush2.msra.mxu0 0.0
      %2555 = vmatprep.subr.mxu0 0.0
      %2556 = vmatpush2.msra.mxu0 0.0
      %2557 = vmatprep.subr.mxu0 0.0
      %2558 = vmatpush2.msra.mxu0 0.0
      %2559 = vmatprep.subr.mxu0 0.0
      %2560 = vmatpush2.msra.mxu0 0.0
      %2561 = vmatprep.subr.mxu0 0.0
      %2562 = vmatpush2.msra.mxu0 0.0
      %2563 = vmatprep.subr.mxu0 0.0
      %2564 = vmatpush2.msra.mxu0 0.0
      %2565 = vmatprep.subr.mxu0 0.0
      %2566 = vmatpush2.msra.mxu0 0.0
      %2567 = vmatprep.subr.mxu0 0.0
      %2568 = vmatpush2.msra.mxu0 0.0
      %2569 = vmatprep.subr.mxu0 0.0
      %2570 = vmatpush2.msra.mxu0 0.0
      %2571 = vmatprep.subr.mxu0 0.0
      %2572 = vmatpush2.msra.mxu0 0.0
      %2573 = vmatprep.mubr.f32.mxu0 0.0
      %2574 = vmatmul.mubr.f32.gmra.mxu0 %v2507
      %v2575 = vpop.f32.mrf.mxu0
      %v2576 = vadd.f32 0.0, %v2575
      %v2577 = vpop.f32.mrf.mxu0
      %v2578 = vadd.f32 0.0, %v2577
      %2579 = vdwg.mxu0
      %2580 = vmatprep.subr.mxu0 0.0
      %2581 = vmatpush1.msra.mxu0 0.0
      %2582 = vmatprep.subr.mxu0 0.0
      %2583 = vmatpush1.msra.mxu0 0.0
      %2584 = vmatprep.subr.mxu0 0.0
      %2585 = vmatpush1.msra.mxu0 0.0
      %2586 = vmatprep.subr.mxu0 0.0
      %2587 = vmatpush1.msra.mxu0 0.0
      %2588 = vmatprep.subr.mxu0 0.0
      %2589 = vmatpush1.msra.mxu0 0.0
      %2590 = vmatprep.subr.mxu0 0.0
      %2591 = vmatpush1.msra.mxu0 0.0
      %2592 = vmatprep.subr.mxu0 0.0
      %2593 = vmatpush1.msra.mxu0 0.0
      %2594 = vmatprep.subr.mxu0 0.0
      %2595 = vmatpush1.msra.mxu0 0.0
      %2596 = vmatprep.subr.mxu0 0.0
      %2597 = vmatpush1.msra.mxu0 0.0
      %2598 = vmatprep.subr.mxu0 0.0
      %2599 = vmatpush1.msra.mxu0 0.0
      %2600 = vmatprep.subr.mxu0 0.0
      %2601 = vmatpush1.msra.mxu0 0.0
      %2602 = vmatprep.subr.mxu0 0.0
      %2603 = vmatpush1.msra.mxu0 0.0
      %2604 = vmatprep.subr.mxu0 0.0
      %2605 = vmatpush1.msra.mxu0 0.0
      %2606 = vmatprep.subr.mxu0 0.0
      %2607 = vmatpush1.msra.mxu0 0.0
      %2608 = vmatprep.subr.mxu0 %v1668
      %2609 = vmatpush1.msra.mxu0 %v1667
      %2610 = vmatprep.subr.mxu0 %v1664
      %2611 = vmatpush1.msra.mxu0 %v1663
      %2612 = vmatprep.subr.mxu0 0.0
      %2613 = vmatpush2.msra.mxu0 0.0
      %2614 = vmatprep.subr.mxu0 0.0
      %2615 = vmatpush2.msra.mxu0 0.0
      %2616 = vmatprep.subr.mxu0 0.0
      %2617 = vmatpush2.msra.mxu0 0.0
      %2618 = vmatprep.subr.mxu0 0.0
      %2619 = vmatpush2.msra.mxu0 0.0
      %2620 = vmatprep.subr.mxu0 0.0
      %2621 = vmatpush2.msra.mxu0 0.0
      %2622 = vmatprep.subr.mxu0 0.0
      %2623 = vmatpush2.msra.mxu0 0.0
      %2624 = vmatprep.subr.mxu0 0.0
      %2625 = vmatpush2.msra.mxu0 0.0
      %2626 = vmatprep.subr.mxu0 0.0
      %2627 = vmatpush2.msra.mxu0 0.0
      %2628 = vmatprep.subr.mxu0 0.0
      %2629 = vmatpush2.msra.mxu0 0.0
      %2630 = vmatprep.subr.mxu0 0.0
      %2631 = vmatpush2.msra.mxu0 0.0
      %2632 = vmatprep.subr.mxu0 0.0
      %2633 = vmatpush2.msra.mxu0 0.0
      %2634 = vmatprep.subr.mxu0 0.0
      %2635 = vmatpush2.msra.mxu0 0.0
      %2636 = vmatprep.subr.mxu0 0.0
      %2637 = vmatpush2.msra.mxu0 0.0
      %2638 = vmatprep.subr.mxu0 0.0
      %2639 = vmatpush2.msra.mxu0 0.0
      %2640 = vmatprep.subr.mxu0 0.0
      %2641 = vmatpush2.msra.mxu0 0.0
      %2642 = vmatprep.subr.mxu0 0.0
      %2643 = vmatpush2.msra.mxu0 0.0
      %2644 = vmatprep.mubr.f32.mxu0 0.0
      %2645 = vmatmul.mubr.f32.gmra.mxu0 %v2507
      %v2646 = vpop.f32.mrf.mxu0
      %v2647 = vadd.f32 0.0, %v2646
      %v2648 = vpop.f32.mrf.mxu0
      %v2649 = vadd.f32 0.0, %v2648
      %2650 = vdwg.mxu0
      %s2651 = scalar_lea.vmem %s5, 2048
      %v2652 = vld [vmem:[%s2651] sm:$0xff]
      %v2653 = vld [vmem:[%s2651 + $0x8] sm:$0xff]
      %v2654 = vld [vmem:[%s2651 + $0x10] sm:$0xff]
      %v2655 = vld [vmem:[%s2651 + $0x18] sm:$0xff]
      %v2656 = vld [vmem:[%s2651 + $0x20] sm:$0xff]
      %v2657 = vld [vmem:[%s2651 + $0x28] sm:$0xff]
      %v2658 = vld [vmem:[%s2651 + $0x30] sm:$0xff]
      %v2659 = vld [vmem:[%s2651 + $0x38] sm:$0xff]
      %v2660 = vld [vmem:[%s2651 + $0x40] sm:$0xff]
      %v2661 = vld [vmem:[%s2651 + $0x48] sm:$0xff]
      %v2662 = vld [vmem:[%s2651 + $0x50] sm:$0xff]
      %v2663 = vld [vmem:[%s2651 + $0x58] sm:$0xff]
      %v2664 = vld [vmem:[%s2651 + $0x60] sm:$0xff]
      %v2665 = vld [vmem:[%s2651 + $0x68] sm:$0xff]
      %v2666 = vld [vmem:[%s2651 + $0x70] sm:$0xff]
      %v2667 = vld [vmem:[%s2651 + $0x78] sm:$0xff]
      %v2668 = vld [vmem:[%s2651 + $0x80] sm:$0xff]
      %v2669 = vld [vmem:[%s2651 + $0x88] sm:$0xff]
      %v2670 = vld [vmem:[%s2651 + $0x90] sm:$0xff]
      %v2671 = vld [vmem:[%s2651 + $0x98] sm:$0xff]
      %v2672 = vld [vmem:[%s2651 + $0xa0] sm:$0xff]
      %v2673 = vld [vmem:[%s2651 + $0xa8] sm:$0xff]
      %v2674 = vld [vmem:[%s2651 + $0xb0] sm:$0xff]
      %v2675 = vld [vmem:[%s2651 + $0xb8] sm:$0xff]
      %v2676 = vld [vmem:[%s2651 + $0xc0] sm:$0xff]
      %v2677 = vld [vmem:[%s2651 + $0xc8] sm:$0xff]
      %v2678 = vld [vmem:[%s2651 + $0xd0] sm:$0xff]
      %v2679 = vld [vmem:[%s2651 + $0xd8] sm:$0xff]
      %v2680 = vld [vmem:[%s2651 + $0xe0] sm:$0xff]
      %v2681 = vld [vmem:[%s2651 + $0xe8] sm:$0xff]
      %v2682 = vld [vmem:[%s2651 + $0xf0] sm:$0xff]
      %v2683 = vld [vmem:[%s2651 + $0xf8] sm:$0xff]
      %v2684 = vld [vmem:[%s2651 + $0x100] sm:$0xff]
      %v2685 = vld [vmem:[%s2651 + $0x108] sm:$0xff]
      %v2686 = vld [vmem:[%s2651 + $0x110] sm:$0xff]
      %v2687 = vld [vmem:[%s2651 + $0x118] sm:$0xff]
      %v2688 = vld [vmem:[%s2651 + $0x120] sm:$0xff]
      %v2689 = vld [vmem:[%s2651 + $0x128] sm:$0xff]
      %v2690 = vld [vmem:[%s2651 + $0x130] sm:$0xff]
      %v2691 = vld [vmem:[%s2651 + $0x138] sm:$0xff]
      %v2692 = vld [vmem:[%s2651 + $0x140] sm:$0xff]
      %v2693 = vld [vmem:[%s2651 + $0x148] sm:$0xff]
      %v2694 = vld [vmem:[%s2651 + $0x150] sm:$0xff]
      %v2695 = vld [vmem:[%s2651 + $0x158] sm:$0xff]
      %v2696 = vld [vmem:[%s2651 + $0x160] sm:$0xff]
      %v2697 = vld [vmem:[%s2651 + $0x168] sm:$0xff]
      %v2698 = vld [vmem:[%s2651 + $0x170] sm:$0xff]
      %v2699 = vld [vmem:[%s2651 + $0x178] sm:$0xff]
      %v2700 = vld [vmem:[%s2651 + $0x180] sm:$0xff]
      %v2701 = vld [vmem:[%s2651 + $0x188] sm:$0xff]
      %v2702 = vld [vmem:[%s2651 + $0x190] sm:$0xff]
      %v2703 = vld [vmem:[%s2651 + $0x198] sm:$0xff]
      %v2704 = vld [vmem:[%s2651 + $0x1a0] sm:$0xff]
      %v2705 = vld [vmem:[%s2651 + $0x1a8] sm:$0xff]
      %v2706 = vld [vmem:[%s2651 + $0x1b0] sm:$0xff]
      %v2707 = vld [vmem:[%s2651 + $0x1b8] sm:$0xff]
      %v2708 = vld [vmem:[%s2651 + $0x1c0] sm:$0xff]
      %v2709 = vld [vmem:[%s2651 + $0x1c8] sm:$0xff]
      %v2710 = vld [vmem:[%s2651 + $0x1d0] sm:$0xff]
      %v2711 = vld [vmem:[%s2651 + $0x1d8] sm:$0xff]
      %v2712 = vld [vmem:[%s2651 + $0x1e0] sm:$0xff]
      %v2713 = vld [vmem:[%s2651 + $0x1e8] sm:$0xff]
      %v2714 = vld [vmem:[%s2651 + $0x1f0] sm:$0xff]
      %v2715 = vld [vmem:[%s2651 + $0x1f8] sm:$0xff]
      %v2716 = vld [vmem:[%s2651 + $0x200] sm:$0xff]
      %v2717 = vld [vmem:[%s2651 + $0x208] sm:$0xff]
      %v2718 = vld [vmem:[%s2651 + $0x210] sm:$0xff]
      %v2719 = vld [vmem:[%s2651 + $0x218] sm:$0xff]
      %v2720 = vld [vmem:[%s2651 + $0x220] sm:$0xff]
      %v2721 = vld [vmem:[%s2651 + $0x228] sm:$0xff]
      %v2722 = vld [vmem:[%s2651 + $0x230] sm:$0xff]
      %v2723 = vld [vmem:[%s2651 + $0x238] sm:$0xff]
      %v2724 = vld [vmem:[%s2651 + $0x240] sm:$0xff]
      %v2725 = vld [vmem:[%s2651 + $0x248] sm:$0xff]
      %v2726 = vld [vmem:[%s2651 + $0x250] sm:$0xff]
      %v2727 = vld [vmem:[%s2651 + $0x258] sm:$0xff]
      %v2728 = vld [vmem:[%s2651 + $0x260] sm:$0xff]
      %v2729 = vld [vmem:[%s2651 + $0x268] sm:$0xff]
      %v2730 = vld [vmem:[%s2651 + $0x270] sm:$0xff]
      %v2731 = vld [vmem:[%s2651 + $0x278] sm:$0xff]
      %v2732 = vld [vmem:[%s2651 + $0x280] sm:$0xff]
      %v2733 = vld [vmem:[%s2651 + $0x288] sm:$0xff]
      %v2734 = vld [vmem:[%s2651 + $0x290] sm:$0xff]
      %v2735 = vld [vmem:[%s2651 + $0x298] sm:$0xff]
      %v2736 = vld [vmem:[%s2651 + $0x2a0] sm:$0xff]
      %v2737 = vld [vmem:[%s2651 + $0x2a8] sm:$0xff]
      %v2738 = vld [vmem:[%s2651 + $0x2b0] sm:$0xff]
      %v2739 = vld [vmem:[%s2651 + $0x2b8] sm:$0xff]
      %v2740 = vld [vmem:[%s2651 + $0x2c0] sm:$0xff]
      %v2741 = vld [vmem:[%s2651 + $0x2c8] sm:$0xff]
      %v2742 = vld [vmem:[%s2651 + $0x2d0] sm:$0xff]
      %v2743 = vld [vmem:[%s2651 + $0x2d8] sm:$0xff]
      %v2744 = vld [vmem:[%s2651 + $0x2e0] sm:$0xff]
      %v2745 = vld [vmem:[%s2651 + $0x2e8] sm:$0xff]
      %v2746 = vld [vmem:[%s2651 + $0x2f0] sm:$0xff]
      %v2747 = vld [vmem:[%s2651 + $0x2f8] sm:$0xff]
      %v2748 = vld [vmem:[%s2651 + $0x300] sm:$0xff]
      %v2749 = vld [vmem:[%s2651 + $0x308] sm:$0xff]
      %v2750 = vld [vmem:[%s2651 + $0x310] sm:$0xff]
      %v2751 = vld [vmem:[%s2651 + $0x318] sm:$0xff]
      %v2752 = vld [vmem:[%s2651 + $0x320] sm:$0xff]
      %v2753 = vld [vmem:[%s2651 + $0x328] sm:$0xff]
      %v2754 = vld [vmem:[%s2651 + $0x330] sm:$0xff]
      %v2755 = vld [vmem:[%s2651 + $0x338] sm:$0xff]
      %v2756 = vld [vmem:[%s2651 + $0x340] sm:$0xff]
      %v2757 = vld [vmem:[%s2651 + $0x348] sm:$0xff]
      %v2758 = vld [vmem:[%s2651 + $0x350] sm:$0xff]
      %v2759 = vld [vmem:[%s2651 + $0x358] sm:$0xff]
      %v2760 = vld [vmem:[%s2651 + $0x360] sm:$0xff]
      %v2761 = vld [vmem:[%s2651 + $0x368] sm:$0xff]
      %v2762 = vld [vmem:[%s2651 + $0x370] sm:$0xff]
      %v2763 = vld [vmem:[%s2651 + $0x378] sm:$0xff]
      %v2764 = vld [vmem:[%s2651 + $0x380] sm:$0xff]
      %v2765 = vld [vmem:[%s2651 + $0x388] sm:$0xff]
      %v2766 = vld [vmem:[%s2651 + $0x390] sm:$0xff]
      %v2767 = vld [vmem:[%s2651 + $0x398] sm:$0xff]
      %v2768 = vld [vmem:[%s2651 + $0x3a0] sm:$0xff]
      %v2769 = vld [vmem:[%s2651 + $0x3a8] sm:$0xff]
      %v2770 = vld [vmem:[%s2651 + $0x3b0] sm:$0xff]
      %v2771 = vld [vmem:[%s2651 + $0x3b8] sm:$0xff]
      %v2772 = vld [vmem:[%s2651 + $0x3c0] sm:$0xff]
      %v2773 = vld [vmem:[%s2651 + $0x3c8] sm:$0xff]
      %v2774 = vld [vmem:[%s2651 + $0x3d0] sm:$0xff]
      %v2775 = vld [vmem:[%s2651 + $0x3d8] sm:$0xff]
      %v2776 = vld [vmem:[%s2651 + $0x3e0] sm:$0xff]
      %v2777 = vld [vmem:[%s2651 + $0x3e8] sm:$0xff]
      %v2778 = vld [vmem:[%s2651 + $0x3f0] sm:$0xff]
      %v2779 = vld [vmem:[%s2651 + $0x3f8] sm:$0xff]
      %2780 = vmatprep.subr.mxu0 %v2683
      %2781 = vmatpush1.msra.mxu0 %v2682
      %2782 = vmatprep.subr.mxu0 %v2681
      %2783 = vmatpush1.msra.mxu0 %v2680
      %2784 = vmatprep.subr.mxu0 %v2679
      %2785 = vmatpush1.msra.mxu0 %v2678
      %2786 = vmatprep.subr.mxu0 %v2677
      %2787 = vmatpush1.msra.mxu0 %v2676
      %2788 = vmatprep.subr.mxu0 %v2675
      %2789 = vmatpush1.msra.mxu0 %v2674
      %2790 = vmatprep.subr.mxu0 %v2673
      %2791 = vmatpush1.msra.mxu0 %v2672
      %2792 = vmatprep.subr.mxu0 %v2671
      %2793 = vmatpush1.msra.mxu0 %v2670
      %2794 = vmatprep.subr.mxu0 %v2669
      %2795 = vmatpush1.msra.mxu0 %v2668
      %2796 = vmatprep.subr.mxu0 %v2667
      %2797 = vmatpush1.msra.mxu0 %v2666
      %2798 = vmatprep.subr.mxu0 %v2665
      %2799 = vmatpush1.msra.mxu0 %v2664
      %2800 = vmatprep.subr.mxu0 %v2663
      %2801 = vmatpush1.msra.mxu0 %v2662
      %2802 = vmatprep.subr.mxu0 %v2661
      %2803 = vmatpush1.msra.mxu0 %v2660
      %2804 = vmatprep.subr.mxu0 %v2659
      %2805 = vmatpush1.msra.mxu0 %v2658
      %2806 = vmatprep.subr.mxu0 %v2657
      %2807 = vmatpush1.msra.mxu0 %v2656
      %2808 = vmatprep.subr.mxu0 %v2655
      %2809 = vmatpush1.msra.mxu0 %v2654
      %2810 = vmatprep.subr.mxu0 %v2653
      %2811 = vmatpush1.msra.mxu0 %v2652
      %2812 = vmatprep.subr.mxu0 %v2715
      %2813 = vmatpush2.msra.mxu0 %v2714
      %2814 = vmatprep.subr.mxu0 %v2713
      %2815 = vmatpush2.msra.mxu0 %v2712
      %2816 = vmatprep.subr.mxu0 %v2711
      %2817 = vmatpush2.msra.mxu0 %v2710
      %2818 = vmatprep.subr.mxu0 %v2709
      %2819 = vmatpush2.msra.mxu0 %v2708
      %2820 = vmatprep.subr.mxu0 %v2707
      %2821 = vmatpush2.msra.mxu0 %v2706
      %2822 = vmatprep.subr.mxu0 %v2705
      %2823 = vmatpush2.msra.mxu0 %v2704
      %2824 = vmatprep.subr.mxu0 %v2703
      %2825 = vmatpush2.msra.mxu0 %v2702
      %2826 = vmatprep.subr.mxu0 %v2701
      %2827 = vmatpush2.msra.mxu0 %v2700
      %2828 = vmatprep.subr.mxu0 %v2699
      %2829 = vmatpush2.msra.mxu0 %v2698
      %2830 = vmatprep.subr.mxu0 %v2697
      %2831 = vmatpush2.msra.mxu0 %v2696
      %2832 = vmatprep.subr.mxu0 %v2695
      %2833 = vmatpush2.msra.mxu0 %v2694
      %2834 = vmatprep.subr.mxu0 %v2693
      %2835 = vmatpush2.msra.mxu0 %v2692
      %2836 = vmatprep.subr.mxu0 %v2691
      %2837 = vmatpush2.msra.mxu0 %v2690
      %2838 = vmatprep.subr.mxu0 %v2689
      %2839 = vmatpush2.msra.mxu0 %v2688
      %2840 = vmatprep.subr.mxu0 %v2687
      %2841 = vmatpush2.msra.mxu0 %v2686
      %2842 = vmatprep.subr.mxu0 %v2685
      %2843 = vmatpush2.msra.mxu0 %v2684
      %2844 = vmatprep.mubr.f32.mxu0 %v2578
      %2845 = vmatmul.mubr.f32.gmra.mxu0 %v2576
      %v2846 = vpop.f32.mrf.mxu0
      %v2847 = vadd.f32 0.0, %v2846
      %v2848 = vpop.f32.mrf.mxu0
      %v2849 = vadd.f32 0.0, %v2848
      %2850 = vdwg.mxu0
      %2851 = vmatprep.subr.mxu0 %v2747
      %2852 = vmatpush1.msra.mxu0 %v2746
      %2853 = vmatprep.subr.mxu0 %v2745
      %2854 = vmatpush1.msra.mxu0 %v2744
      %2855 = vmatprep.subr.mxu0 %v2743
      %2856 = vmatpush1.msra.mxu0 %v2742
      %2857 = vmatprep.subr.mxu0 %v2741
      %2858 = vmatpush1.msra.mxu0 %v2740
      %2859 = vmatprep.subr.mxu0 %v2739
      %2860 = vmatpush1.msra.mxu0 %v2738
      %2861 = vmatprep.subr.mxu0 %v2737
      %2862 = vmatpush1.msra.mxu0 %v2736
      %2863 = vmatprep.subr.mxu0 %v2735
      %2864 = vmatpush1.msra.mxu0 %v2734
      %2865 = vmatprep.subr.mxu0 %v2733
      %2866 = vmatpush1.msra.mxu0 %v2732
      %2867 = vmatprep.subr.mxu0 %v2731
      %2868 = vmatpush1.msra.mxu0 %v2730
      %2869 = vmatprep.subr.mxu0 %v2729
      %2870 = vmatpush1.msra.mxu0 %v2728
      %2871 = vmatprep.subr.mxu0 %v2727
      %2872 = vmatpush1.msra.mxu0 %v2726
      %2873 = vmatprep.subr.mxu0 %v2725
      %2874 = vmatpush1.msra.mxu0 %v2724
      %2875 = vmatprep.subr.mxu0 %v2723
      %2876 = vmatpush1.msra.mxu0 %v2722
      %2877 = vmatprep.subr.mxu0 %v2721
      %2878 = vmatpush1.msra.mxu0 %v2720
      %2879 = vmatprep.subr.mxu0 %v2719
      %2880 = vmatpush1.msra.mxu0 %v2718
      %2881 = vmatprep.subr.mxu0 %v2717
      %2882 = vmatpush1.msra.mxu0 %v2716
      %2883 = vmatprep.subr.mxu0 %v2779
      %2884 = vmatpush2.msra.mxu0 %v2778
      %2885 = vmatprep.subr.mxu0 %v2777
      %2886 = vmatpush2.msra.mxu0 %v2776
      %2887 = vmatprep.subr.mxu0 %v2775
      %2888 = vmatpush2.msra.mxu0 %v2774
      %2889 = vmatprep.subr.mxu0 %v2773
      %2890 = vmatpush2.msra.mxu0 %v2772
      %2891 = vmatprep.subr.mxu0 %v2771
      %2892 = vmatpush2.msra.mxu0 %v2770
      %2893 = vmatprep.subr.mxu0 %v2769
      %2894 = vmatpush2.msra.mxu0 %v2768
      %2895 = vmatprep.subr.mxu0 %v2767
      %2896 = vmatpush2.msra.mxu0 %v2766
      %2897 = vmatprep.subr.mxu0 %v2765
      %2898 = vmatpush2.msra.mxu0 %v2764
      %2899 = vmatprep.subr.mxu0 %v2763
      %2900 = vmatpush2.msra.mxu0 %v2762
      %2901 = vmatprep.subr.mxu0 %v2761
      %2902 = vmatpush2.msra.mxu0 %v2760
      %2903 = vmatprep.subr.mxu0 %v2759
      %2904 = vmatpush2.msra.mxu0 %v2758
      %2905 = vmatprep.subr.mxu0 %v2757
      %2906 = vmatpush2.msra.mxu0 %v2756
      %2907 = vmatprep.subr.mxu0 %v2755
      %2908 = vmatpush2.msra.mxu0 %v2754
      %2909 = vmatprep.subr.mxu0 %v2753
      %2910 = vmatpush2.msra.mxu0 %v2752
      %2911 = vmatprep.subr.mxu0 %v2751
      %2912 = vmatpush2.msra.mxu0 %v2750
      %2913 = vmatprep.subr.mxu0 %v2749
      %2914 = vmatpush2.msra.mxu0 %v2748
      %2915 = vmatprep.mubr.f32.mxu0 %v2649
      %2916 = vmatmul.mubr.f32.gmra.mxu0 %v2647
      %v2917 = vpop.f32.mrf.mxu0
      %v2918 = vadd.f32 %v2847, %v2917
      %v2919 = vpop.f32.mrf.mxu0
      %v2920 = vadd.f32 %v2849, %v2919
      %2921 = vdwg.mxu0
      %v2922 = vadd.f32 %v2500, %v2918
      %v2923 = vadd.f32 %v2502, %v2920
      %s2924 = scalar_lea.vmem %s4, 24
      %v2925 = vld [vmem:[%s2924] sm:$0xff]
      %v2927 = vsel %vm1670, %v2925, 0
      %2929 = vmatprep.subr.mxu0 0.0
      %2930 = vmatpush1.msra.mxu0 0.0
      %2931 = vmatprep.subr.mxu0 0.0
      %2932 = vmatpush1.msra.mxu0 0.0
      %2933 = vmatprep.subr.mxu0 0.0
      %2934 = vmatpush1.msra.mxu0 0.0
      %2935 = vmatprep.subr.mxu0 0.0
      %2936 = vmatpush1.msra.mxu0 0.0
      %2937 = vmatprep.subr.mxu0 0.0
      %2938 = vmatpush1.msra.mxu0 0.0
      %2939 = vmatprep.subr.mxu0 0.0
      %2940 = vmatpush1.msra.mxu0 0.0
      %2941 = vmatprep.subr.mxu0 0.0
      %2942 = vmatpush1.msra.mxu0 0.0
      %2943 = vmatprep.subr.mxu0 0.0
      %2944 = vmatpush1.msra.mxu0 0.0
      %2945 = vmatprep.subr.mxu0 0.0
      %2946 = vmatpush1.msra.mxu0 0.0
      %2947 = vmatprep.subr.mxu0 0.0
      %2948 = vmatpush1.msra.mxu0 0.0
      %2949 = vmatprep.subr.mxu0 0.0
      %2950 = vmatpush1.msra.mxu0 0.0
      %2951 = vmatprep.subr.mxu0 0.0
      %2952 = vmatpush1.msra.mxu0 0.0
      %2953 = vmatprep.subr.mxu0 0.0
      %2954 = vmatpush1.msra.mxu0 0.0
      %2955 = vmatprep.subr.mxu0 0.0
      %2956 = vmatpush1.msra.mxu0 0.0
      %2957 = vmatprep.subr.mxu0 %v1666
      %2958 = vmatpush1.msra.mxu0 %v1665
      %2959 = vmatprep.subr.mxu0 %v1662
      %2960 = vmatpush1.msra.mxu0 %v1661
      %2961 = vmatprep.subr.mxu0 0.0
      %2962 = vmatpush2.msra.mxu0 0.0
      %2963 = vmatprep.subr.mxu0 0.0
      %2964 = vmatpush2.msra.mxu0 0.0
      %2965 = vmatprep.subr.mxu0 0.0
      %2966 = vmatpush2.msra.mxu0 0.0
      %2967 = vmatprep.subr.mxu0 0.0
      %2968 = vmatpush2.msra.mxu0 0.0
      %2969 = vmatprep.subr.mxu0 0.0
      %2970 = vmatpush2.msra.mxu0 0.0
      %2971 = vmatprep.subr.mxu0 0.0
      %2972 = vmatpush2.msra.mxu0 0.0
      %2973 = vmatprep.subr.mxu0 0.0
      %2974 = vmatpush2.msra.mxu0 0.0
      %2975 = vmatprep.subr.mxu0 0.0
      %2976 = vmatpush2.msra.mxu0 0.0
      %2977 = vmatprep.subr.mxu0 0.0
      %2978 = vmatpush2.msra.mxu0 0.0
      %2979 = vmatprep.subr.mxu0 0.0
      %2980 = vmatpush2.msra.mxu0 0.0
      %2981 = vmatprep.subr.mxu0 0.0
      %2982 = vmatpush2.msra.mxu0 0.0
      %2983 = vmatprep.subr.mxu0 0.0
      %2984 = vmatpush2.msra.mxu0 0.0
      %2985 = vmatprep.subr.mxu0 0.0
      %2986 = vmatpush2.msra.mxu0 0.0
      %2987 = vmatprep.subr.mxu0 0.0
      %2988 = vmatpush2.msra.mxu0 0.0
      %2989 = vmatprep.subr.mxu0 0.0
      %2990 = vmatpush2.msra.mxu0 0.0
      %2991 = vmatprep.subr.mxu0 0.0
      %2992 = vmatpush2.msra.mxu0 0.0
      %2993 = vmatprep.mubr.f32.mxu0 0.0
      %2994 = vmatmul.mubr.f32.gmra.mxu0 %v2927
      %v2995 = vpop.f32.mrf.mxu0
      %v2996 = vadd.f32 0.0, %v2995
      %v2997 = vpop.f32.mrf.mxu0
      %v2998 = vadd.f32 0.0, %v2997
      %2999 = vdwg.mxu0
      %3000 = vmatprep.subr.mxu0 0.0
      %3001 = vmatpush1.msra.mxu0 0.0
      %3002 = vmatprep.subr.mxu0 0.0
      %3003 = vmatpush1.msra.mxu0 0.0
      %3004 = vmatprep.subr.mxu0 0.0
      %3005 = vmatpush1.msra.mxu0 0.0
      %3006 = vmatprep.subr.mxu0 0.0
      %3007 = vmatpush1.msra.mxu0 0.0
      %3008 = vmatprep.subr.mxu0 0.0
      %3009 = vmatpush1.msra.mxu0 0.0
      %3010 = vmatprep.subr.mxu0 0.0
      %3011 = vmatpush1.msra.mxu0 0.0
      %3012 = vmatprep.subr.mxu0 0.0
      %3013 = vmatpush1.msra.mxu0 0.0
      %3014 = vmatprep.subr.mxu0 0.0
      %3015 = vmatpush1.msra.mxu0 0.0
      %3016 = vmatprep.subr.mxu0 0.0
      %3017 = vmatpush1.msra.mxu0 0.0
      %3018 = vmatprep.subr.mxu0 0.0
      %3019 = vmatpush1.msra.mxu0 0.0
      %3020 = vmatprep.subr.mxu0 0.0
      %3021 = vmatpush1.msra.mxu0 0.0
      %3022 = vmatprep.subr.mxu0 0.0
      %3023 = vmatpush1.msra.mxu0 0.0
      %3024 = vmatprep.subr.mxu0 0.0
      %3025 = vmatpush1.msra.mxu0 0.0
      %3026 = vmatprep.subr.mxu0 0.0
      %3027 = vmatpush1.msra.mxu0 0.0
      %3028 = vmatprep.subr.mxu0 %v1668
      %3029 = vmatpush1.msra.mxu0 %v1667
      %3030 = vmatprep.subr.mxu0 %v1664
      %3031 = vmatpush1.msra.mxu0 %v1663
      %3032 = vmatprep.subr.mxu0 0.0
      %3033 = vmatpush2.msra.mxu0 0.0
      %3034 = vmatprep.subr.mxu0 0.0
      %3035 = vmatpush2.msra.mxu0 0.0
      %3036 = vmatprep.subr.mxu0 0.0
      %3037 = vmatpush2.msra.mxu0 0.0
      %3038 = vmatprep.subr.mxu0 0.0
      %3039 = vmatpush2.msra.mxu0 0.0
      %3040 = vmatprep.subr.mxu0 0.0
      %3041 = vmatpush2.msra.mxu0 0.0
      %3042 = vmatprep.subr.mxu0 0.0
      %3043 = vmatpush2.msra.mxu0 0.0
      %3044 = vmatprep.subr.mxu0 0.0
      %3045 = vmatpush2.msra.mxu0 0.0
      %3046 = vmatprep.subr.mxu0 0.0
      %3047 = vmatpush2.msra.mxu0 0.0
      %3048 = vmatprep.subr.mxu0 0.0
      %3049 = vmatpush2.msra.mxu0 0.0
      %3050 = vmatprep.subr.mxu0 0.0
      %3051 = vmatpush2.msra.mxu0 0.0
      %3052 = vmatprep.subr.mxu0 0.0
      %3053 = vmatpush2.msra.mxu0 0.0
      %3054 = vmatprep.subr.mxu0 0.0
      %3055 = vmatpush2.msra.mxu0 0.0
      %3056 = vmatprep.subr.mxu0 0.0
      %3057 = vmatpush2.msra.mxu0 0.0
      %3058 = vmatprep.subr.mxu0 0.0
      %3059 = vmatpush2.msra.mxu0 0.0
      %3060 = vmatprep.subr.mxu0 0.0
      %3061 = vmatpush2.msra.mxu0 0.0
      %3062 = vmatprep.subr.mxu0 0.0
      %3063 = vmatpush2.msra.mxu0 0.0
      %3064 = vmatprep.mubr.f32.mxu0 0.0
      %3065 = vmatmul.mubr.f32.gmra.mxu0 %v2927
      %v3066 = vpop.f32.mrf.mxu0
      %v3067 = vadd.f32 0.0, %v3066
      %v3068 = vpop.f32.mrf.mxu0
      %v3069 = vadd.f32 0.0, %v3068
      %3070 = vdwg.mxu0
      %s3071 = scalar_lea.vmem %s5, 3072
      %v3072 = vld [vmem:[%s3071] sm:$0xff]
      %v3073 = vld [vmem:[%s3071 + $0x8] sm:$0xff]
      %v3074 = vld [vmem:[%s3071 + $0x10] sm:$0xff]
      %v3075 = vld [vmem:[%s3071 + $0x18] sm:$0xff]
      %v3076 = vld [vmem:[%s3071 + $0x20] sm:$0xff]
      %v3077 = vld [vmem:[%s3071 + $0x28] sm:$0xff]
      %v3078 = vld [vmem:[%s3071 + $0x30] sm:$0xff]
      %v3079 = vld [vmem:[%s3071 + $0x38] sm:$0xff]
      %v3080 = vld [vmem:[%s3071 + $0x40] sm:$0xff]
      %v3081 = vld [vmem:[%s3071 + $0x48] sm:$0xff]
      %v3082 = vld [vmem:[%s3071 + $0x50] sm:$0xff]
      %v3083 = vld [vmem:[%s3071 + $0x58] sm:$0xff]
      %v3084 = vld [vmem:[%s3071 + $0x60] sm:$0xff]
      %v3085 = vld [vmem:[%s3071 + $0x68] sm:$0xff]
      %v3086 = vld [vmem:[%s3071 + $0x70] sm:$0xff]
      %v3087 = vld [vmem:[%s3071 + $0x78] sm:$0xff]
      %v3088 = vld [vmem:[%s3071 + $0x80] sm:$0xff]
      %v3089 = vld [vmem:[%s3071 + $0x88] sm:$0xff]
      %v3090 = vld [vmem:[%s3071 + $0x90] sm:$0xff]
      %v3091 = vld [vmem:[%s3071 + $0x98] sm:$0xff]
      %v3092 = vld [vmem:[%s3071 + $0xa0] sm:$0xff]
      %v3093 = vld [vmem:[%s3071 + $0xa8] sm:$0xff]
      %v3094 = vld [vmem:[%s3071 + $0xb0] sm:$0xff]
      %v3095 = vld [vmem:[%s3071 + $0xb8] sm:$0xff]
      %v3096 = vld [vmem:[%s3071 + $0xc0] sm:$0xff]
      %v3097 = vld [vmem:[%s3071 + $0xc8] sm:$0xff]
      %v3098 = vld [vmem:[%s3071 + $0xd0] sm:$0xff]
      %v3099 = vld [vmem:[%s3071 + $0xd8] sm:$0xff]
      %v3100 = vld [vmem:[%s3071 + $0xe0] sm:$0xff]
      %v3101 = vld [vmem:[%s3071 + $0xe8] sm:$0xff]
      %v3102 = vld [vmem:[%s3071 + $0xf0] sm:$0xff]
      %v3103 = vld [vmem:[%s3071 + $0xf8] sm:$0xff]
      %v3104 = vld [vmem:[%s3071 + $0x100] sm:$0xff]
      %v3105 = vld [vmem:[%s3071 + $0x108] sm:$0xff]
      %v3106 = vld [vmem:[%s3071 + $0x110] sm:$0xff]
      %v3107 = vld [vmem:[%s3071 + $0x118] sm:$0xff]
      %v3108 = vld [vmem:[%s3071 + $0x120] sm:$0xff]
      %v3109 = vld [vmem:[%s3071 + $0x128] sm:$0xff]
      %v3110 = vld [vmem:[%s3071 + $0x130] sm:$0xff]
      %v3111 = vld [vmem:[%s3071 + $0x138] sm:$0xff]
      %v3112 = vld [vmem:[%s3071 + $0x140] sm:$0xff]
      %v3113 = vld [vmem:[%s3071 + $0x148] sm:$0xff]
      %v3114 = vld [vmem:[%s3071 + $0x150] sm:$0xff]
      %v3115 = vld [vmem:[%s3071 + $0x158] sm:$0xff]
      %v3116 = vld [vmem:[%s3071 + $0x160] sm:$0xff]
      %v3117 = vld [vmem:[%s3071 + $0x168] sm:$0xff]
      %v3118 = vld [vmem:[%s3071 + $0x170] sm:$0xff]
      %v3119 = vld [vmem:[%s3071 + $0x178] sm:$0xff]
      %v3120 = vld [vmem:[%s3071 + $0x180] sm:$0xff]
      %v3121 = vld [vmem:[%s3071 + $0x188] sm:$0xff]
      %v3122 = vld [vmem:[%s3071 + $0x190] sm:$0xff]
      %v3123 = vld [vmem:[%s3071 + $0x198] sm:$0xff]
      %v3124 = vld [vmem:[%s3071 + $0x1a0] sm:$0xff]
      %v3125 = vld [vmem:[%s3071 + $0x1a8] sm:$0xff]
      %v3126 = vld [vmem:[%s3071 + $0x1b0] sm:$0xff]
      %v3127 = vld [vmem:[%s3071 + $0x1b8] sm:$0xff]
      %v3128 = vld [vmem:[%s3071 + $0x1c0] sm:$0xff]
      %v3129 = vld [vmem:[%s3071 + $0x1c8] sm:$0xff]
      %v3130 = vld [vmem:[%s3071 + $0x1d0] sm:$0xff]
      %v3131 = vld [vmem:[%s3071 + $0x1d8] sm:$0xff]
      %v3132 = vld [vmem:[%s3071 + $0x1e0] sm:$0xff]
      %v3133 = vld [vmem:[%s3071 + $0x1e8] sm:$0xff]
      %v3134 = vld [vmem:[%s3071 + $0x1f0] sm:$0xff]
      %v3135 = vld [vmem:[%s3071 + $0x1f8] sm:$0xff]
      %v3136 = vld [vmem:[%s3071 + $0x200] sm:$0xff]
      %v3137 = vld [vmem:[%s3071 + $0x208] sm:$0xff]
      %v3138 = vld [vmem:[%s3071 + $0x210] sm:$0xff]
      %v3139 = vld [vmem:[%s3071 + $0x218] sm:$0xff]
      %v3140 = vld [vmem:[%s3071 + $0x220] sm:$0xff]
      %v3141 = vld [vmem:[%s3071 + $0x228] sm:$0xff]
      %v3142 = vld [vmem:[%s3071 + $0x230] sm:$0xff]
      %v3143 = vld [vmem:[%s3071 + $0x238] sm:$0xff]
      %v3144 = vld [vmem:[%s3071 + $0x240] sm:$0xff]
      %v3145 = vld [vmem:[%s3071 + $0x248] sm:$0xff]
      %v3146 = vld [vmem:[%s3071 + $0x250] sm:$0xff]
      %v3147 = vld [vmem:[%s3071 + $0x258] sm:$0xff]
      %v3148 = vld [vmem:[%s3071 + $0x260] sm:$0xff]
      %v3149 = vld [vmem:[%s3071 + $0x268] sm:$0xff]
      %v3150 = vld [vmem:[%s3071 + $0x270] sm:$0xff]
      %v3151 = vld [vmem:[%s3071 + $0x278] sm:$0xff]
      %v3152 = vld [vmem:[%s3071 + $0x280] sm:$0xff]
      %v3153 = vld [vmem:[%s3071 + $0x288] sm:$0xff]
      %v3154 = vld [vmem:[%s3071 + $0x290] sm:$0xff]
      %v3155 = vld [vmem:[%s3071 + $0x298] sm:$0xff]
      %v3156 = vld [vmem:[%s3071 + $0x2a0] sm:$0xff]
      %v3157 = vld [vmem:[%s3071 + $0x2a8] sm:$0xff]
      %v3158 = vld [vmem:[%s3071 + $0x2b0] sm:$0xff]
      %v3159 = vld [vmem:[%s3071 + $0x2b8] sm:$0xff]
      %v3160 = vld [vmem:[%s3071 + $0x2c0] sm:$0xff]
      %v3161 = vld [vmem:[%s3071 + $0x2c8] sm:$0xff]
      %v3162 = vld [vmem:[%s3071 + $0x2d0] sm:$0xff]
      %v3163 = vld [vmem:[%s3071 + $0x2d8] sm:$0xff]
      %v3164 = vld [vmem:[%s3071 + $0x2e0] sm:$0xff]
      %v3165 = vld [vmem:[%s3071 + $0x2e8] sm:$0xff]
      %v3166 = vld [vmem:[%s3071 + $0x2f0] sm:$0xff]
      %v3167 = vld [vmem:[%s3071 + $0x2f8] sm:$0xff]
      %v3168 = vld [vmem:[%s3071 + $0x300] sm:$0xff]
      %v3169 = vld [vmem:[%s3071 + $0x308] sm:$0xff]
      %v3170 = vld [vmem:[%s3071 + $0x310] sm:$0xff]
      %v3171 = vld [vmem:[%s3071 + $0x318] sm:$0xff]
      %v3172 = vld [vmem:[%s3071 + $0x320] sm:$0xff]
      %v3173 = vld [vmem:[%s3071 + $0x328] sm:$0xff]
      %v3174 = vld [vmem:[%s3071 + $0x330] sm:$0xff]
      %v3175 = vld [vmem:[%s3071 + $0x338] sm:$0xff]
      %v3176 = vld [vmem:[%s3071 + $0x340] sm:$0xff]
      %v3177 = vld [vmem:[%s3071 + $0x348] sm:$0xff]
      %v3178 = vld [vmem:[%s3071 + $0x350] sm:$0xff]
      %v3179 = vld [vmem:[%s3071 + $0x358] sm:$0xff]
      %v3180 = vld [vmem:[%s3071 + $0x360] sm:$0xff]
      %v3181 = vld [vmem:[%s3071 + $0x368] sm:$0xff]
      %v3182 = vld [vmem:[%s3071 + $0x370] sm:$0xff]
      %v3183 = vld [vmem:[%s3071 + $0x378] sm:$0xff]
      %v3184 = vld [vmem:[%s3071 + $0x380] sm:$0xff]
      %v3185 = vld [vmem:[%s3071 + $0x388] sm:$0xff]
      %v3186 = vld [vmem:[%s3071 + $0x390] sm:$0xff]
      %v3187 = vld [vmem:[%s3071 + $0x398] sm:$0xff]
      %v3188 = vld [vmem:[%s3071 + $0x3a0] sm:$0xff]
      %v3189 = vld [vmem:[%s3071 + $0x3a8] sm:$0xff]
      %v3190 = vld [vmem:[%s3071 + $0x3b0] sm:$0xff]
      %v3191 = vld [vmem:[%s3071 + $0x3b8] sm:$0xff]
      %v3192 = vld [vmem:[%s3071 + $0x3c0] sm:$0xff]
      %v3193 = vld [vmem:[%s3071 + $0x3c8] sm:$0xff]
      %v3194 = vld [vmem:[%s3071 + $0x3d0] sm:$0xff]
      %v3195 = vld [vmem:[%s3071 + $0x3d8] sm:$0xff]
      %v3196 = vld [vmem:[%s3071 + $0x3e0] sm:$0xff]
      %v3197 = vld [vmem:[%s3071 + $0x3e8] sm:$0xff]
      %v3198 = vld [vmem:[%s3071 + $0x3f0] sm:$0xff]
      %v3199 = vld [vmem:[%s3071 + $0x3f8] sm:$0xff]
      %3200 = vmatprep.subr.mxu0 %v3103
      %3201 = vmatpush1.msra.mxu0 %v3102
      %3202 = vmatprep.subr.mxu0 %v3101
      %3203 = vmatpush1.msra.mxu0 %v3100
      %3204 = vmatprep.subr.mxu0 %v3099
      %3205 = vmatpush1.msra.mxu0 %v3098
      %3206 = vmatprep.subr.mxu0 %v3097
      %3207 = vmatpush1.msra.mxu0 %v3096
      %3208 = vmatprep.subr.mxu0 %v3095
      %3209 = vmatpush1.msra.mxu0 %v3094
      %3210 = vmatprep.subr.mxu0 %v3093
      %3211 = vmatpush1.msra.mxu0 %v3092
      %3212 = vmatprep.subr.mxu0 %v3091
      %3213 = vmatpush1.msra.mxu0 %v3090
      %3214 = vmatprep.subr.mxu0 %v3089
      %3215 = vmatpush1.msra.mxu0 %v3088
      %3216 = vmatprep.subr.mxu0 %v3087
      %3217 = vmatpush1.msra.mxu0 %v3086
      %3218 = vmatprep.subr.mxu0 %v3085
      %3219 = vmatpush1.msra.mxu0 %v3084
      %3220 = vmatprep.subr.mxu0 %v3083
      %3221 = vmatpush1.msra.mxu0 %v3082
      %3222 = vmatprep.subr.mxu0 %v3081
      %3223 = vmatpush1.msra.mxu0 %v3080
      %3224 = vmatprep.subr.mxu0 %v3079
      %3225 = vmatpush1.msra.mxu0 %v3078
      %3226 = vmatprep.subr.mxu0 %v3077
      %3227 = vmatpush1.msra.mxu0 %v3076
      %3228 = vmatprep.subr.mxu0 %v3075
      %3229 = vmatpush1.msra.mxu0 %v3074
      %3230 = vmatprep.subr.mxu0 %v3073
      %3231 = vmatpush1.msra.mxu0 %v3072
      %3232 = vmatprep.subr.mxu0 %v3135
      %3233 = vmatpush2.msra.mxu0 %v3134
      %3234 = vmatprep.subr.mxu0 %v3133
      %3235 = vmatpush2.msra.mxu0 %v3132
      %3236 = vmatprep.subr.mxu0 %v3131
      %3237 = vmatpush2.msra.mxu0 %v3130
      %3238 = vmatprep.subr.mxu0 %v3129
      %3239 = vmatpush2.msra.mxu0 %v3128
      %3240 = vmatprep.subr.mxu0 %v3127
      %3241 = vmatpush2.msra.mxu0 %v3126
      %3242 = vmatprep.subr.mxu0 %v3125
      %3243 = vmatpush2.msra.mxu0 %v3124
      %3244 = vmatprep.subr.mxu0 %v3123
      %3245 = vmatpush2.msra.mxu0 %v3122
      %3246 = vmatprep.subr.mxu0 %v3121
      %3247 = vmatpush2.msra.mxu0 %v3120
      %3248 = vmatprep.subr.mxu0 %v3119
      %3249 = vmatpush2.msra.mxu0 %v3118
      %3250 = vmatprep.subr.mxu0 %v3117
      %3251 = vmatpush2.msra.mxu0 %v3116
      %3252 = vmatprep.subr.mxu0 %v3115
      %3253 = vmatpush2.msra.mxu0 %v3114
      %3254 = vmatprep.subr.mxu0 %v3113
      %3255 = vmatpush2.msra.mxu0 %v3112
      %3256 = vmatprep.subr.mxu0 %v3111
      %3257 = vmatpush2.msra.mxu0 %v3110
      %3258 = vmatprep.subr.mxu0 %v3109
      %3259 = vmatpush2.msra.mxu0 %v3108
      %3260 = vmatprep.subr.mxu0 %v3107
      %3261 = vmatpush2.msra.mxu0 %v3106
      %3262 = vmatprep.subr.mxu0 %v3105
      %3263 = vmatpush2.msra.mxu0 %v3104
      %3264 = vmatprep.mubr.f32.mxu0 %v2998
      %3265 = vmatmul.mubr.f32.gmra.mxu0 %v2996
      %v3266 = vpop.f32.mrf.mxu0
      %v3267 = vadd.f32 0.0, %v3266
      %v3268 = vpop.f32.mrf.mxu0
      %v3269 = vadd.f32 0.0, %v3268
      %3270 = vdwg.mxu0
      %3271 = vmatprep.subr.mxu0 %v3167
      %3272 = vmatpush1.msra.mxu0 %v3166
      %3273 = vmatprep.subr.mxu0 %v3165
      %3274 = vmatpush1.msra.mxu0 %v3164
      %3275 = vmatprep.subr.mxu0 %v3163
      %3276 = vmatpush1.msra.mxu0 %v3162
      %3277 = vmatprep.subr.mxu0 %v3161
      %3278 = vmatpush1.msra.mxu0 %v3160
      %3279 = vmatprep.subr.mxu0 %v3159
      %3280 = vmatpush1.msra.mxu0 %v3158
      %3281 = vmatprep.subr.mxu0 %v3157
      %3282 = vmatpush1.msra.mxu0 %v3156
      %3283 = vmatprep.subr.mxu0 %v3155
      %3284 = vmatpush1.msra.mxu0 %v3154
      %3285 = vmatprep.subr.mxu0 %v3153
      %3286 = vmatpush1.msra.mxu0 %v3152
      %3287 = vmatprep.subr.mxu0 %v3151
      %3288 = vmatpush1.msra.mxu0 %v3150
      %3289 = vmatprep.subr.mxu0 %v3149
      %3290 = vmatpush1.msra.mxu0 %v3148
      %3291 = vmatprep.subr.mxu0 %v3147
      %3292 = vmatpush1.msra.mxu0 %v3146
      %3293 = vmatprep.subr.mxu0 %v3145
      %3294 = vmatpush1.msra.mxu0 %v3144
      %3295 = vmatprep.subr.mxu0 %v3143
      %3296 = vmatpush1.msra.mxu0 %v3142
      %3297 = vmatprep.subr.mxu0 %v3141
      %3298 = vmatpush1.msra.mxu0 %v3140
      %3299 = vmatprep.subr.mxu0 %v3139
      %3300 = vmatpush1.msra.mxu0 %v3138
      %3301 = vmatprep.subr.mxu0 %v3137
      %3302 = vmatpush1.msra.mxu0 %v3136
      %3303 = vmatprep.subr.mxu0 %v3199
      %3304 = vmatpush2.msra.mxu0 %v3198
      %3305 = vmatprep.subr.mxu0 %v3197
      %3306 = vmatpush2.msra.mxu0 %v3196
      %3307 = vmatprep.subr.mxu0 %v3195
      %3308 = vmatpush2.msra.mxu0 %v3194
      %3309 = vmatprep.subr.mxu0 %v3193
      %3310 = vmatpush2.msra.mxu0 %v3192
      %3311 = vmatprep.subr.mxu0 %v3191
      %3312 = vmatpush2.msra.mxu0 %v3190
      %3313 = vmatprep.subr.mxu0 %v3189
      %3314 = vmatpush2.msra.mxu0 %v3188
      %3315 = vmatprep.subr.mxu0 %v3187
      %3316 = vmatpush2.msra.mxu0 %v3186
      %3317 = vmatprep.subr.mxu0 %v3185
      %3318 = vmatpush2.msra.mxu0 %v3184
      %3319 = vmatprep.subr.mxu0 %v3183
      %3320 = vmatpush2.msra.mxu0 %v3182
      %3321 = vmatprep.subr.mxu0 %v3181
      %3322 = vmatpush2.msra.mxu0 %v3180
      %3323 = vmatprep.subr.mxu0 %v3179
      %3324 = vmatpush2.msra.mxu0 %v3178
      %3325 = vmatprep.subr.mxu0 %v3177
      %3326 = vmatpush2.msra.mxu0 %v3176
      %3327 = vmatprep.subr.mxu0 %v3175
      %3328 = vmatpush2.msra.mxu0 %v3174
      %3329 = vmatprep.subr.mxu0 %v3173
      %3330 = vmatpush2.msra.mxu0 %v3172
      %3331 = vmatprep.subr.mxu0 %v3171
      %3332 = vmatpush2.msra.mxu0 %v3170
      %3333 = vmatprep.subr.mxu0 %v3169
      %3334 = vmatpush2.msra.mxu0 %v3168
      %3335 = vmatprep.mubr.f32.mxu0 %v3069
      %3336 = vmatmul.mubr.f32.gmra.mxu0 %v3067
      %v3337 = vpop.f32.mrf.mxu0
      %v3338 = vadd.f32 %v3267, %v3337
      %v3339 = vpop.f32.mrf.mxu0
      %v3340 = vadd.f32 %v3269, %v3339
      %3341 = vdwg.mxu0
      %v3342 = vadd.f32 %v2922, %v3338
      %v3343 = vadd.f32 %v2923, %v3340
      %v3344 = vld [vmem:[%s6] sm:$0x3]
      %v3346 = vlaneseq
      %v3347 = vshrl.u32 %v3346, 7
      %v3348 = vsub.s32 0, %v3347
      %v3349 = vrot.slane %v3344, %v3348
      %v3350 = vlaneseq
      %v3351 = vshrl.u32 %v3350, 7
      %v3352 = vsub.s32 1, %v3351
      %v3353 = vrot.slane %v3344, %v3352
      %v3356 = vadd.f32 %v3342, %v3349
      %v3357 = vadd.f32 %v3343, %v3353
      %v3358 = vmax.f32 %v3356, 0.0
      %v3359 = vmax.f32 %v3357, 0.0
      %v3360 = vld [vmem:[%s7] sm:$0xf]
      %vm3361 = vcmask 64512
      %v3363 = vsel %vm3361, %v3360, 0
      %3365 = vmatprep.subr.mxu0 0.0
      %3366 = vmatpush1.msra.mxu0 0.0
      %3367 = vmatprep.subr.mxu0 0.0
      %3368 = vmatpush1.msra.mxu0 0.0
      %3369 = vmatprep.subr.mxu0 0.0
      %3370 = vmatpush1.msra.mxu0 0.0
      %3371 = vmatprep.subr.mxu0 0.0
      %3372 = vmatpush1.msra.mxu0 0.0
      %3373 = vmatprep.subr.mxu0 0.0
      %3374 = vmatpush1.msra.mxu0 0.0
      %3375 = vmatprep.subr.mxu0 0.0
      %3376 = vmatpush1.msra.mxu0 0.0
      %3377 = vmatprep.subr.mxu0 0.0
      %3378 = vmatpush1.msra.mxu0 0.0
      %3379 = vmatprep.subr.mxu0 0.0
      %3380 = vmatpush1.msra.mxu0 0.0
      %3381 = vmatprep.subr.mxu0 0.0
      %3382 = vmatpush1.msra.mxu0 0.0
      %3383 = vmatprep.subr.mxu0 0.0
      %3384 = vmatpush1.msra.mxu0 0.0
      %3385 = vmatprep.subr.mxu0 0.0
      %3386 = vmatpush1.msra.mxu0 0.0
      %3387 = vmatprep.subr.mxu0 0.0
      %3388 = vmatpush1.msra.mxu0 0.0
      %3389 = vmatprep.subr.mxu0 0.0
      %3390 = vmatpush1.msra.mxu0 0.0
      %3391 = vmatprep.subr.mxu0 0.0
      %3392 = vmatpush1.msra.mxu0 0.0
      %3393 = vmatprep.subr.mxu0 0.0
      %3394 = vmatpush1.msra.mxu0 0.0
      %3395 = vmatprep.subr.mxu0 %v3359
      %3396 = vmatpush1.msra.mxu0 %v3358
      %3397 = vmatprep.subr.mxu0 0.0
      %3398 = vmatpush2.msra.mxu0 0.0
      %3399 = vmatprep.subr.mxu0 0.0
      %3400 = vmatpush2.msra.mxu0 0.0
      %3401 = vmatprep.subr.mxu0 0.0
      %3402 = vmatpush2.msra.mxu0 0.0
      %3403 = vmatprep.subr.mxu0 0.0
      %3404 = vmatpush2.msra.mxu0 0.0
      %3405 = vmatprep.subr.mxu0 0.0
      %3406 = vmatpush2.msra.mxu0 0.0
      %3407 = vmatprep.subr.mxu0 0.0
      %3408 = vmatpush2.msra.mxu0 0.0
      %3409 = vmatprep.subr.mxu0 0.0
      %3410 = vmatpush2.msra.mxu0 0.0
      %3411 = vmatprep.subr.mxu0 0.0
      %3412 = vmatpush2.msra.mxu0 0.0
      %3413 = vmatprep.subr.mxu0 0.0
      %3414 = vmatpush2.msra.mxu0 0.0
      %3415 = vmatprep.subr.mxu0 0.0
      %3416 = vmatpush2.msra.mxu0 0.0
      %3417 = vmatprep.subr.mxu0 0.0
      %3418 = vmatpush2.msra.mxu0 0.0
      %3419 = vmatprep.subr.mxu0 0.0
      %3420 = vmatpush2.msra.mxu0 0.0
      %3421 = vmatprep.subr.mxu0 0.0
      %3422 = vmatpush2.msra.mxu0 0.0
      %3423 = vmatprep.subr.mxu0 0.0
      %3424 = vmatpush2.msra.mxu0 0.0
      %3425 = vmatprep.subr.mxu0 0.0
      %3426 = vmatpush2.msra.mxu0 0.0
      %3427 = vmatprep.subr.mxu0 0.0
      %3428 = vmatpush2.msra.mxu0 0.0
      %3429 = vmatprep.mubr.f32.mxu0 0.0
      %3430 = vmatmul.mubr.f32.gmra.mxu0 %v3363
      %v3431 = vpop.f32.mrf.mxu0
      %v3432 = vadd.f32 0.0, %v3431
      %v3433 = vpop.f32.mrf.mxu0
      %v3434 = vadd.f32 0.0, %v3433
      %3435 = vdwg.mxu0
      %v3436 = vld [vmem:[%s8] sm:$0xff]
      %v3437 = vld [vmem:[%s8 + $0x8] sm:$0xff]
      %v3438 = vld [vmem:[%s8 + $0x10] sm:$0xff]
      %v3439 = vld [vmem:[%s8 + $0x18] sm:$0xff]
      %v3440 = vld [vmem:[%s8 + $0x20] sm:$0xff]
      %v3441 = vld [vmem:[%s8 + $0x28] sm:$0xff]
      %v3442 = vld [vmem:[%s8 + $0x30] sm:$0xff]
      %v3443 = vld [vmem:[%s8 + $0x38] sm:$0xff]
      %v3444 = vld [vmem:[%s8 + $0x40] sm:$0xff]
      %v3445 = vld [vmem:[%s8 + $0x48] sm:$0xff]
      %v3446 = vld [vmem:[%s8 + $0x50] sm:$0xff]
      %v3447 = vld [vmem:[%s8 + $0x58] sm:$0xff]
      %v3448 = vld [vmem:[%s8 + $0x60] sm:$0xff]
      %v3449 = vld [vmem:[%s8 + $0x68] sm:$0xff]
      %v3450 = vld [vmem:[%s8 + $0x70] sm:$0xff]
      %v3451 = vld [vmem:[%s8 + $0x78] sm:$0xff]
      %v3452 = vld [vmem:[%s8 + $0x80] sm:$0xff]
      %v3453 = vld [vmem:[%s8 + $0x88] sm:$0xff]
      %v3454 = vld [vmem:[%s8 + $0x90] sm:$0xff]
      %v3455 = vld [vmem:[%s8 + $0x98] sm:$0xff]
      %v3456 = vld [vmem:[%s8 + $0xa0] sm:$0xff]
      %v3457 = vld [vmem:[%s8 + $0xa8] sm:$0xff]
      %v3458 = vld [vmem:[%s8 + $0xb0] sm:$0xff]
      %v3459 = vld [vmem:[%s8 + $0xb8] sm:$0xff]
      %v3460 = vld [vmem:[%s8 + $0xc0] sm:$0xff]
      %v3461 = vld [vmem:[%s8 + $0xc8] sm:$0xff]
      %v3462 = vld [vmem:[%s8 + $0xd0] sm:$0xff]
      %v3463 = vld [vmem:[%s8 + $0xd8] sm:$0xff]
      %v3464 = vld [vmem:[%s8 + $0xe0] sm:$0xff]
      %v3465 = vld [vmem:[%s8 + $0xe8] sm:$0xff]
      %v3466 = vld [vmem:[%s8 + $0xf0] sm:$0xff]
      %v3467 = vld [vmem:[%s8 + $0xf8] sm:$0xff]
      %v3468 = vld [vmem:[%s8 + $0x100] sm:$0xff]
      %v3469 = vld [vmem:[%s8 + $0x108] sm:$0xff]
      %v3470 = vld [vmem:[%s8 + $0x110] sm:$0xff]
      %v3471 = vld [vmem:[%s8 + $0x118] sm:$0xff]
      %v3472 = vld [vmem:[%s8 + $0x120] sm:$0xff]
      %v3473 = vld [vmem:[%s8 + $0x128] sm:$0xff]
      %v3474 = vld [vmem:[%s8 + $0x130] sm:$0xff]
      %v3475 = vld [vmem:[%s8 + $0x138] sm:$0xff]
      %v3476 = vld [vmem:[%s8 + $0x140] sm:$0xff]
      %v3477 = vld [vmem:[%s8 + $0x148] sm:$0xff]
      %v3478 = vld [vmem:[%s8 + $0x150] sm:$0xff]
      %v3479 = vld [vmem:[%s8 + $0x158] sm:$0xff]
      %v3480 = vld [vmem:[%s8 + $0x160] sm:$0xff]
      %v3481 = vld [vmem:[%s8 + $0x168] sm:$0xff]
      %v3482 = vld [vmem:[%s8 + $0x170] sm:$0xff]
      %v3483 = vld [vmem:[%s8 + $0x178] sm:$0xff]
      %v3484 = vld [vmem:[%s8 + $0x180] sm:$0xff]
      %v3485 = vld [vmem:[%s8 + $0x188] sm:$0xff]
      %v3486 = vld [vmem:[%s8 + $0x190] sm:$0xff]
      %v3487 = vld [vmem:[%s8 + $0x198] sm:$0xff]
      %v3488 = vld [vmem:[%s8 + $0x1a0] sm:$0xff]
      %v3489 = vld [vmem:[%s8 + $0x1a8] sm:$0xff]
      %v3490 = vld [vmem:[%s8 + $0x1b0] sm:$0xff]
      %v3491 = vld [vmem:[%s8 + $0x1b8] sm:$0xff]
      %v3492 = vld [vmem:[%s8 + $0x1c0] sm:$0xff]
      %v3493 = vld [vmem:[%s8 + $0x1c8] sm:$0xff]
      %v3494 = vld [vmem:[%s8 + $0x1d0] sm:$0xff]
      %v3495 = vld [vmem:[%s8 + $0x1d8] sm:$0xff]
      %v3496 = vld [vmem:[%s8 + $0x1e0] sm:$0xff]
      %v3497 = vld [vmem:[%s8 + $0x1e8] sm:$0xff]
      %v3498 = vld [vmem:[%s8 + $0x1f0] sm:$0xff]
      %v3499 = vld [vmem:[%s8 + $0x1f8] sm:$0xff]
      %s3500 = scalar_lea.vmem %s7, 4
      %v3501 = vld [vmem:[%s3500] sm:$0xf]
      %v3503 = vsel %vm3361, %v3501, 0
      %3505 = vmatprep.subr.mxu0 0.0
      %3506 = vmatpush1.msra.mxu0 0.0
      %3507 = vmatprep.subr.mxu0 0.0
      %3508 = vmatpush1.msra.mxu0 0.0
      %3509 = vmatprep.subr.mxu0 0.0
      %3510 = vmatpush1.msra.mxu0 0.0
      %3511 = vmatprep.subr.mxu0 0.0
      %3512 = vmatpush1.msra.mxu0 0.0
      %3513 = vmatprep.subr.mxu0 0.0
      %3514 = vmatpush1.msra.mxu0 0.0
      %3515 = vmatprep.subr.mxu0 0.0
      %3516 = vmatpush1.msra.mxu0 0.0
      %3517 = vmatprep.subr.mxu0 0.0
      %3518 = vmatpush1.msra.mxu0 0.0
      %3519 = vmatprep.subr.mxu0 0.0
      %3520 = vmatpush1.msra.mxu0 0.0
      %3521 = vmatprep.subr.mxu0 0.0
      %3522 = vmatpush1.msra.mxu0 0.0
      %3523 = vmatprep.subr.mxu0 0.0
      %3524 = vmatpush1.msra.mxu0 0.0
      %3525 = vmatprep.subr.mxu0 0.0
      %3526 = vmatpush1.msra.mxu0 0.0
      %3527 = vmatprep.subr.mxu0 0.0
      %3528 = vmatpush1.msra.mxu0 0.0
      %3529 = vmatprep.subr.mxu0 0.0
      %3530 = vmatpush1.msra.mxu0 0.0
      %3531 = vmatprep.subr.mxu0 0.0
      %3532 = vmatpush1.msra.mxu0 0.0
      %3533 = vmatprep.subr.mxu0 0.0
      %3534 = vmatpush1.msra.mxu0 0.0
      %3535 = vmatprep.subr.mxu0 %v3359
      %3536 = vmatpush1.msra.mxu0 %v3358
      %3537 = vmatprep.subr.mxu0 0.0
      %3538 = vmatpush2.msra.mxu0 0.0
      %3539 = vmatprep.subr.mxu0 0.0
      %3540 = vmatpush2.msra.mxu0 0.0
      %3541 = vmatprep.subr.mxu0 0.0
      %3542 = vmatpush2.msra.mxu0 0.0
      %3543 = vmatprep.subr.mxu0 0.0
      %3544 = vmatpush2.msra.mxu0 0.0
      %3545 = vmatprep.subr.mxu0 0.0
      %3546 = vmatpush2.msra.mxu0 0.0
      %3547 = vmatprep.subr.mxu0 0.0
      %3548 = vmatpush2.msra.mxu0 0.0
      %3549 = vmatprep.subr.mxu0 0.0
      %3550 = vmatpush2.msra.mxu0 0.0
      %3551 = vmatprep.subr.mxu0 0.0
      %3552 = vmatpush2.msra.mxu0 0.0
      %3553 = vmatprep.subr.mxu0 0.0
      %3554 = vmatpush2.msra.mxu0 0.0
      %3555 = vmatprep.subr.mxu0 0.0
      %3556 = vmatpush2.msra.mxu0 0.0
      %3557 = vmatprep.subr.mxu0 0.0
      %3558 = vmatpush2.msra.mxu0 0.0
      %3559 = vmatprep.subr.mxu0 0.0
      %3560 = vmatpush2.msra.mxu0 0.0
      %3561 = vmatprep.subr.mxu0 0.0
      %3562 = vmatpush2.msra.mxu0 0.0
      %3563 = vmatprep.subr.mxu0 0.0
      %3564 = vmatpush2.msra.mxu0 0.0
      %3565 = vmatprep.subr.mxu0 0.0
      %3566 = vmatpush2.msra.mxu0 0.0
      %3567 = vmatprep.subr.mxu0 0.0
      %3568 = vmatpush2.msra.mxu0 0.0
      %3569 = vmatprep.mubr.f32.mxu0 0.0
      %3570 = vmatmul.mubr.f32.gmra.mxu0 %v3503
      %v3571 = vpop.f32.mrf.mxu0
      %v3572 = vadd.f32 0.0, %v3571
      %v3573 = vpop.f32.mrf.mxu0
      %v3574 = vadd.f32 0.0, %v3573
      %3575 = vdwg.mxu0
      %s3576 = scalar_lea.vmem %s8, 512
      %v3577 = vld [vmem:[%s3576] sm:$0xff]
      %v3578 = vld [vmem:[%s3576 + $0x8] sm:$0xff]
      %v3579 = vld [vmem:[%s3576 + $0x10] sm:$0xff]
      %v3580 = vld [vmem:[%s3576 + $0x18] sm:$0xff]
      %v3581 = vld [vmem:[%s3576 + $0x20] sm:$0xff]
      %v3582 = vld [vmem:[%s3576 + $0x28] sm:$0xff]
      %v3583 = vld [vmem:[%s3576 + $0x30] sm:$0xff]
      %v3584 = vld [vmem:[%s3576 + $0x38] sm:$0xff]
      %v3585 = vld [vmem:[%s3576 + $0x40] sm:$0xff]
      %v3586 = vld [vmem:[%s3576 + $0x48] sm:$0xff]
      %v3587 = vld [vmem:[%s3576 + $0x50] sm:$0xff]
      %v3588 = vld [vmem:[%s3576 + $0x58] sm:$0xff]
      %v3589 = vld [vmem:[%s3576 + $0x60] sm:$0xff]
      %v3590 = vld [vmem:[%s3576 + $0x68] sm:$0xff]
      %v3591 = vld [vmem:[%s3576 + $0x70] sm:$0xff]
      %v3592 = vld [vmem:[%s3576 + $0x78] sm:$0xff]
      %v3593 = vld [vmem:[%s3576 + $0x80] sm:$0xff]
      %v3594 = vld [vmem:[%s3576 + $0x88] sm:$0xff]
      %v3595 = vld [vmem:[%s3576 + $0x90] sm:$0xff]
      %v3596 = vld [vmem:[%s3576 + $0x98] sm:$0xff]
      %v3597 = vld [vmem:[%s3576 + $0xa0] sm:$0xff]
      %v3598 = vld [vmem:[%s3576 + $0xa8] sm:$0xff]
      %v3599 = vld [vmem:[%s3576 + $0xb0] sm:$0xff]
      %v3600 = vld [vmem:[%s3576 + $0xb8] sm:$0xff]
      %v3601 = vld [vmem:[%s3576 + $0xc0] sm:$0xff]
      %v3602 = vld [vmem:[%s3576 + $0xc8] sm:$0xff]
      %v3603 = vld [vmem:[%s3576 + $0xd0] sm:$0xff]
      %v3604 = vld [vmem:[%s3576 + $0xd8] sm:$0xff]
      %v3605 = vld [vmem:[%s3576 + $0xe0] sm:$0xff]
      %v3606 = vld [vmem:[%s3576 + $0xe8] sm:$0xff]
      %v3607 = vld [vmem:[%s3576 + $0xf0] sm:$0xff]
      %v3608 = vld [vmem:[%s3576 + $0xf8] sm:$0xff]
      %v3609 = vld [vmem:[%s3576 + $0x100] sm:$0xff]
      %v3610 = vld [vmem:[%s3576 + $0x108] sm:$0xff]
      %v3611 = vld [vmem:[%s3576 + $0x110] sm:$0xff]
      %v3612 = vld [vmem:[%s3576 + $0x118] sm:$0xff]
      %v3613 = vld [vmem:[%s3576 + $0x120] sm:$0xff]
      %v3614 = vld [vmem:[%s3576 + $0x128] sm:$0xff]
      %v3615 = vld [vmem:[%s3576 + $0x130] sm:$0xff]
      %v3616 = vld [vmem:[%s3576 + $0x138] sm:$0xff]
      %v3617 = vld [vmem:[%s3576 + $0x140] sm:$0xff]
      %v3618 = vld [vmem:[%s3576 + $0x148] sm:$0xff]
      %v3619 = vld [vmem:[%s3576 + $0x150] sm:$0xff]
      %v3620 = vld [vmem:[%s3576 + $0x158] sm:$0xff]
      %v3621 = vld [vmem:[%s3576 + $0x160] sm:$0xff]
      %v3622 = vld [vmem:[%s3576 + $0x168] sm:$0xff]
      %v3623 = vld [vmem:[%s3576 + $0x170] sm:$0xff]
      %v3624 = vld [vmem:[%s3576 + $0x178] sm:$0xff]
      %v3625 = vld [vmem:[%s3576 + $0x180] sm:$0xff]
      %v3626 = vld [vmem:[%s3576 + $0x188] sm:$0xff]
      %v3627 = vld [vmem:[%s3576 + $0x190] sm:$0xff]
      %v3628 = vld [vmem:[%s3576 + $0x198] sm:$0xff]
      %v3629 = vld [vmem:[%s3576 + $0x1a0] sm:$0xff]
      %v3630 = vld [vmem:[%s3576 + $0x1a8] sm:$0xff]
      %v3631 = vld [vmem:[%s3576 + $0x1b0] sm:$0xff]
      %v3632 = vld [vmem:[%s3576 + $0x1b8] sm:$0xff]
      %v3633 = vld [vmem:[%s3576 + $0x1c0] sm:$0xff]
      %v3634 = vld [vmem:[%s3576 + $0x1c8] sm:$0xff]
      %v3635 = vld [vmem:[%s3576 + $0x1d0] sm:$0xff]
      %v3636 = vld [vmem:[%s3576 + $0x1d8] sm:$0xff]
      %v3637 = vld [vmem:[%s3576 + $0x1e0] sm:$0xff]
      %v3638 = vld [vmem:[%s3576 + $0x1e8] sm:$0xff]
      %v3639 = vld [vmem:[%s3576 + $0x1f0] sm:$0xff]
      %v3640 = vld [vmem:[%s3576 + $0x1f8] sm:$0xff]
      %3641 = vmatprep.subr.mxu0 %v3608
      %3642 = vmatpush1.msra.mxu0 %v3607
      %3643 = vmatprep.subr.mxu0 %v3606
      %3644 = vmatpush1.msra.mxu0 %v3605
      %3645 = vmatprep.subr.mxu0 %v3604
      %3646 = vmatpush1.msra.mxu0 %v3603
      %3647 = vmatprep.subr.mxu0 %v3602
      %3648 = vmatpush1.msra.mxu0 %v3601
      %3649 = vmatprep.subr.mxu0 %v3600
      %3650 = vmatpush1.msra.mxu0 %v3599
      %3651 = vmatprep.subr.mxu0 %v3598
      %3652 = vmatpush1.msra.mxu0 %v3597
      %3653 = vmatprep.subr.mxu0 %v3596
      %3654 = vmatpush1.msra.mxu0 %v3595
      %3655 = vmatprep.subr.mxu0 %v3594
      %3656 = vmatpush1.msra.mxu0 %v3593
      %3657 = vmatprep.subr.mxu0 %v3592
      %3658 = vmatpush1.msra.mxu0 %v3591
      %3659 = vmatprep.subr.mxu0 %v3590
      %3660 = vmatpush1.msra.mxu0 %v3589
      %3661 = vmatprep.subr.mxu0 %v3588
      %3662 = vmatpush1.msra.mxu0 %v3587
      %3663 = vmatprep.subr.mxu0 %v3586
      %3664 = vmatpush1.msra.mxu0 %v3585
      %3665 = vmatprep.subr.mxu0 %v3584
      %3666 = vmatpush1.msra.mxu0 %v3583
      %3667 = vmatprep.subr.mxu0 %v3582
      %3668 = vmatpush1.msra.mxu0 %v3581
      %3669 = vmatprep.subr.mxu0 %v3580
      %3670 = vmatpush1.msra.mxu0 %v3579
      %3671 = vmatprep.subr.mxu0 %v3578
      %3672 = vmatpush1.msra.mxu0 %v3577
      %3673 = vmatprep.subr.mxu0 %v3640
      %3674 = vmatpush2.msra.mxu0 %v3639
      %3675 = vmatprep.subr.mxu0 %v3638
      %3676 = vmatpush2.msra.mxu0 %v3637
      %3677 = vmatprep.subr.mxu0 %v3636
      %3678 = vmatpush2.msra.mxu0 %v3635
      %3679 = vmatprep.subr.mxu0 %v3634
      %3680 = vmatpush2.msra.mxu0 %v3633
      %3681 = vmatprep.subr.mxu0 %v3632
      %3682 = vmatpush2.msra.mxu0 %v3631
      %3683 = vmatprep.subr.mxu0 %v3630
      %3684 = vmatpush2.msra.mxu0 %v3629
      %3685 = vmatprep.subr.mxu0 %v3628
      %3686 = vmatpush2.msra.mxu0 %v3627
      %3687 = vmatprep.subr.mxu0 %v3626
      %3688 = vmatpush2.msra.mxu0 %v3625
      %3689 = vmatprep.subr.mxu0 %v3624
      %3690 = vmatpush2.msra.mxu0 %v3623
      %3691 = vmatprep.subr.mxu0 %v3622
      %3692 = vmatpush2.msra.mxu0 %v3621
      %3693 = vmatprep.subr.mxu0 %v3620
      %3694 = vmatpush2.msra.mxu0 %v3619
      %3695 = vmatprep.subr.mxu0 %v3618
      %3696 = vmatpush2.msra.mxu0 %v3617
      %3697 = vmatprep.subr.mxu0 %v3616
      %3698 = vmatpush2.msra.mxu0 %v3615
      %3699 = vmatprep.subr.mxu0 %v3614
      %3700 = vmatpush2.msra.mxu0 %v3613
      %3701 = vmatprep.subr.mxu0 %v3612
      %3702 = vmatpush2.msra.mxu0 %v3611
      %3703 = vmatprep.subr.mxu0 %v3610
      %3704 = vmatpush2.msra.mxu0 %v3609
      %3705 = vmatprep.mubr.f32.mxu0 %v3574
      %3706 = vmatmul.mubr.f32.gmra.mxu0 %v3572
      %v3707 = vpop.f32.mrf.mxu0
      %v3708 = vadd.f32 0.0, %v3707
      %v3709 = vpop.f32.mrf.mxu0
      %v3710 = vadd.f32 0.0, %v3709
      %3711 = vdwg.mxu0
      %3712 = vmatprep.subr.mxu0 %v3467
      %3713 = vmatpush1.msra.mxu0 %v3466
      %3714 = vmatprep.subr.mxu0 %v3465
      %3715 = vmatpush1.msra.mxu0 %v3464
      %3716 = vmatprep.subr.mxu0 %v3463
      %3717 = vmatpush1.msra.mxu0 %v3462
      %3718 = vmatprep.subr.mxu0 %v3461
      %3719 = vmatpush1.msra.mxu0 %v3460
      %3720 = vmatprep.subr.mxu0 %v3459
      %3721 = vmatpush1.msra.mxu0 %v3458
      %3722 = vmatprep.subr.mxu0 %v3457
      %3723 = vmatpush1.msra.mxu0 %v3456
      %3724 = vmatprep.subr.mxu0 %v3455
      %3725 = vmatpush1.msra.mxu0 %v3454
      %3726 = vmatprep.subr.mxu0 %v3453
      %3727 = vmatpush1.msra.mxu0 %v3452
      %3728 = vmatprep.subr.mxu0 %v3451
      %3729 = vmatpush1.msra.mxu0 %v3450
      %3730 = vmatprep.subr.mxu0 %v3449
      %3731 = vmatpush1.msra.mxu0 %v3448
      %3732 = vmatprep.subr.mxu0 %v3447
      %3733 = vmatpush1.msra.mxu0 %v3446
      %3734 = vmatprep.subr.mxu0 %v3445
      %3735 = vmatpush1.msra.mxu0 %v3444
      %3736 = vmatprep.subr.mxu0 %v3443
      %3737 = vmatpush1.msra.mxu0 %v3442
      %3738 = vmatprep.subr.mxu0 %v3441
      %3739 = vmatpush1.msra.mxu0 %v3440
      %3740 = vmatprep.subr.mxu0 %v3439
      %3741 = vmatpush1.msra.mxu0 %v3438
      %3742 = vmatprep.subr.mxu0 %v3437
      %3743 = vmatpush1.msra.mxu0 %v3436
      %3744 = vmatprep.subr.mxu0 %v3499
      %3745 = vmatpush2.msra.mxu0 %v3498
      %3746 = vmatprep.subr.mxu0 %v3497
      %3747 = vmatpush2.msra.mxu0 %v3496
      %3748 = vmatprep.subr.mxu0 %v3495
      %3749 = vmatpush2.msra.mxu0 %v3494
      %3750 = vmatprep.subr.mxu0 %v3493
      %3751 = vmatpush2.msra.mxu0 %v3492
      %3752 = vmatprep.subr.mxu0 %v3491
      %3753 = vmatpush2.msra.mxu0 %v3490
      %3754 = vmatprep.subr.mxu0 %v3489
      %3755 = vmatpush2.msra.mxu0 %v3488
      %3756 = vmatprep.subr.mxu0 %v3487
      %3757 = vmatpush2.msra.mxu0 %v3486
      %3758 = vmatprep.subr.mxu0 %v3485
      %3759 = vmatpush2.msra.mxu0 %v3484
      %3760 = vmatprep.subr.mxu0 %v3483
      %3761 = vmatpush2.msra.mxu0 %v3482
      %3762 = vmatprep.subr.mxu0 %v3481
      %3763 = vmatpush2.msra.mxu0 %v3480
      %3764 = vmatprep.subr.mxu0 %v3479
      %3765 = vmatpush2.msra.mxu0 %v3478
      %3766 = vmatprep.subr.mxu0 %v3477
      %3767 = vmatpush2.msra.mxu0 %v3476
      %3768 = vmatprep.subr.mxu0 %v3475
      %3769 = vmatpush2.msra.mxu0 %v3474
      %3770 = vmatprep.subr.mxu0 %v3473
      %3771 = vmatpush2.msra.mxu0 %v3472
      %3772 = vmatprep.subr.mxu0 %v3471
      %3773 = vmatpush2.msra.mxu0 %v3470
      %3774 = vmatprep.subr.mxu0 %v3469
      %3775 = vmatpush2.msra.mxu0 %v3468
      %3776 = vmatprep.mubr.f32.mxu0 %v3434
      %3777 = vmatmul.mubr.f32.gmra.mxu0 %v3432
      %v3778 = vpop.f32.mrf.mxu0
      %v3779 = vadd.f32 %v3708, %v3778
      %v3780 = vpop.f32.mrf.mxu0
      %v3781 = vadd.f32 %v3710, %v3780
      %3782 = vdwg.mxu0
      %s3783 = scalar_lea.vmem %s7, 8
      %v3784 = vld [vmem:[%s3783] sm:$0xf]
      %v3786 = vsel %vm3361, %v3784, 0
      %3788 = vmatprep.subr.mxu0 0.0
      %3789 = vmatpush1.msra.mxu0 0.0
      %3790 = vmatprep.subr.mxu0 0.0
      %3791 = vmatpush1.msra.mxu0 0.0
      %3792 = vmatprep.subr.mxu0 0.0
      %3793 = vmatpush1.msra.mxu0 0.0
      %3794 = vmatprep.subr.mxu0 0.0
      %3795 = vmatpush1.msra.mxu0 0.0
      %3796 = vmatprep.subr.mxu0 0.0
      %3797 = vmatpush1.msra.mxu0 0.0
      %3798 = vmatprep.subr.mxu0 0.0
      %3799 = vmatpush1.msra.mxu0 0.0
      %3800 = vmatprep.subr.mxu0 0.0
      %3801 = vmatpush1.msra.mxu0 0.0
      %3802 = vmatprep.subr.mxu0 0.0
      %3803 = vmatpush1.msra.mxu0 0.0
      %3804 = vmatprep.subr.mxu0 0.0
      %3805 = vmatpush1.msra.mxu0 0.0
      %3806 = vmatprep.subr.mxu0 0.0
      %3807 = vmatpush1.msra.mxu0 0.0
      %3808 = vmatprep.subr.mxu0 0.0
      %3809 = vmatpush1.msra.mxu0 0.0
      %3810 = vmatprep.subr.mxu0 0.0
      %3811 = vmatpush1.msra.mxu0 0.0
      %3812 = vmatprep.subr.mxu0 0.0
      %3813 = vmatpush1.msra.mxu0 0.0
      %3814 = vmatprep.subr.mxu0 0.0
      %3815 = vmatpush1.msra.mxu0 0.0
      %3816 = vmatprep.subr.mxu0 0.0
      %3817 = vmatpush1.msra.mxu0 0.0
      %3818 = vmatprep.subr.mxu0 %v3359
      %3819 = vmatpush1.msra.mxu0 %v3358
      %3820 = vmatprep.subr.mxu0 0.0
      %3821 = vmatpush2.msra.mxu0 0.0
      %3822 = vmatprep.subr.mxu0 0.0
      %3823 = vmatpush2.msra.mxu0 0.0
      %3824 = vmatprep.subr.mxu0 0.0
      %3825 = vmatpush2.msra.mxu0 0.0
      %3826 = vmatprep.subr.mxu0 0.0
      %3827 = vmatpush2.msra.mxu0 0.0
      %3828 = vmatprep.subr.mxu0 0.0
      %3829 = vmatpush2.msra.mxu0 0.0
      %3830 = vmatprep.subr.mxu0 0.0
      %3831 = vmatpush2.msra.mxu0 0.0
      %3832 = vmatprep.subr.mxu0 0.0
      %3833 = vmatpush2.msra.mxu0 0.0
      %3834 = vmatprep.subr.mxu0 0.0
      %3835 = vmatpush2.msra.mxu0 0.0
      %3836 = vmatprep.subr.mxu0 0.0
      %3837 = vmatpush2.msra.mxu0 0.0
      %3838 = vmatprep.subr.mxu0 0.0
      %3839 = vmatpush2.msra.mxu0 0.0
      %3840 = vmatprep.subr.mxu0 0.0
      %3841 = vmatpush2.msra.mxu0 0.0
      %3842 = vmatprep.subr.mxu0 0.0
      %3843 = vmatpush2.msra.mxu0 0.0
      %3844 = vmatprep.subr.mxu0 0.0
      %3845 = vmatpush2.msra.mxu0 0.0
      %3846 = vmatprep.subr.mxu0 0.0
      %3847 = vmatpush2.msra.mxu0 0.0
      %3848 = vmatprep.subr.mxu0 0.0
      %3849 = vmatpush2.msra.mxu0 0.0
      %3850 = vmatprep.subr.mxu0 0.0
      %3851 = vmatpush2.msra.mxu0 0.0
      %3852 = vmatprep.mubr.f32.mxu0 0.0
      %3853 = vmatmul.mubr.f32.gmra.mxu0 %v3786
      %v3854 = vpop.f32.mrf.mxu0
      %v3855 = vadd.f32 0.0, %v3854
      %v3856 = vpop.f32.mrf.mxu0
      %v3857 = vadd.f32 0.0, %v3856
      %3858 = vdwg.mxu0
      %s3859 = scalar_lea.vmem %s8, 1024
      %v3860 = vld [vmem:[%s3859] sm:$0xff]
      %v3861 = vld [vmem:[%s3859 + $0x8] sm:$0xff]
      %v3862 = vld [vmem:[%s3859 + $0x10] sm:$0xff]
      %v3863 = vld [vmem:[%s3859 + $0x18] sm:$0xff]
      %v3864 = vld [vmem:[%s3859 + $0x20] sm:$0xff]
      %v3865 = vld [vmem:[%s3859 + $0x28] sm:$0xff]
      %v3866 = vld [vmem:[%s3859 + $0x30] sm:$0xff]
      %v3867 = vld [vmem:[%s3859 + $0x38] sm:$0xff]
      %v3868 = vld [vmem:[%s3859 + $0x40] sm:$0xff]
      %v3869 = vld [vmem:[%s3859 + $0x48] sm:$0xff]
      %v3870 = vld [vmem:[%s3859 + $0x50] sm:$0xff]
      %v3871 = vld [vmem:[%s3859 + $0x58] sm:$0xff]
      %v3872 = vld [vmem:[%s3859 + $0x60] sm:$0xff]
      %v3873 = vld [vmem:[%s3859 + $0x68] sm:$0xff]
      %v3874 = vld [vmem:[%s3859 + $0x70] sm:$0xff]
      %v3875 = vld [vmem:[%s3859 + $0x78] sm:$0xff]
      %v3876 = vld [vmem:[%s3859 + $0x80] sm:$0xff]
      %v3877 = vld [vmem:[%s3859 + $0x88] sm:$0xff]
      %v3878 = vld [vmem:[%s3859 + $0x90] sm:$0xff]
      %v3879 = vld [vmem:[%s3859 + $0x98] sm:$0xff]
      %v3880 = vld [vmem:[%s3859 + $0xa0] sm:$0xff]
      %v3881 = vld [vmem:[%s3859 + $0xa8] sm:$0xff]
      %v3882 = vld [vmem:[%s3859 + $0xb0] sm:$0xff]
      %v3883 = vld [vmem:[%s3859 + $0xb8] sm:$0xff]
      %v3884 = vld [vmem:[%s3859 + $0xc0] sm:$0xff]
      %v3885 = vld [vmem:[%s3859 + $0xc8] sm:$0xff]
      %v3886 = vld [vmem:[%s3859 + $0xd0] sm:$0xff]
      %v3887 = vld [vmem:[%s3859 + $0xd8] sm:$0xff]
      %v3888 = vld [vmem:[%s3859 + $0xe0] sm:$0xff]
      %v3889 = vld [vmem:[%s3859 + $0xe8] sm:$0xff]
      %v3890 = vld [vmem:[%s3859 + $0xf0] sm:$0xff]
      %v3891 = vld [vmem:[%s3859 + $0xf8] sm:$0xff]
      %v3892 = vld [vmem:[%s3859 + $0x100] sm:$0xff]
      %v3893 = vld [vmem:[%s3859 + $0x108] sm:$0xff]
      %v3894 = vld [vmem:[%s3859 + $0x110] sm:$0xff]
      %v3895 = vld [vmem:[%s3859 + $0x118] sm:$0xff]
      %v3896 = vld [vmem:[%s3859 + $0x120] sm:$0xff]
      %v3897 = vld [vmem:[%s3859 + $0x128] sm:$0xff]
      %v3898 = vld [vmem:[%s3859 + $0x130] sm:$0xff]
      %v3899 = vld [vmem:[%s3859 + $0x138] sm:$0xff]
      %v3900 = vld [vmem:[%s3859 + $0x140] sm:$0xff]
      %v3901 = vld [vmem:[%s3859 + $0x148] sm:$0xff]
      %v3902 = vld [vmem:[%s3859 + $0x150] sm:$0xff]
      %v3903 = vld [vmem:[%s3859 + $0x158] sm:$0xff]
      %v3904 = vld [vmem:[%s3859 + $0x160] sm:$0xff]
      %v3905 = vld [vmem:[%s3859 + $0x168] sm:$0xff]
      %v3906 = vld [vmem:[%s3859 + $0x170] sm:$0xff]
      %v3907 = vld [vmem:[%s3859 + $0x178] sm:$0xff]
      %v3908 = vld [vmem:[%s3859 + $0x180] sm:$0xff]
      %v3909 = vld [vmem:[%s3859 + $0x188] sm:$0xff]
      %v3910 = vld [vmem:[%s3859 + $0x190] sm:$0xff]
      %v3911 = vld [vmem:[%s3859 + $0x198] sm:$0xff]
      %v3912 = vld [vmem:[%s3859 + $0x1a0] sm:$0xff]
      %v3913 = vld [vmem:[%s3859 + $0x1a8] sm:$0xff]
      %v3914 = vld [vmem:[%s3859 + $0x1b0] sm:$0xff]
      %v3915 = vld [vmem:[%s3859 + $0x1b8] sm:$0xff]
      %v3916 = vld [vmem:[%s3859 + $0x1c0] sm:$0xff]
      %v3917 = vld [vmem:[%s3859 + $0x1c8] sm:$0xff]
      %v3918 = vld [vmem:[%s3859 + $0x1d0] sm:$0xff]
      %v3919 = vld [vmem:[%s3859 + $0x1d8] sm:$0xff]
      %v3920 = vld [vmem:[%s3859 + $0x1e0] sm:$0xff]
      %v3921 = vld [vmem:[%s3859 + $0x1e8] sm:$0xff]
      %v3922 = vld [vmem:[%s3859 + $0x1f0] sm:$0xff]
      %v3923 = vld [vmem:[%s3859 + $0x1f8] sm:$0xff]
      %3924 = vmatprep.subr.mxu0 %v3891
      %3925 = vmatpush1.msra.mxu0 %v3890
      %3926 = vmatprep.subr.mxu0 %v3889
      %3927 = vmatpush1.msra.mxu0 %v3888
      %3928 = vmatprep.subr.mxu0 %v3887
      %3929 = vmatpush1.msra.mxu0 %v3886
      %3930 = vmatprep.subr.mxu0 %v3885
      %3931 = vmatpush1.msra.mxu0 %v3884
      %3932 = vmatprep.subr.mxu0 %v3883
      %3933 = vmatpush1.msra.mxu0 %v3882
      %3934 = vmatprep.subr.mxu0 %v3881
      %3935 = vmatpush1.msra.mxu0 %v3880
      %3936 = vmatprep.subr.mxu0 %v3879
      %3937 = vmatpush1.msra.mxu0 %v3878
      %3938 = vmatprep.subr.mxu0 %v3877
      %3939 = vmatpush1.msra.mxu0 %v3876
      %3940 = vmatprep.subr.mxu0 %v3875
      %3941 = vmatpush1.msra.mxu0 %v3874
      %3942 = vmatprep.subr.mxu0 %v3873
      %3943 = vmatpush1.msra.mxu0 %v3872
      %3944 = vmatprep.subr.mxu0 %v3871
      %3945 = vmatpush1.msra.mxu0 %v3870
      %3946 = vmatprep.subr.mxu0 %v3869
      %3947 = vmatpush1.msra.mxu0 %v3868
      %3948 = vmatprep.subr.mxu0 %v3867
      %3949 = vmatpush1.msra.mxu0 %v3866
      %3950 = vmatprep.subr.mxu0 %v3865
      %3951 = vmatpush1.msra.mxu0 %v3864
      %3952 = vmatprep.subr.mxu0 %v3863
      %3953 = vmatpush1.msra.mxu0 %v3862
      %3954 = vmatprep.subr.mxu0 %v3861
      %3955 = vmatpush1.msra.mxu0 %v3860
      %3956 = vmatprep.subr.mxu0 %v3923
      %3957 = vmatpush2.msra.mxu0 %v3922
      %3958 = vmatprep.subr.mxu0 %v3921
      %3959 = vmatpush2.msra.mxu0 %v3920
      %3960 = vmatprep.subr.mxu0 %v3919
      %3961 = vmatpush2.msra.mxu0 %v3918
      %3962 = vmatprep.subr.mxu0 %v3917
      %3963 = vmatpush2.msra.mxu0 %v3916
      %3964 = vmatprep.subr.mxu0 %v3915
      %3965 = vmatpush2.msra.mxu0 %v3914
      %3966 = vmatprep.subr.mxu0 %v3913
      %3967 = vmatpush2.msra.mxu0 %v3912
      %3968 = vmatprep.subr.mxu0 %v3911
      %3969 = vmatpush2.msra.mxu0 %v3910
      %3970 = vmatprep.subr.mxu0 %v3909
      %3971 = vmatpush2.msra.mxu0 %v3908
      %3972 = vmatprep.subr.mxu0 %v3907
      %3973 = vmatpush2.msra.mxu0 %v3906
      %3974 = vmatprep.subr.mxu0 %v3905
      %3975 = vmatpush2.msra.mxu0 %v3904
      %3976 = vmatprep.subr.mxu0 %v3903
      %3977 = vmatpush2.msra.mxu0 %v3902
      %3978 = vmatprep.subr.mxu0 %v3901
      %3979 = vmatpush2.msra.mxu0 %v3900
      %3980 = vmatprep.subr.mxu0 %v3899
      %3981 = vmatpush2.msra.mxu0 %v3898
      %3982 = vmatprep.subr.mxu0 %v3897
      %3983 = vmatpush2.msra.mxu0 %v3896
      %3984 = vmatprep.subr.mxu0 %v3895
      %3985 = vmatpush2.msra.mxu0 %v3894
      %3986 = vmatprep.subr.mxu0 %v3893
      %3987 = vmatpush2.msra.mxu0 %v3892
      %3988 = vmatprep.mubr.f32.mxu0 %v3857
      %3989 = vmatmul.mubr.f32.gmra.mxu0 %v3855
      %v3990 = vpop.f32.mrf.mxu0
      %v3991 = vadd.f32 0.0, %v3990
      %v3992 = vpop.f32.mrf.mxu0
      %v3993 = vadd.f32 0.0, %v3992
      %3994 = vdwg.mxu0
      %v3995 = vadd.f32 %v3779, %v3991
      %v3996 = vadd.f32 %v3781, %v3993
      %s3997 = scalar_lea.vmem %s7, 12
      %v3998 = vld [vmem:[%s3997] sm:$0xf]
      %v4000 = vsel %vm3361, %v3998, 0
      %4002 = vmatprep.subr.mxu0 0.0
      %4003 = vmatpush1.msra.mxu0 0.0
      %4004 = vmatprep.subr.mxu0 0.0
      %4005 = vmatpush1.msra.mxu0 0.0
      %4006 = vmatprep.subr.mxu0 0.0
      %4007 = vmatpush1.msra.mxu0 0.0
      %4008 = vmatprep.subr.mxu0 0.0
      %4009 = vmatpush1.msra.mxu0 0.0
      %4010 = vmatprep.subr.mxu0 0.0
      %4011 = vmatpush1.msra.mxu0 0.0
      %4012 = vmatprep.subr.mxu0 0.0
      %4013 = vmatpush1.msra.mxu0 0.0
      %4014 = vmatprep.subr.mxu0 0.0
      %4015 = vmatpush1.msra.mxu0 0.0
      %4016 = vmatprep.subr.mxu0 0.0
      %4017 = vmatpush1.msra.mxu0 0.0
      %4018 = vmatprep.subr.mxu0 0.0
      %4019 = vmatpush1.msra.mxu0 0.0
      %4020 = vmatprep.subr.mxu0 0.0
      %4021 = vmatpush1.msra.mxu0 0.0
      %4022 = vmatprep.subr.mxu0 0.0
      %4023 = vmatpush1.msra.mxu0 0.0
      %4024 = vmatprep.subr.mxu0 0.0
      %4025 = vmatpush1.msra.mxu0 0.0
      %4026 = vmatprep.subr.mxu0 0.0
      %4027 = vmatpush1.msra.mxu0 0.0
      %4028 = vmatprep.subr.mxu0 0.0
      %4029 = vmatpush1.msra.mxu0 0.0
      %4030 = vmatprep.subr.mxu0 0.0
      %4031 = vmatpush1.msra.mxu0 0.0
      %4032 = vmatprep.subr.mxu0 %v3359
      %4033 = vmatpush1.msra.mxu0 %v3358
      %4034 = vmatprep.subr.mxu0 0.0
      %4035 = vmatpush2.msra.mxu0 0.0
      %4036 = vmatprep.subr.mxu0 0.0
      %4037 = vmatpush2.msra.mxu0 0.0
      %4038 = vmatprep.subr.mxu0 0.0
      %4039 = vmatpush2.msra.mxu0 0.0
      %4040 = vmatprep.subr.mxu0 0.0
      %4041 = vmatpush2.msra.mxu0 0.0
      %4042 = vmatprep.subr.mxu0 0.0
      %4043 = vmatpush2.msra.mxu0 0.0
      %4044 = vmatprep.subr.mxu0 0.0
      %4045 = vmatpush2.msra.mxu0 0.0
      %4046 = vmatprep.subr.mxu0 0.0
      %4047 = vmatpush2.msra.mxu0 0.0
      %4048 = vmatprep.subr.mxu0 0.0
      %4049 = vmatpush2.msra.mxu0 0.0
      %4050 = vmatprep.subr.mxu0 0.0
      %4051 = vmatpush2.msra.mxu0 0.0
      %4052 = vmatprep.subr.mxu0 0.0
      %4053 = vmatpush2.msra.mxu0 0.0
      %4054 = vmatprep.subr.mxu0 0.0
      %4055 = vmatpush2.msra.mxu0 0.0
      %4056 = vmatprep.subr.mxu0 0.0
      %4057 = vmatpush2.msra.mxu0 0.0
      %4058 = vmatprep.subr.mxu0 0.0
      %4059 = vmatpush2.msra.mxu0 0.0
      %4060 = vmatprep.subr.mxu0 0.0
      %4061 = vmatpush2.msra.mxu0 0.0
      %4062 = vmatprep.subr.mxu0 0.0
      %4063 = vmatpush2.msra.mxu0 0.0
      %4064 = vmatprep.subr.mxu0 0.0
      %4065 = vmatpush2.msra.mxu0 0.0
      %4066 = vmatprep.mubr.f32.mxu0 0.0
      %4067 = vmatmul.mubr.f32.gmra.mxu0 %v4000
      %v4068 = vpop.f32.mrf.mxu0
      %v4069 = vadd.f32 0.0, %v4068
      %v4070 = vpop.f32.mrf.mxu0
      %v4071 = vadd.f32 0.0, %v4070
      %4072 = vdwg.mxu0
      %s4073 = scalar_lea.vmem %s8, 1536
      %v4074 = vld [vmem:[%s4073] sm:$0xff]
      %v4075 = vld [vmem:[%s4073 + $0x8] sm:$0xff]
      %v4076 = vld [vmem:[%s4073 + $0x10] sm:$0xff]
      %v4077 = vld [vmem:[%s4073 + $0x18] sm:$0xff]
      %v4078 = vld [vmem:[%s4073 + $0x20] sm:$0xff]
      %v4079 = vld [vmem:[%s4073 + $0x28] sm:$0xff]
      %v4080 = vld [vmem:[%s4073 + $0x30] sm:$0xff]
      %v4081 = vld [vmem:[%s4073 + $0x38] sm:$0xff]
      %v4082 = vld [vmem:[%s4073 + $0x40] sm:$0xff]
      %v4083 = vld [vmem:[%s4073 + $0x48] sm:$0xff]
      %v4084 = vld [vmem:[%s4073 + $0x50] sm:$0xff]
      %v4085 = vld [vmem:[%s4073 + $0x58] sm:$0xff]
      %v4086 = vld [vmem:[%s4073 + $0x60] sm:$0xff]
      %v4087 = vld [vmem:[%s4073 + $0x68] sm:$0xff]
      %v4088 = vld [vmem:[%s4073 + $0x70] sm:$0xff]
      %v4089 = vld [vmem:[%s4073 + $0x78] sm:$0xff]
      %v4090 = vld [vmem:[%s4073 + $0x80] sm:$0xff]
      %v4091 = vld [vmem:[%s4073 + $0x88] sm:$0xff]
      %v4092 = vld [vmem:[%s4073 + $0x90] sm:$0xff]
      %v4093 = vld [vmem:[%s4073 + $0x98] sm:$0xff]
      %v4094 = vld [vmem:[%s4073 + $0xa0] sm:$0xff]
      %v4095 = vld [vmem:[%s4073 + $0xa8] sm:$0xff]
      %v4096 = vld [vmem:[%s4073 + $0xb0] sm:$0xff]
      %v4097 = vld [vmem:[%s4073 + $0xb8] sm:$0xff]
      %v4098 = vld [vmem:[%s4073 + $0xc0] sm:$0xff]
      %v4099 = vld [vmem:[%s4073 + $0xc8] sm:$0xff]
      %v4100 = vld [vmem:[%s4073 + $0xd0] sm:$0xff]
      %v4101 = vld [vmem:[%s4073 + $0xd8] sm:$0xff]
      %v4102 = vld [vmem:[%s4073 + $0xe0] sm:$0xff]
      %v4103 = vld [vmem:[%s4073 + $0xe8] sm:$0xff]
      %v4104 = vld [vmem:[%s4073 + $0xf0] sm:$0xff]
      %v4105 = vld [vmem:[%s4073 + $0xf8] sm:$0xff]
      %v4106 = vld [vmem:[%s4073 + $0x100] sm:$0xff]
      %v4107 = vld [vmem:[%s4073 + $0x108] sm:$0xff]
      %v4108 = vld [vmem:[%s4073 + $0x110] sm:$0xff]
      %v4109 = vld [vmem:[%s4073 + $0x118] sm:$0xff]
      %v4110 = vld [vmem:[%s4073 + $0x120] sm:$0xff]
      %v4111 = vld [vmem:[%s4073 + $0x128] sm:$0xff]
      %v4112 = vld [vmem:[%s4073 + $0x130] sm:$0xff]
      %v4113 = vld [vmem:[%s4073 + $0x138] sm:$0xff]
      %v4114 = vld [vmem:[%s4073 + $0x140] sm:$0xff]
      %v4115 = vld [vmem:[%s4073 + $0x148] sm:$0xff]
      %v4116 = vld [vmem:[%s4073 + $0x150] sm:$0xff]
      %v4117 = vld [vmem:[%s4073 + $0x158] sm:$0xff]
      %v4118 = vld [vmem:[%s4073 + $0x160] sm:$0xff]
      %v4119 = vld [vmem:[%s4073 + $0x168] sm:$0xff]
      %v4120 = vld [vmem:[%s4073 + $0x170] sm:$0xff]
      %v4121 = vld [vmem:[%s4073 + $0x178] sm:$0xff]
      %v4122 = vld [vmem:[%s4073 + $0x180] sm:$0xff]
      %v4123 = vld [vmem:[%s4073 + $0x188] sm:$0xff]
      %v4124 = vld [vmem:[%s4073 + $0x190] sm:$0xff]
      %v4125 = vld [vmem:[%s4073 + $0x198] sm:$0xff]
      %v4126 = vld [vmem:[%s4073 + $0x1a0] sm:$0xff]
      %v4127 = vld [vmem:[%s4073 + $0x1a8] sm:$0xff]
      %v4128 = vld [vmem:[%s4073 + $0x1b0] sm:$0xff]
      %v4129 = vld [vmem:[%s4073 + $0x1b8] sm:$0xff]
      %v4130 = vld [vmem:[%s4073 + $0x1c0] sm:$0xff]
      %v4131 = vld [vmem:[%s4073 + $0x1c8] sm:$0xff]
      %v4132 = vld [vmem:[%s4073 + $0x1d0] sm:$0xff]
      %v4133 = vld [vmem:[%s4073 + $0x1d8] sm:$0xff]
      %v4134 = vld [vmem:[%s4073 + $0x1e0] sm:$0xff]
      %v4135 = vld [vmem:[%s4073 + $0x1e8] sm:$0xff]
      %v4136 = vld [vmem:[%s4073 + $0x1f0] sm:$0xff]
      %v4137 = vld [vmem:[%s4073 + $0x1f8] sm:$0xff]
      %4138 = vmatprep.subr.mxu0 %v4105
      %4139 = vmatpush1.msra.mxu0 %v4104
      %4140 = vmatprep.subr.mxu0 %v4103
      %4141 = vmatpush1.msra.mxu0 %v4102
      %4142 = vmatprep.subr.mxu0 %v4101
      %4143 = vmatpush1.msra.mxu0 %v4100
      %4144 = vmatprep.subr.mxu0 %v4099
      %4145 = vmatpush1.msra.mxu0 %v4098
      %4146 = vmatprep.subr.mxu0 %v4097
      %4147 = vmatpush1.msra.mxu0 %v4096
      %4148 = vmatprep.subr.mxu0 %v4095
      %4149 = vmatpush1.msra.mxu0 %v4094
      %4150 = vmatprep.subr.mxu0 %v4093
      %4151 = vmatpush1.msra.mxu0 %v4092
      %4152 = vmatprep.subr.mxu0 %v4091
      %4153 = vmatpush1.msra.mxu0 %v4090
      %4154 = vmatprep.subr.mxu0 %v4089
      %4155 = vmatpush1.msra.mxu0 %v4088
      %4156 = vmatprep.subr.mxu0 %v4087
      %4157 = vmatpush1.msra.mxu0 %v4086
      %4158 = vmatprep.subr.mxu0 %v4085
      %4159 = vmatpush1.msra.mxu0 %v4084
      %4160 = vmatprep.subr.mxu0 %v4083
      %4161 = vmatpush1.msra.mxu0 %v4082
      %4162 = vmatprep.subr.mxu0 %v4081
      %4163 = vmatpush1.msra.mxu0 %v4080
      %4164 = vmatprep.subr.mxu0 %v4079
      %4165 = vmatpush1.msra.mxu0 %v4078
      %4166 = vmatprep.subr.mxu0 %v4077
      %4167 = vmatpush1.msra.mxu0 %v4076
      %4168 = vmatprep.subr.mxu0 %v4075
      %4169 = vmatpush1.msra.mxu0 %v4074
      %4170 = vmatprep.subr.mxu0 %v4137
      %4171 = vmatpush2.msra.mxu0 %v4136
      %4172 = vmatprep.subr.mxu0 %v4135
      %4173 = vmatpush2.msra.mxu0 %v4134
      %4174 = vmatprep.subr.mxu0 %v4133
      %4175 = vmatpush2.msra.mxu0 %v4132
      %4176 = vmatprep.subr.mxu0 %v4131
      %4177 = vmatpush2.msra.mxu0 %v4130
      %4178 = vmatprep.subr.mxu0 %v4129
      %4179 = vmatpush2.msra.mxu0 %v4128
      %4180 = vmatprep.subr.mxu0 %v4127
      %4181 = vmatpush2.msra.mxu0 %v4126
      %4182 = vmatprep.subr.mxu0 %v4125
      %4183 = vmatpush2.msra.mxu0 %v4124
      %4184 = vmatprep.subr.mxu0 %v4123
      %4185 = vmatpush2.msra.mxu0 %v4122
      %4186 = vmatprep.subr.mxu0 %v4121
      %4187 = vmatpush2.msra.mxu0 %v4120
      %4188 = vmatprep.subr.mxu0 %v4119
      %4189 = vmatpush2.msra.mxu0 %v4118
      %4190 = vmatprep.subr.mxu0 %v4117
      %4191 = vmatpush2.msra.mxu0 %v4116
      %4192 = vmatprep.subr.mxu0 %v4115
      %4193 = vmatpush2.msra.mxu0 %v4114
      %4194 = vmatprep.subr.mxu0 %v4113
      %4195 = vmatpush2.msra.mxu0 %v4112
      %4196 = vmatprep.subr.mxu0 %v4111
      %4197 = vmatpush2.msra.mxu0 %v4110
      %4198 = vmatprep.subr.mxu0 %v4109
      %4199 = vmatpush2.msra.mxu0 %v4108
      %4200 = vmatprep.subr.mxu0 %v4107
      %4201 = vmatpush2.msra.mxu0 %v4106
      %4202 = vmatprep.mubr.f32.mxu0 %v4071
      %4203 = vmatmul.mubr.f32.gmra.mxu0 %v4069
      %v4204 = vpop.f32.mrf.mxu0
      %v4205 = vadd.f32 0.0, %v4204
      %v4206 = vpop.f32.mrf.mxu0
      %v4207 = vadd.f32 0.0, %v4206
      %4208 = vdwg.mxu0
      %v4209 = vadd.f32 %v3995, %v4205
      %v4210 = vadd.f32 %v3996, %v4207
      %v4211 = vld [vmem:[%s9] sm:$0x3]
      %v4213 = vlaneseq
      %v4214 = vshrl.u32 %v4213, 7
      %v4215 = vsub.s32 0, %v4214
      %v4216 = vrot.slane %v4211, %v4215
      %v4217 = vlaneseq
      %v4218 = vshrl.u32 %v4217, 7
      %v4219 = vsub.s32 1, %v4218
      %v4220 = vrot.slane %v4211, %v4219
      %v4223 = vadd.f32 %v4209, %v4216
      %v4224 = vadd.f32 %v4210, %v4220
      %v4225 = vmax.f32 %v4223, 0.0
      %v4226 = vmax.f32 %v4224, 0.0
      %v4227 = vld [vmem:[%s10] sm:$0x3]
      %vm4228 = vcmask 31744
      %v4230 = vsel %vm4228, %v4227, 0
      %vm4232 = vcmask 1043456
      %v4234 = vsel %vm4232, %v4225, 0
      %v4237 = vsel %vm4232, %v4226, 0
      %4239 = vmatprep.subr.mxu0 0.0
      %4240 = vmatpush1.msra.mxu0 0.0
      %4241 = vmatprep.subr.mxu0 0.0
      %4242 = vmatpush1.msra.mxu0 0.0
      %4243 = vmatprep.subr.mxu0 0.0
      %4244 = vmatpush1.msra.mxu0 0.0
      %4245 = vmatprep.subr.mxu0 0.0
      %4246 = vmatpush1.msra.mxu0 0.0
      %4247 = vmatprep.subr.mxu0 0.0
      %4248 = vmatpush1.msra.mxu0 0.0
      %4249 = vmatprep.subr.mxu0 0.0
      %4250 = vmatpush1.msra.mxu0 0.0
      %4251 = vmatprep.subr.mxu0 0.0
      %4252 = vmatpush1.msra.mxu0 0.0
      %4253 = vmatprep.subr.mxu0 0.0
      %4254 = vmatpush1.msra.mxu0 0.0
      %4255 = vmatprep.subr.mxu0 0.0
      %4256 = vmatpush1.msra.mxu0 0.0
      %4257 = vmatprep.subr.mxu0 0.0
      %4258 = vmatpush1.msra.mxu0 0.0
      %4259 = vmatprep.subr.mxu0 0.0
      %4260 = vmatpush1.msra.mxu0 0.0
      %4261 = vmatprep.subr.mxu0 0.0
      %4262 = vmatpush1.msra.mxu0 0.0
      %4263 = vmatprep.subr.mxu0 0.0
      %4264 = vmatpush1.msra.mxu0 0.0
      %4265 = vmatprep.subr.mxu0 0.0
      %4266 = vmatpush1.msra.mxu0 0.0
      %4267 = vmatprep.subr.mxu0 0.0
      %4268 = vmatpush1.msra.mxu0 0.0
      %4269 = vmatprep.subr.mxu0 %v4237
      %4270 = vmatpush1.msra.mxu0 %v4234
      %4271 = vmatprep.subr.mxu0 0.0
      %4272 = vmatpush2.msra.mxu0 0.0
      %4273 = vmatprep.subr.mxu0 0.0
      %4274 = vmatpush2.msra.mxu0 0.0
      %4275 = vmatprep.subr.mxu0 0.0
      %4276 = vmatpush2.msra.mxu0 0.0
      %4277 = vmatprep.subr.mxu0 0.0
      %4278 = vmatpush2.msra.mxu0 0.0
      %4279 = vmatprep.subr.mxu0 0.0
      %4280 = vmatpush2.msra.mxu0 0.0
      %4281 = vmatprep.subr.mxu0 0.0
      %4282 = vmatpush2.msra.mxu0 0.0
      %4283 = vmatprep.subr.mxu0 0.0
      %4284 = vmatpush2.msra.mxu0 0.0
      %4285 = vmatprep.subr.mxu0 0.0
      %4286 = vmatpush2.msra.mxu0 0.0
      %4287 = vmatprep.subr.mxu0 0.0
      %4288 = vmatpush2.msra.mxu0 0.0
      %4289 = vmatprep.subr.mxu0 0.0
      %4290 = vmatpush2.msra.mxu0 0.0
      %4291 = vmatprep.subr.mxu0 0.0
      %4292 = vmatpush2.msra.mxu0 0.0
      %4293 = vmatprep.subr.mxu0 0.0
      %4294 = vmatpush2.msra.mxu0 0.0
      %4295 = vmatprep.subr.mxu0 0.0
      %4296 = vmatpush2.msra.mxu0 0.0
      %4297 = vmatprep.subr.mxu0 0.0
      %4298 = vmatpush2.msra.mxu0 0.0
      %4299 = vmatprep.subr.mxu0 0.0
      %4300 = vmatpush2.msra.mxu0 0.0
      %4301 = vmatprep.subr.mxu0 0.0
      %4302 = vmatpush2.msra.mxu0 0.0
      %4303 = vmatprep.mubr.f32.mxu0 0.0
      %4304 = vmatmul.mubr.f32.gmra.mxu0 %v4230
      %v4305 = vpop.f32.mrf.mxu0
      %v4306 = vadd.f32 0.0, %v4305
      %v4307 = vpop.f32.mrf.mxu0
      %v4308 = vadd.f32 0.0, %v4307
      %4309 = vdwg.mxu0
      %v4310 = vld [vmem:[%s11] sm:$0xff]
      %v4311 = vld [vmem:[%s11 + $0x8] sm:$0xff]
      %v4312 = vld [vmem:[%s11 + $0x10] sm:$0xff]
      %v4313 = vld [vmem:[%s11 + $0x18] sm:$0xff]
      %v4314 = vld [vmem:[%s11 + $0x20] sm:$0xff]
      %v4315 = vld [vmem:[%s11 + $0x28] sm:$0xff]
      %v4316 = vld [vmem:[%s11 + $0x30] sm:$0xff]
      %v4317 = vld [vmem:[%s11 + $0x38] sm:$0xff]
      %v4318 = vld [vmem:[%s11 + $0x40] sm:$0xff]
      %v4319 = vld [vmem:[%s11 + $0x48] sm:$0xff]
      %v4320 = vld [vmem:[%s11 + $0x50] sm:$0xff]
      %v4321 = vld [vmem:[%s11 + $0x58] sm:$0xff]
      %v4322 = vld [vmem:[%s11 + $0x60] sm:$0xff]
      %v4323 = vld [vmem:[%s11 + $0x68] sm:$0xff]
      %v4324 = vld [vmem:[%s11 + $0x70] sm:$0xff]
      %v4325 = vld [vmem:[%s11 + $0x78] sm:$0xff]
      %v4326 = vld [vmem:[%s11 + $0x80] sm:$0xff]
      %v4327 = vld [vmem:[%s11 + $0x88] sm:$0xff]
      %v4328 = vld [vmem:[%s11 + $0x90] sm:$0xff]
      %v4329 = vld [vmem:[%s11 + $0x98] sm:$0xff]
      %v4330 = vld [vmem:[%s11 + $0xa0] sm:$0xff]
      %v4331 = vld [vmem:[%s11 + $0xa8] sm:$0xff]
      %v4332 = vld [vmem:[%s11 + $0xb0] sm:$0xff]
      %v4333 = vld [vmem:[%s11 + $0xb8] sm:$0xff]
      %v4334 = vld [vmem:[%s11 + $0xc0] sm:$0xff]
      %v4335 = vld [vmem:[%s11 + $0xc8] sm:$0xff]
      %v4336 = vld [vmem:[%s11 + $0xd0] sm:$0xff]
      %v4337 = vld [vmem:[%s11 + $0xd8] sm:$0xff]
      %v4338 = vld [vmem:[%s11 + $0xe0] sm:$0xff]
      %v4339 = vld [vmem:[%s11 + $0xe8] sm:$0xff]
      %v4340 = vld [vmem:[%s11 + $0xf0] sm:$0xff]
      %v4341 = vld [vmem:[%s11 + $0xf8] sm:$0xff]
      %s4342 = scalar_lea.vmem %s10, 2
      %v4343 = vld [vmem:[%s4342] sm:$0x3]
      %v4345 = vsel %vm4228, %v4343, 0
      %4347 = vmatprep.subr.mxu0 0.0
      %4348 = vmatpush1.msra.mxu0 0.0
      %4349 = vmatprep.subr.mxu0 0.0
      %4350 = vmatpush1.msra.mxu0 0.0
      %4351 = vmatprep.subr.mxu0 0.0
      %4352 = vmatpush1.msra.mxu0 0.0
      %4353 = vmatprep.subr.mxu0 0.0
      %4354 = vmatpush1.msra.mxu0 0.0
      %4355 = vmatprep.subr.mxu0 0.0
      %4356 = vmatpush1.msra.mxu0 0.0
      %4357 = vmatprep.subr.mxu0 0.0
      %4358 = vmatpush1.msra.mxu0 0.0
      %4359 = vmatprep.subr.mxu0 0.0
      %4360 = vmatpush1.msra.mxu0 0.0
      %4361 = vmatprep.subr.mxu0 0.0
      %4362 = vmatpush1.msra.mxu0 0.0
      %4363 = vmatprep.subr.mxu0 0.0
      %4364 = vmatpush1.msra.mxu0 0.0
      %4365 = vmatprep.subr.mxu0 0.0
      %4366 = vmatpush1.msra.mxu0 0.0
      %4367 = vmatprep.subr.mxu0 0.0
      %4368 = vmatpush1.msra.mxu0 0.0
      %4369 = vmatprep.subr.mxu0 0.0
      %4370 = vmatpush1.msra.mxu0 0.0
      %4371 = vmatprep.subr.mxu0 0.0
      %4372 = vmatpush1.msra.mxu0 0.0
      %4373 = vmatprep.subr.mxu0 0.0
      %4374 = vmatpush1.msra.mxu0 0.0
      %4375 = vmatprep.subr.mxu0 0.0
      %4376 = vmatpush1.msra.mxu0 0.0
      %4377 = vmatprep.subr.mxu0 %v4237
      %4378 = vmatpush1.msra.mxu0 %v4234
      %4379 = vmatprep.subr.mxu0 0.0
      %4380 = vmatpush2.msra.mxu0 0.0
      %4381 = vmatprep.subr.mxu0 0.0
      %4382 = vmatpush2.msra.mxu0 0.0
      %4383 = vmatprep.subr.mxu0 0.0
      %4384 = vmatpush2.msra.mxu0 0.0
      %4385 = vmatprep.subr.mxu0 0.0
      %4386 = vmatpush2.msra.mxu0 0.0
      %4387 = vmatprep.subr.mxu0 0.0
      %4388 = vmatpush2.msra.mxu0 0.0
      %4389 = vmatprep.subr.mxu0 0.0
      %4390 = vmatpush2.msra.mxu0 0.0
      %4391 = vmatprep.subr.mxu0 0.0
      %4392 = vmatpush2.msra.mxu0 0.0
      %4393 = vmatprep.subr.mxu0 0.0
      %4394 = vmatpush2.msra.mxu0 0.0
      %4395 = vmatprep.subr.mxu0 0.0
      %4396 = vmatpush2.msra.mxu0 0.0
      %4397 = vmatprep.subr.mxu0 0.0
      %4398 = vmatpush2.msra.mxu0 0.0
      %4399 = vmatprep.subr.mxu0 0.0
      %4400 = vmatpush2.msra.mxu0 0.0
      %4401 = vmatprep.subr.mxu0 0.0
      %4402 = vmatpush2.msra.mxu0 0.0
      %4403 = vmatprep.subr.mxu0 0.0
      %4404 = vmatpush2.msra.mxu0 0.0
      %4405 = vmatprep.subr.mxu0 0.0
      %4406 = vmatpush2.msra.mxu0 0.0
      %4407 = vmatprep.subr.mxu0 0.0
      %4408 = vmatpush2.msra.mxu0 0.0
      %4409 = vmatprep.subr.mxu0 0.0
      %4410 = vmatpush2.msra.mxu0 0.0
      %4411 = vmatprep.mubr.f32.mxu0 0.0
      %4412 = vmatmul.mubr.f32.gmra.mxu0 %v4345
      %v4413 = vpop.f32.mrf.mxu0
      %v4414 = vadd.f32 0.0, %v4413
      %v4415 = vpop.f32.mrf.mxu0
      %v4416 = vadd.f32 0.0, %v4415
      %4417 = vdwg.mxu0
      %s4418 = scalar_lea.vmem %s11, 256
      %v4419 = vld [vmem:[%s4418] sm:$0xff]
      %v4420 = vld [vmem:[%s4418 + $0x8] sm:$0xff]
      %v4421 = vld [vmem:[%s4418 + $0x10] sm:$0xff]
      %v4422 = vld [vmem:[%s4418 + $0x18] sm:$0xff]
      %v4423 = vld [vmem:[%s4418 + $0x20] sm:$0xff]
      %v4424 = vld [vmem:[%s4418 + $0x28] sm:$0xff]
      %v4425 = vld [vmem:[%s4418 + $0x30] sm:$0xff]
      %v4426 = vld [vmem:[%s4418 + $0x38] sm:$0xff]
      %v4427 = vld [vmem:[%s4418 + $0x40] sm:$0xff]
      %v4428 = vld [vmem:[%s4418 + $0x48] sm:$0xff]
      %v4429 = vld [vmem:[%s4418 + $0x50] sm:$0xff]
      %v4430 = vld [vmem:[%s4418 + $0x58] sm:$0xff]
      %v4431 = vld [vmem:[%s4418 + $0x60] sm:$0xff]
      %v4432 = vld [vmem:[%s4418 + $0x68] sm:$0xff]
      %v4433 = vld [vmem:[%s4418 + $0x70] sm:$0xff]
      %v4434 = vld [vmem:[%s4418 + $0x78] sm:$0xff]
      %v4435 = vld [vmem:[%s4418 + $0x80] sm:$0xff]
      %v4436 = vld [vmem:[%s4418 + $0x88] sm:$0xff]
      %v4437 = vld [vmem:[%s4418 + $0x90] sm:$0xff]
      %v4438 = vld [vmem:[%s4418 + $0x98] sm:$0xff]
      %v4439 = vld [vmem:[%s4418 + $0xa0] sm:$0xff]
      %v4440 = vld [vmem:[%s4418 + $0xa8] sm:$0xff]
      %v4441 = vld [vmem:[%s4418 + $0xb0] sm:$0xff]
      %v4442 = vld [vmem:[%s4418 + $0xb8] sm:$0xff]
      %v4443 = vld [vmem:[%s4418 + $0xc0] sm:$0xff]
      %v4444 = vld [vmem:[%s4418 + $0xc8] sm:$0xff]
      %v4445 = vld [vmem:[%s4418 + $0xd0] sm:$0xff]
      %v4446 = vld [vmem:[%s4418 + $0xd8] sm:$0xff]
      %v4447 = vld [vmem:[%s4418 + $0xe0] sm:$0xff]
      %v4448 = vld [vmem:[%s4418 + $0xe8] sm:$0xff]
      %v4449 = vld [vmem:[%s4418 + $0xf0] sm:$0xff]
      %v4450 = vld [vmem:[%s4418 + $0xf8] sm:$0xff]
      %4451 = vmatprep.subr.mxu0 0.0
      %4452 = vmatpush1.msra.mxu0 %v4434
      %4453 = vmatprep.subr.mxu0 0.0
      %4454 = vmatpush1.msra.mxu0 %v4433
      %4455 = vmatprep.subr.mxu0 0.0
      %4456 = vmatpush1.msra.mxu0 %v4432
      %4457 = vmatprep.subr.mxu0 0.0
      %4458 = vmatpush1.msra.mxu0 %v4431
      %4459 = vmatprep.subr.mxu0 0.0
      %4460 = vmatpush1.msra.mxu0 %v4430
      %4461 = vmatprep.subr.mxu0 0.0
      %4462 = vmatpush1.msra.mxu0 %v4429
      %4463 = vmatprep.subr.mxu0 0.0
      %4464 = vmatpush1.msra.mxu0 %v4428
      %4465 = vmatprep.subr.mxu0 0.0
      %4466 = vmatpush1.msra.mxu0 %v4427
      %4467 = vmatprep.subr.mxu0 0.0
      %4468 = vmatpush1.msra.mxu0 %v4426
      %4469 = vmatprep.subr.mxu0 0.0
      %4470 = vmatpush1.msra.mxu0 %v4425
      %4471 = vmatprep.subr.mxu0 0.0
      %4472 = vmatpush1.msra.mxu0 %v4424
      %4473 = vmatprep.subr.mxu0 0.0
      %4474 = vmatpush1.msra.mxu0 %v4423
      %4475 = vmatprep.subr.mxu0 0.0
      %4476 = vmatpush1.msra.mxu0 %v4422
      %4477 = vmatprep.subr.mxu0 0.0
      %4478 = vmatpush1.msra.mxu0 %v4421
      %4479 = vmatprep.subr.mxu0 0.0
      %4480 = vmatpush1.msra.mxu0 %v4420
      %4481 = vmatprep.subr.mxu0 0.0
      %4482 = vmatpush1.msra.mxu0 %v4419
      %4483 = vmatprep.subr.mxu0 0.0
      %4484 = vmatpush2.msra.mxu0 %v4450
      %4485 = vmatprep.subr.mxu0 0.0
      %4486 = vmatpush2.msra.mxu0 %v4449
      %4487 = vmatprep.subr.mxu0 0.0
      %4488 = vmatpush2.msra.mxu0 %v4448
      %4489 = vmatprep.subr.mxu0 0.0
      %4490 = vmatpush2.msra.mxu0 %v4447
      %4491 = vmatprep.subr.mxu0 0.0
      %4492 = vmatpush2.msra.mxu0 %v4446
      %4493 = vmatprep.subr.mxu0 0.0
      %4494 = vmatpush2.msra.mxu0 %v4445
      %4495 = vmatprep.subr.mxu0 0.0
      %4496 = vmatpush2.msra.mxu0 %v4444
      %4497 = vmatprep.subr.mxu0 0.0
      %4498 = vmatpush2.msra.mxu0 %v4443
      %4499 = vmatprep.subr.mxu0 0.0
      %4500 = vmatpush2.msra.mxu0 %v4442
      %4501 = vmatprep.subr.mxu0 0.0
      %4502 = vmatpush2.msra.mxu0 %v4441
      %4503 = vmatprep.subr.mxu0 0.0
      %4504 = vmatpush2.msra.mxu0 %v4440
      %4505 = vmatprep.subr.mxu0 0.0
      %4506 = vmatpush2.msra.mxu0 %v4439
      %4507 = vmatprep.subr.mxu0 0.0
      %4508 = vmatpush2.msra.mxu0 %v4438
      %4509 = vmatprep.subr.mxu0 0.0
      %4510 = vmatpush2.msra.mxu0 %v4437
      %4511 = vmatprep.subr.mxu0 0.0
      %4512 = vmatpush2.msra.mxu0 %v4436
      %4513 = vmatprep.subr.mxu0 0.0
      %4514 = vmatpush2.msra.mxu0 %v4435
      %4515 = vmatprep.mubr.f32.mxu0 %v4416
      %4516 = vmatmul.mubr.f32.gmra.mxu0 %v4414
      %v4517 = vpop.f32.mrf.mxu0
      %v4518 = vadd.f32 0.0, %v4517
      %v4519 = vpop.f32.mrf.mxu0
      %4520 = vdwg.mxu0
      %4521 = vmatprep.subr.mxu0 0.0
      %4522 = vmatpush1.msra.mxu0 %v4325
      %4523 = vmatprep.subr.mxu0 0.0
      %4524 = vmatpush1.msra.mxu0 %v4324
      %4525 = vmatprep.subr.mxu0 0.0
      %4526 = vmatpush1.msra.mxu0 %v4323
      %4527 = vmatprep.subr.mxu0 0.0
      %4528 = vmatpush1.msra.mxu0 %v4322
      %4529 = vmatprep.subr.mxu0 0.0
      %4530 = vmatpush1.msra.mxu0 %v4321
      %4531 = vmatprep.subr.mxu0 0.0
      %4532 = vmatpush1.msra.mxu0 %v4320
      %4533 = vmatprep.subr.mxu0 0.0
      %4534 = vmatpush1.msra.mxu0 %v4319
      %4535 = vmatprep.subr.mxu0 0.0
      %4536 = vmatpush1.msra.mxu0 %v4318
      %4537 = vmatprep.subr.mxu0 0.0
      %4538 = vmatpush1.msra.mxu0 %v4317
      %4539 = vmatprep.subr.mxu0 0.0
      %4540 = vmatpush1.msra.mxu0 %v4316
      %4541 = vmatprep.subr.mxu0 0.0
      %4542 = vmatpush1.msra.mxu0 %v4315
      %4543 = vmatprep.subr.mxu0 0.0
      %4544 = vmatpush1.msra.mxu0 %v4314
      %4545 = vmatprep.subr.mxu0 0.0
      %4546 = vmatpush1.msra.mxu0 %v4313
      %4547 = vmatprep.subr.mxu0 0.0
      %4548 = vmatpush1.msra.mxu0 %v4312
      %4549 = vmatprep.subr.mxu0 0.0
      %4550 = vmatpush1.msra.mxu0 %v4311
      %4551 = vmatprep.subr.mxu0 0.0
      %4552 = vmatpush1.msra.mxu0 %v4310
      %4553 = vmatprep.subr.mxu0 0.0
      %4554 = vmatpush2.msra.mxu0 %v4341
      %4555 = vmatprep.subr.mxu0 0.0
      %4556 = vmatpush2.msra.mxu0 %v4340
      %4557 = vmatprep.subr.mxu0 0.0
      %4558 = vmatpush2.msra.mxu0 %v4339
      %4559 = vmatprep.subr.mxu0 0.0
      %4560 = vmatpush2.msra.mxu0 %v4338
      %4561 = vmatprep.subr.mxu0 0.0
      %4562 = vmatpush2.msra.mxu0 %v4337
      %4563 = vmatprep.subr.mxu0 0.0
      %4564 = vmatpush2.msra.mxu0 %v4336
      %4565 = vmatprep.subr.mxu0 0.0
      %4566 = vmatpush2.msra.mxu0 %v4335
      %4567 = vmatprep.subr.mxu0 0.0
      %4568 = vmatpush2.msra.mxu0 %v4334
      %4569 = vmatprep.subr.mxu0 0.0
      %4570 = vmatpush2.msra.mxu0 %v4333
      %4571 = vmatprep.subr.mxu0 0.0
      %4572 = vmatpush2.msra.mxu0 %v4332
      %4573 = vmatprep.subr.mxu0 0.0
      %4574 = vmatpush2.msra.mxu0 %v4331
      %4575 = vmatprep.subr.mxu0 0.0
      %4576 = vmatpush2.msra.mxu0 %v4330
      %4577 = vmatprep.subr.mxu0 0.0
      %4578 = vmatpush2.msra.mxu0 %v4329
      %4579 = vmatprep.subr.mxu0 0.0
      %4580 = vmatpush2.msra.mxu0 %v4328
      %4581 = vmatprep.subr.mxu0 0.0
      %4582 = vmatpush2.msra.mxu0 %v4327
      %4583 = vmatprep.subr.mxu0 0.0
      %4584 = vmatpush2.msra.mxu0 %v4326
      %4585 = vmatprep.mubr.f32.mxu0 %v4308
      %4586 = vmatmul.mubr.f32.gmra.mxu0 %v4306
      %v4587 = vpop.f32.mrf.mxu0
      %v4588 = vadd.f32 %v4518, %v4587
      %v4589 = vpop.f32.mrf.mxu0
      %4590 = vdwg.mxu0
      %s4591 = scalar_lea.vmem %s10, 4
      %v4592 = vld [vmem:[%s4591] sm:$0x3]
      %v4594 = vsel %vm4228, %v4592, 0
      %4596 = vmatprep.subr.mxu0 0.0
      %4597 = vmatpush1.msra.mxu0 0.0
      %4598 = vmatprep.subr.mxu0 0.0
      %4599 = vmatpush1.msra.mxu0 0.0
      %4600 = vmatprep.subr.mxu0 0.0
      %4601 = vmatpush1.msra.mxu0 0.0
      %4602 = vmatprep.subr.mxu0 0.0
      %4603 = vmatpush1.msra.mxu0 0.0
      %4604 = vmatprep.subr.mxu0 0.0
      %4605 = vmatpush1.msra.mxu0 0.0
      %4606 = vmatprep.subr.mxu0 0.0
      %4607 = vmatpush1.msra.mxu0 0.0
      %4608 = vmatprep.subr.mxu0 0.0
      %4609 = vmatpush1.msra.mxu0 0.0
      %4610 = vmatprep.subr.mxu0 0.0
      %4611 = vmatpush1.msra.mxu0 0.0
      %4612 = vmatprep.subr.mxu0 0.0
      %4613 = vmatpush1.msra.mxu0 0.0
      %4614 = vmatprep.subr.mxu0 0.0
      %4615 = vmatpush1.msra.mxu0 0.0
      %4616 = vmatprep.subr.mxu0 0.0
      %4617 = vmatpush1.msra.mxu0 0.0
      %4618 = vmatprep.subr.mxu0 0.0
      %4619 = vmatpush1.msra.mxu0 0.0
      %4620 = vmatprep.subr.mxu0 0.0
      %4621 = vmatpush1.msra.mxu0 0.0
      %4622 = vmatprep.subr.mxu0 0.0
      %4623 = vmatpush1.msra.mxu0 0.0
      %4624 = vmatprep.subr.mxu0 0.0
      %4625 = vmatpush1.msra.mxu0 0.0
      %4626 = vmatprep.subr.mxu0 %v4237
      %4627 = vmatpush1.msra.mxu0 %v4234
      %4628 = vmatprep.subr.mxu0 0.0
      %4629 = vmatpush2.msra.mxu0 0.0
      %4630 = vmatprep.subr.mxu0 0.0
      %4631 = vmatpush2.msra.mxu0 0.0
      %4632 = vmatprep.subr.mxu0 0.0
      %4633 = vmatpush2.msra.mxu0 0.0
      %4634 = vmatprep.subr.mxu0 0.0
      %4635 = vmatpush2.msra.mxu0 0.0
      %4636 = vmatprep.subr.mxu0 0.0
      %4637 = vmatpush2.msra.mxu0 0.0
      %4638 = vmatprep.subr.mxu0 0.0
      %4639 = vmatpush2.msra.mxu0 0.0
      %4640 = vmatprep.subr.mxu0 0.0
      %4641 = vmatpush2.msra.mxu0 0.0
      %4642 = vmatprep.subr.mxu0 0.0
      %4643 = vmatpush2.msra.mxu0 0.0
      %4644 = vmatprep.subr.mxu0 0.0
      %4645 = vmatpush2.msra.mxu0 0.0
      %4646 = vmatprep.subr.mxu0 0.0
      %4647 = vmatpush2.msra.mxu0 0.0
      %4648 = vmatprep.subr.mxu0 0.0
      %4649 = vmatpush2.msra.mxu0 0.0
      %4650 = vmatprep.subr.mxu0 0.0
      %4651 = vmatpush2.msra.mxu0 0.0
      %4652 = vmatprep.subr.mxu0 0.0
      %4653 = vmatpush2.msra.mxu0 0.0
      %4654 = vmatprep.subr.mxu0 0.0
      %4655 = vmatpush2.msra.mxu0 0.0
      %4656 = vmatprep.subr.mxu0 0.0
      %4657 = vmatpush2.msra.mxu0 0.0
      %4658 = vmatprep.subr.mxu0 0.0
      %4659 = vmatpush2.msra.mxu0 0.0
      %4660 = vmatprep.mubr.f32.mxu0 0.0
      %4661 = vmatmul.mubr.f32.gmra.mxu0 %v4594
      %v4662 = vpop.f32.mrf.mxu0
      %v4663 = vadd.f32 0.0, %v4662
      %v4664 = vpop.f32.mrf.mxu0
      %v4665 = vadd.f32 0.0, %v4664
      %4666 = vdwg.mxu0
      %s4667 = scalar_lea.vmem %s11, 512
      %v4668 = vld [vmem:[%s4667] sm:$0xff]
      %v4669 = vld [vmem:[%s4667 + $0x8] sm:$0xff]
      %v4670 = vld [vmem:[%s4667 + $0x10] sm:$0xff]
      %v4671 = vld [vmem:[%s4667 + $0x18] sm:$0xff]
      %v4672 = vld [vmem:[%s4667 + $0x20] sm:$0xff]
      %v4673 = vld [vmem:[%s4667 + $0x28] sm:$0xff]
      %v4674 = vld [vmem:[%s4667 + $0x30] sm:$0xff]
      %v4675 = vld [vmem:[%s4667 + $0x38] sm:$0xff]
      %v4676 = vld [vmem:[%s4667 + $0x40] sm:$0xff]
      %v4677 = vld [vmem:[%s4667 + $0x48] sm:$0xff]
      %v4678 = vld [vmem:[%s4667 + $0x50] sm:$0xff]
      %v4679 = vld [vmem:[%s4667 + $0x58] sm:$0xff]
      %v4680 = vld [vmem:[%s4667 + $0x60] sm:$0xff]
      %v4681 = vld [vmem:[%s4667 + $0x68] sm:$0xff]
      %v4682 = vld [vmem:[%s4667 + $0x70] sm:$0xff]
      %v4683 = vld [vmem:[%s4667 + $0x78] sm:$0xff]
      %v4684 = vld [vmem:[%s4667 + $0x80] sm:$0xff]
      %v4685 = vld [vmem:[%s4667 + $0x88] sm:$0xff]
      %v4686 = vld [vmem:[%s4667 + $0x90] sm:$0xff]
      %v4687 = vld [vmem:[%s4667 + $0x98] sm:$0xff]
      %v4688 = vld [vmem:[%s4667 + $0xa0] sm:$0xff]
      %v4689 = vld [vmem:[%s4667 + $0xa8] sm:$0xff]
      %v4690 = vld [vmem:[%s4667 + $0xb0] sm:$0xff]
      %v4691 = vld [vmem:[%s4667 + $0xb8] sm:$0xff]
      %v4692 = vld [vmem:[%s4667 + $0xc0] sm:$0xff]
      %v4693 = vld [vmem:[%s4667 + $0xc8] sm:$0xff]
      %v4694 = vld [vmem:[%s4667 + $0xd0] sm:$0xff]
      %v4695 = vld [vmem:[%s4667 + $0xd8] sm:$0xff]
      %v4696 = vld [vmem:[%s4667 + $0xe0] sm:$0xff]
      %v4697 = vld [vmem:[%s4667 + $0xe8] sm:$0xff]
      %v4698 = vld [vmem:[%s4667 + $0xf0] sm:$0xff]
      %v4699 = vld [vmem:[%s4667 + $0xf8] sm:$0xff]
      %4700 = vmatprep.subr.mxu0 0.0
      %4701 = vmatpush1.msra.mxu0 %v4683
      %4702 = vmatprep.subr.mxu0 0.0
      %4703 = vmatpush1.msra.mxu0 %v4682
      %4704 = vmatprep.subr.mxu0 0.0
      %4705 = vmatpush1.msra.mxu0 %v4681
      %4706 = vmatprep.subr.mxu0 0.0
      %4707 = vmatpush1.msra.mxu0 %v4680
      %4708 = vmatprep.subr.mxu0 0.0
      %4709 = vmatpush1.msra.mxu0 %v4679
      %4710 = vmatprep.subr.mxu0 0.0
      %4711 = vmatpush1.msra.mxu0 %v4678
      %4712 = vmatprep.subr.mxu0 0.0
      %4713 = vmatpush1.msra.mxu0 %v4677
      %4714 = vmatprep.subr.mxu0 0.0
      %4715 = vmatpush1.msra.mxu0 %v4676
      %4716 = vmatprep.subr.mxu0 0.0
      %4717 = vmatpush1.msra.mxu0 %v4675
      %4718 = vmatprep.subr.mxu0 0.0
      %4719 = vmatpush1.msra.mxu0 %v4674
      %4720 = vmatprep.subr.mxu0 0.0
      %4721 = vmatpush1.msra.mxu0 %v4673
      %4722 = vmatprep.subr.mxu0 0.0
      %4723 = vmatpush1.msra.mxu0 %v4672
      %4724 = vmatprep.subr.mxu0 0.0
      %4725 = vmatpush1.msra.mxu0 %v4671
      %4726 = vmatprep.subr.mxu0 0.0
      %4727 = vmatpush1.msra.mxu0 %v4670
      %4728 = vmatprep.subr.mxu0 0.0
      %4729 = vmatpush1.msra.mxu0 %v4669
      %4730 = vmatprep.subr.mxu0 0.0
      %4731 = vmatpush1.msra.mxu0 %v4668
      %4732 = vmatprep.subr.mxu0 0.0
      %4733 = vmatpush2.msra.mxu0 %v4699
      %4734 = vmatprep.subr.mxu0 0.0
      %4735 = vmatpush2.msra.mxu0 %v4698
      %4736 = vmatprep.subr.mxu0 0.0
      %4737 = vmatpush2.msra.mxu0 %v4697
      %4738 = vmatprep.subr.mxu0 0.0
      %4739 = vmatpush2.msra.mxu0 %v4696
      %4740 = vmatprep.subr.mxu0 0.0
      %4741 = vmatpush2.msra.mxu0 %v4695
      %4742 = vmatprep.subr.mxu0 0.0
      %4743 = vmatpush2.msra.mxu0 %v4694
      %4744 = vmatprep.subr.mxu0 0.0
      %4745 = vmatpush2.msra.mxu0 %v4693
      %4746 = vmatprep.subr.mxu0 0.0
      %4747 = vmatpush2.msra.mxu0 %v4692
      %4748 = vmatprep.subr.mxu0 0.0
      %4749 = vmatpush2.msra.mxu0 %v4691
      %4750 = vmatprep.subr.mxu0 0.0
      %4751 = vmatpush2.msra.mxu0 %v4690
      %4752 = vmatprep.subr.mxu0 0.0
      %4753 = vmatpush2.msra.mxu0 %v4689
      %4754 = vmatprep.subr.mxu0 0.0
      %4755 = vmatpush2.msra.mxu0 %v4688
      %4756 = vmatprep.subr.mxu0 0.0
      %4757 = vmatpush2.msra.mxu0 %v4687
      %4758 = vmatprep.subr.mxu0 0.0
      %4759 = vmatpush2.msra.mxu0 %v4686
      %4760 = vmatprep.subr.mxu0 0.0
      %4761 = vmatpush2.msra.mxu0 %v4685
      %4762 = vmatprep.subr.mxu0 0.0
      %4763 = vmatpush2.msra.mxu0 %v4684
      %4764 = vmatprep.mubr.f32.mxu0 %v4665
      %4765 = vmatmul.mubr.f32.gmra.mxu0 %v4663
      %v4766 = vpop.f32.mrf.mxu0
      %v4767 = vadd.f32 0.0, %v4766
      %v4768 = vpop.f32.mrf.mxu0
      %4769 = vdwg.mxu0
      %v4770 = vadd.f32 %v4588, %v4767
      %s4771 = scalar_lea.vmem %s10, 6
      %v4772 = vld [vmem:[%s4771] sm:$0x3]
      %v4774 = vsel %vm4228, %v4772, 0
      %4776 = vmatprep.subr.mxu0 0.0
      %4777 = vmatpush1.msra.mxu0 0.0
      %4778 = vmatprep.subr.mxu0 0.0
      %4779 = vmatpush1.msra.mxu0 0.0
      %4780 = vmatprep.subr.mxu0 0.0
      %4781 = vmatpush1.msra.mxu0 0.0
      %4782 = vmatprep.subr.mxu0 0.0
      %4783 = vmatpush1.msra.mxu0 0.0
      %4784 = vmatprep.subr.mxu0 0.0
      %4785 = vmatpush1.msra.mxu0 0.0
      %4786 = vmatprep.subr.mxu0 0.0
      %4787 = vmatpush1.msra.mxu0 0.0
      %4788 = vmatprep.subr.mxu0 0.0
      %4789 = vmatpush1.msra.mxu0 0.0
      %4790 = vmatprep.subr.mxu0 0.0
      %4791 = vmatpush1.msra.mxu0 0.0
      %4792 = vmatprep.subr.mxu0 0.0
      %4793 = vmatpush1.msra.mxu0 0.0
      %4794 = vmatprep.subr.mxu0 0.0
      %4795 = vmatpush1.msra.mxu0 0.0
      %4796 = vmatprep.subr.mxu0 0.0
      %4797 = vmatpush1.msra.mxu0 0.0
      %4798 = vmatprep.subr.mxu0 0.0
      %4799 = vmatpush1.msra.mxu0 0.0
      %4800 = vmatprep.subr.mxu0 0.0
      %4801 = vmatpush1.msra.mxu0 0.0
      %4802 = vmatprep.subr.mxu0 0.0
      %4803 = vmatpush1.msra.mxu0 0.0
      %4804 = vmatprep.subr.mxu0 0.0
      %4805 = vmatpush1.msra.mxu0 0.0
      %4806 = vmatprep.subr.mxu0 %v4237
      %4807 = vmatpush1.msra.mxu0 %v4234
      %4808 = vmatprep.subr.mxu0 0.0
      %4809 = vmatpush2.msra.mxu0 0.0
      %4810 = vmatprep.subr.mxu0 0.0
      %4811 = vmatpush2.msra.mxu0 0.0
      %4812 = vmatprep.subr.mxu0 0.0
      %4813 = vmatpush2.msra.mxu0 0.0
      %4814 = vmatprep.subr.mxu0 0.0
      %4815 = vmatpush2.msra.mxu0 0.0
      %4816 = vmatprep.subr.mxu0 0.0
      %4817 = vmatpush2.msra.mxu0 0.0
      %4818 = vmatprep.subr.mxu0 0.0
      %4819 = vmatpush2.msra.mxu0 0.0
      %4820 = vmatprep.subr.mxu0 0.0
      %4821 = vmatpush2.msra.mxu0 0.0
      %4822 = vmatprep.subr.mxu0 0.0
      %4823 = vmatpush2.msra.mxu0 0.0
      %4824 = vmatprep.subr.mxu0 0.0
      %4825 = vmatpush2.msra.mxu0 0.0
      %4826 = vmatprep.subr.mxu0 0.0
      %4827 = vmatpush2.msra.mxu0 0.0
      %4828 = vmatprep.subr.mxu0 0.0
      %4829 = vmatpush2.msra.mxu0 0.0
      %4830 = vmatprep.subr.mxu0 0.0
      %4831 = vmatpush2.msra.mxu0 0.0
      %4832 = vmatprep.subr.mxu0 0.0
      %4833 = vmatpush2.msra.mxu0 0.0
      %4834 = vmatprep.subr.mxu0 0.0
      %4835 = vmatpush2.msra.mxu0 0.0
      %4836 = vmatprep.subr.mxu0 0.0
      %4837 = vmatpush2.msra.mxu0 0.0
      %4838 = vmatprep.subr.mxu0 0.0
      %4839 = vmatpush2.msra.mxu0 0.0
      %4840 = vmatprep.mubr.f32.mxu0 0.0
      %4841 = vmatmul.mubr.f32.gmra.mxu0 %v4774
      %v4842 = vpop.f32.mrf.mxu0
      %v4843 = vadd.f32 0.0, %v4842
      %v4844 = vpop.f32.mrf.mxu0
      %v4845 = vadd.f32 0.0, %v4844
      %4846 = vdwg.mxu0
      %s4847 = scalar_lea.vmem %s11, 768
      %v4848 = vld [vmem:[%s4847] sm:$0xff]
      %v4849 = vld [vmem:[%s4847 + $0x8] sm:$0xff]
      %v4850 = vld [vmem:[%s4847 + $0x10] sm:$0xff]
      %v4851 = vld [vmem:[%s4847 + $0x18] sm:$0xff]
      %v4852 = vld [vmem:[%s4847 + $0x20] sm:$0xff]
      %v4853 = vld [vmem:[%s4847 + $0x28] sm:$0xff]
      %v4854 = vld [vmem:[%s4847 + $0x30] sm:$0xff]
      %v4855 = vld [vmem:[%s4847 + $0x38] sm:$0xff]
      %v4856 = vld [vmem:[%s4847 + $0x40] sm:$0xff]
      %v4857 = vld [vmem:[%s4847 + $0x48] sm:$0xff]
      %v4858 = vld [vmem:[%s4847 + $0x50] sm:$0xff]
      %v4859 = vld [vmem:[%s4847 + $0x58] sm:$0xff]
      %v4860 = vld [vmem:[%s4847 + $0x60] sm:$0xff]
      %v4861 = vld [vmem:[%s4847 + $0x68] sm:$0xff]
      %v4862 = vld [vmem:[%s4847 + $0x70] sm:$0xff]
      %v4863 = vld [vmem:[%s4847 + $0x78] sm:$0xff]
      %v4864 = vld [vmem:[%s4847 + $0x80] sm:$0xff]
      %v4865 = vld [vmem:[%s4847 + $0x88] sm:$0xff]
      %v4866 = vld [vmem:[%s4847 + $0x90] sm:$0xff]
      %v4867 = vld [vmem:[%s4847 + $0x98] sm:$0xff]
      %v4868 = vld [vmem:[%s4847 + $0xa0] sm:$0xff]
      %v4869 = vld [vmem:[%s4847 + $0xa8] sm:$0xff]
      %v4870 = vld [vmem:[%s4847 + $0xb0] sm:$0xff]
      %v4871 = vld [vmem:[%s4847 + $0xb8] sm:$0xff]
      %v4872 = vld [vmem:[%s4847 + $0xc0] sm:$0xff]
      %v4873 = vld [vmem:[%s4847 + $0xc8] sm:$0xff]
      %v4874 = vld [vmem:[%s4847 + $0xd0] sm:$0xff]
      %v4875 = vld [vmem:[%s4847 + $0xd8] sm:$0xff]
      %v4876 = vld [vmem:[%s4847 + $0xe0] sm:$0xff]
      %v4877 = vld [vmem:[%s4847 + $0xe8] sm:$0xff]
      %v4878 = vld [vmem:[%s4847 + $0xf0] sm:$0xff]
      %v4879 = vld [vmem:[%s4847 + $0xf8] sm:$0xff]
      %4880 = vmatprep.subr.mxu0 0.0
      %4881 = vmatpush1.msra.mxu0 %v4863
      %4882 = vmatprep.subr.mxu0 0.0
      %4883 = vmatpush1.msra.mxu0 %v4862
      %4884 = vmatprep.subr.mxu0 0.0
      %4885 = vmatpush1.msra.mxu0 %v4861
      %4886 = vmatprep.subr.mxu0 0.0
      %4887 = vmatpush1.msra.mxu0 %v4860
      %4888 = vmatprep.subr.mxu0 0.0
      %4889 = vmatpush1.msra.mxu0 %v4859
      %4890 = vmatprep.subr.mxu0 0.0
      %4891 = vmatpush1.msra.mxu0 %v4858
      %4892 = vmatprep.subr.mxu0 0.0
      %4893 = vmatpush1.msra.mxu0 %v4857
      %4894 = vmatprep.subr.mxu0 0.0
      %4895 = vmatpush1.msra.mxu0 %v4856
      %4896 = vmatprep.subr.mxu0 0.0
      %4897 = vmatpush1.msra.mxu0 %v4855
      %4898 = vmatprep.subr.mxu0 0.0
      %4899 = vmatpush1.msra.mxu0 %v4854
      %4900 = vmatprep.subr.mxu0 0.0
      %4901 = vmatpush1.msra.mxu0 %v4853
      %4902 = vmatprep.subr.mxu0 0.0
      %4903 = vmatpush1.msra.mxu0 %v4852
      %4904 = vmatprep.subr.mxu0 0.0
      %4905 = vmatpush1.msra.mxu0 %v4851
      %4906 = vmatprep.subr.mxu0 0.0
      %4907 = vmatpush1.msra.mxu0 %v4850
      %4908 = vmatprep.subr.mxu0 0.0
      %4909 = vmatpush1.msra.mxu0 %v4849
      %4910 = vmatprep.subr.mxu0 0.0
      %4911 = vmatpush1.msra.mxu0 %v4848
      %4912 = vmatprep.subr.mxu0 0.0
      %4913 = vmatpush2.msra.mxu0 %v4879
      %4914 = vmatprep.subr.mxu0 0.0
      %4915 = vmatpush2.msra.mxu0 %v4878
      %4916 = vmatprep.subr.mxu0 0.0
      %4917 = vmatpush2.msra.mxu0 %v4877
      %4918 = vmatprep.subr.mxu0 0.0
      %4919 = vmatpush2.msra.mxu0 %v4876
      %4920 = vmatprep.subr.mxu0 0.0
      %4921 = vmatpush2.msra.mxu0 %v4875
      %4922 = vmatprep.subr.mxu0 0.0
      %4923 = vmatpush2.msra.mxu0 %v4874
      %4924 = vmatprep.subr.mxu0 0.0
      %4925 = vmatpush2.msra.mxu0 %v4873
      %4926 = vmatprep.subr.mxu0 0.0
      %4927 = vmatpush2.msra.mxu0 %v4872
      %4928 = vmatprep.subr.mxu0 0.0
      %4929 = vmatpush2.msra.mxu0 %v4871
      %4930 = vmatprep.subr.mxu0 0.0
      %4931 = vmatpush2.msra.mxu0 %v4870
      %4932 = vmatprep.subr.mxu0 0.0
      %4933 = vmatpush2.msra.mxu0 %v4869
      %4934 = vmatprep.subr.mxu0 0.0
      %4935 = vmatpush2.msra.mxu0 %v4868
      %4936 = vmatprep.subr.mxu0 0.0
      %4937 = vmatpush2.msra.mxu0 %v4867
      %4938 = vmatprep.subr.mxu0 0.0
      %4939 = vmatpush2.msra.mxu0 %v4866
      %4940 = vmatprep.subr.mxu0 0.0
      %4941 = vmatpush2.msra.mxu0 %v4865
      %4942 = vmatprep.subr.mxu0 0.0
      %4943 = vmatpush2.msra.mxu0 %v4864
      %4944 = vmatprep.mubr.f32.mxu0 %v4845
      %4945 = vmatmul.mubr.f32.gmra.mxu0 %v4843
      %v4946 = vpop.f32.mrf.mxu0
      %v4947 = vadd.f32 0.0, %v4946
      %v4948 = vpop.f32.mrf.mxu0
      %4949 = vdwg.mxu0
      %v4950 = vadd.f32 %v4770, %v4947
      %v4951 = vld [vmem:[%s12] sm:$0x1]
      %v4953 = vlaneseq
      %v4954 = vshrl.u32 %v4953, 7
      %v4955 = vsub.s32 0, %v4954
      %v4956 = vrot.slane %v4951, %v4955
      %v4958 = vadd.f32 %v4950, %v4956
      %4959 = vst [vmem:[%s438] sm:$0x3] %v4958
      %p4960 = scmp.lt.s32.totalorder %s24, 1
      %s4961 = scalar_select %p4960, %s24, 1
      %s4962 = smul.addr %s4961, 2
      %s4963 = scalar_lea.vmem %s13, %s4962
      // Predicated region
      $region73: #{conv_pre_encoder.1} parent=71 // pred_check
        %p4964 = pneg %p320
      $region74: #{conv_pre_encoder.1} parent=71 // pred_check_branch
        %4966 = sbr.rel (%p4964) target = $region76
      $region75: #{conv_pre_encoder.1} parent=71 // pred_region
        _
      $region76: #{conv_pre_encoder.1} parent=71 // pred_fallthru
        _
    $region72: #{conv_pre_encoder.1} parent=5 // pred_fallthru
      _
    %p4967 = scmp.le.s32.totalorder 2, %s19
    // Predicated region
    $region77: #{conv_pre_encoder.1} parent=5 // pred_check
      %p4968 = pneg %p4967
    $region78: #{conv_pre_encoder.1} parent=5 // pred_check_branch
      %4970 = sbr.rel (%p4968) target = $region80
    $region79: #{conv_pre_encoder.1} parent=5 // pred_region
      %s4971 = ssub.s32 %s19, 2
      // Predicated region
      $region81: #{conv_pre_encoder.1} parent=79 // pred_check
        %p4972 = pneg %p326
      $region82: #{conv_pre_encoder.1} parent=79 // pred_check_branch
        %4974 = sbr.rel (%p4972) target = $region84
      $region83: #{conv_pre_encoder.1} parent=79 // pred_region
        %p4975 = scmp.lt.s32.totalorder %s25, 1
        %s4976 = scalar_select %p4975, %s25, 1
        %s4977 = smul.addr %s4976, 2
        %s4978 = scalar_lea.vmem %s13, %s4977
      $region84: #{conv_pre_encoder.1} parent=79 // pred_fallthru
        _
    $region80: #{conv_pre_encoder.1} parent=5 // pred_fallthru
      _
  $region6: #{conv_pre_encoder.1} parent=0 // loop_footer
    %s23 = sadd.s32 1, %s19
  $region7: #{conv_pre_encoder.1} parent=0 // loop_footer_branch
    %18 = sbr.rel target = $region3
  $region8: #{conv_pre_encoder.1} parent=0 // loop_exit
    _

</llo_original>
